<compile_context>
chip_gen: v7x
topology: tpu7x:2x2x1
jax: 0.10.0
libtpu: 0.0.40
codegen_flags: <defaults>
</compile_context>

<pallas_src>
import functools

import numpy as np

import jax
import jax.numpy as jnp
from jax.experimental import pallas as pl
from jax.experimental.pallas import tpu as pltpu


def _round_up(x, m):
    return (x + m - 1) // m * m


def _mha_kernel(q_ref, k_ref, v_ref, w_ref, vec_ref, pool_ref, bpool_ref,
                o_ref, *, num_heads, head_dim, ln_eps):
    f32, bf16 = jnp.float32, jnp.bfloat16
    H, Dh = num_heads, head_dim
    TB = q_ref.shape[0]

    # Resident parameters.
    wq, wk, wv, wo = w_ref[0], w_ref[1], w_ref[2], w_ref[3]   # (D, D) bf16
    vecs = vec_ref[...]                                        # (8, D) f32
    pool = pool_ref[...]                                       # (D, Hp) 0/1 f32
    bpool = bpool_ref[...]                                     # (Hp, D) 0/1 f32

    # Projections: bf16 operands on the MXU, f32 accumulation.  Element-wise
    # math everywhere below stays f32 (v5e has no bf16 VPU/EUP).
    qp = jnp.dot(q_ref[...].astype(bf16), wq, preferred_element_type=f32) + vecs[0:1, :]
    kp = jnp.dot(k_ref[...].astype(bf16), wk, preferred_element_type=f32) + vecs[1:2, :]
    vp = jnp.dot(v_ref[...].astype(bf16), wv, preferred_element_type=f32) + vecs[2:3, :]

    # Per-head L2 normalization: segmented sum-of-squares via ONE tall
    # (2*TB, D) @ (D, Hp) pooling matmul + (Hp, D) one-hot broadcast-back.
    # Kept f32 (cheap: contraction/output width is only Hp=128) so the
    # normalization precision is preserved.
    sq = jnp.concatenate([qp * qp, kp * kp], axis=0)           # (2*TB, D)
    ss = jnp.dot(jnp.dot(sq, pool, preferred_element_type=f32),
                 bpool, preferred_element_type=f32)            # (2*TB, D)
    inv = jax.lax.rsqrt(ss + 1e-12)       # EUP; eps guards all-zero pad rows
    qn = qp * inv[:TB]
    kn = kp * inv[TB:]

    # Cosine scores for every (query-head, key-head) pair: for relative head
    # offset r, XLU-roll kn by r*Dh lanes, pool (qn * kn_r) per head, broadcast
    # the score back over its head block and weight the identically rolled vp.
    # All H offsets are stacked along sublanes into ONE tall bf16 matmul pair
    # so the MXU fill/drain is paid once, not H times.
    pool_b = pool.astype(bf16)
    bpool_b = bpool.astype(bf16)
    prods = []
    for r in range(H):
        kr = kn if r == 0 else pltpu.roll(kn, r * Dh, axis=1)
        prods.append((qn * kr).astype(bf16))                   # f32 mul, bf16 cast
    prods = jnp.concatenate(prods, axis=0)                     # (H*TB, D) bf16
    pooled = jnp.dot(prods, pool_b, preferred_element_type=f32)       # (H*TB, Hp)
    scores = jnp.dot(pooled.astype(bf16), bpool_b,
                     preferred_element_type=f32)                      # (H*TB, D)

    # TODO(synk): for H >= 8 switch this static accumulation loop to
    # lax.fori_loop(..., unroll=True) to bound vreg live ranges.
    acc = scores[0:TB, :] * vp                                 # r = 0
    for r in range(1, H):
        vr = pltpu.roll(vp, r * Dh, axis=1)
        acc = acc + scores[r * TB:(r + 1) * TB, :] * vr

    # Output projection.  The 1/head_dim score scale and PyTorch's
    # transpose(1,2).view head interleave are folded into wo (wrapper-side),
    # so acc is consumed in its natural (head, dim) order -- no concat/gather.
    # TODO(synk): nn.Dropout on the scores is identity in eval mode; omitted.
    out = jnp.dot(acc.astype(bf16), wo, preferred_element_type=f32) + vecs[3:4, :]

    # Residual (with projected q) + LayerNorm over d_model.
    x = qp + out
    mean = jnp.mean(x, axis=-1, keepdims=True)
    c = x - mean
    var = jnp.mean(c * c, axis=-1, keepdims=True)
    o_ref[...] = vecs[4:5, :] * c * jax.lax.rsqrt(var + ln_eps) + vecs[5:6, :]


def pack_mha_params(params, num_heads):
    """One-time packing of PyTorch-layout parameters (hoisted out of the call)."""
    D = params["wq"].shape[0]
    assert D % num_heads == 0
    Dh = D // num_heads
    Hp = _round_up(num_heads, 128)     # pooled lanes padded to full vreg width

    # PyTorch Linear computes y = x @ W.T + b -> store W.T (in, out).  Fold the
    # transpose(1,2).view interleave and the 1/head_dim scale into wo.
    perm = np.concatenate([np.arange(Dh) * num_heads + h for h in range(num_heads)])
    wo_folded = params["wo"].T[perm, :] * (1.0 / Dh)
    w_all = jnp.stack([params["wq"].T, params["wk"].T, params["wv"].T,
                       wo_folded]).astype(jnp.bfloat16)        # (4, D, D) bf16

    # Six (D,) vectors packed into one sublane-aligned (8, D) f32 block.
    zero = jnp.zeros((D,), jnp.float32)
    vec = jnp.stack([params["bq"], params["bk"], params["bv"], params["bo"],
                     params["ln_w"], params["ln_b"], zero, zero]
                    ).astype(jnp.float32)

    # Head pooling / broadcast-back one-hot masks; pool @ bpool equals the old
    # (D, D) block-diagonal mask but each factor only costs O(D * Hp) MXU work.
    hid = np.arange(D) // Dh
    pool = (hid[:, None] == np.arange(Hp)[None, :]).astype(np.float32)   # (D, Hp)
    bpool = pool.T.copy()                                                # (Hp, D)

    return {"w": w_all, "vec": vec,
            "pool": jnp.asarray(pool), "bpool": jnp.asarray(bpool),
            "num_heads": num_heads, "head_dim": Dh}


def multi_head_attention(q, k, v, packed, *, ln_eps=1e-5):
    B, D = q.shape
    H, Dh = packed["num_heads"], packed["head_dim"]
    Hp = packed["pool"].shape[1]

    # Batch tile: 8-row aligned, capped at 256 rows, and chosen so the grid
    # has >= 2 steps when B allows it so dimension_semantics=("parallel",)
    # shards across v7x's two TensorCores.
    if B >= 16:
        tile_b = min(256, _round_up(pl.cdiv(B, 2), 8))
    else:
        tile_b = _round_up(max(B, 1), 8)
    b_pad = _round_up(B, tile_b)
    if b_pad != B:
        # TODO(synk): a ragged tail tile would avoid this pad traffic; padded
        # rows stay finite (rsqrt eps) and are sliced off below.
        pad = ((0, b_pad - B), (0, 0))
        q, k, v = jnp.pad(q, pad), jnp.pad(k, pad), jnp.pad(v, pad)
    grid = (b_pad // tile_b,)

    kernel = functools.partial(_mha_kernel, num_heads=H, head_dim=Dh,
                               ln_eps=ln_eps)

    cost = pl.CostEstimate(
        flops=8 * b_pad * D * D + (2 + H) * 4 * b_pad * D * Hp,
        transcendentals=2 * b_pad * D + b_pad,
        bytes_accessed=4 * 4 * b_pad * D + 2 * 4 * D * D + 4 * 8 * D
                       + 2 * 4 * D * Hp,
    )

    out = pl.pallas_call(
        kernel,
        out_shape=jax.ShapeDtypeStruct((b_pad, D), jnp.float32),
        grid=grid,
        in_specs=[
            pl.BlockSpec((tile_b, D), lambda i: (i, 0)),   # q
            pl.BlockSpec((tile_b, D), lambda i: (i, 0)),   # k
            pl.BlockSpec((tile_b, D), lambda i: (i, 0)),   # v
            # Grid-invariant (index_map -> 0): fetched once, VMEM-resident.
            # TODO(synk): on v7x (64 MiB VMEM) add pipeline_mode=pl.Buffered(1)
            # to these four specs to drop their second pipeline buffer.
            pl.BlockSpec((4, D, D), lambda i: (0, 0, 0)),  # bf16 weights
            pl.BlockSpec((8, D), lambda i: (0, 0)),        # biases / LN vecs
            pl.BlockSpec((D, Hp), lambda i: (0, 0)),       # head pooling mask
            pl.BlockSpec((Hp, D), lambda i: (0, 0)),       # broadcast-back mask
        ],
        out_specs=pl.BlockSpec((tile_b, D), lambda i: (i, 0)),
        compiler_params=pltpu.CompilerParams(
            dimension_semantics=("parallel",),
            vmem_limit_bytes=48 * 1024 * 1024,
        ),
        cost_estimate=cost,
    )(q, k, v, packed["w"], packed["vec"], packed["pool"], packed["bpool"])
    return out[:B] if b_pad != B else out


def reference(q, k, v, params, *, num_heads, ln_eps=1e-5):
    """Pure-JAX f32 transcription of the PyTorch forward, for verification."""
    B, D = q.shape
    Dh = D // num_heads
    qp = q @ params["wq"].T + params["bq"]
    kp = k @ params["wk"].T + params["bk"]
    vp = v @ params["wv"].T + params["bv"]
    qh = qp.reshape(B, num_heads, Dh)
    kh = kp.reshape(B, num_heads, Dh)
    vh = vp.reshape(B, num_heads, Dh)
    qn = qh / jnp.sqrt(jnp.sum(qh * qh, axis=-1, keepdims=True))
    kn = kh / jnp.sqrt(jnp.sum(kh * kh, axis=-1, keepdims=True))
    s = jnp.einsum("bhd,bgd->bhg", qn, kn) / Dh
    out = jnp.einsum("bhg,bgd->bhd", s, vh)
    out = jnp.transpose(out, (0, 2, 1)).reshape(B, D)
    out = out @ params["wo"].T + params["bo"]
    x = qp + out
    mean = x.mean(-1, keepdims=True)
    var = ((x - mean) ** 2).mean(-1, keepdims=True)
    return params["ln_w"] * (x - mean) / jnp.sqrt(var + ln_eps) + params["ln_b"]


if __name__ == "__main__":
    # Lane-dense demo: d_model = 128 (full vreg lane group), 4 heads of
    # head_dim 32, batch 256 -> grid of two 128-row "parallel" tiles.
    B, D, H = 256, 128, 4

    key = jax.random.PRNGKey(0)
    keys = jax.random.split(key, 11)
    q = jax.random.normal(keys[0], (B, D), jnp.float32)
    k = jax.random.normal(keys[1], (B, D), jnp.float32)
    v = jax.random.normal(keys[2], (B, D), jnp.float32)

    def w(kk):
        return jax.random.normal(kk, (D, D), jnp.float32) * 0.1

    def b(kk):
        return jax.random.normal(kk, (D,), jnp.float32) * 0.05

    params = {
        "wq": w(keys[3]), "bq": b(keys[4]),
        "wk": w(keys[5]), "bk": b(keys[6]),
        "wv": w(keys[7]), "bv": b(keys[8]),
        "wo": w(keys[9]), "bo": b(keys[10]),
        "ln_w": jnp.ones((D,), jnp.float32),   # PyTorch LayerNorm default init
        "ln_b": jnp.zeros((D,), jnp.float32),
    }

    packed = pack_mha_params(params, num_heads=H)   # one-time packing
    out = multi_head_attention(q, k, v, packed)
    out = jax.block_until_ready(out)

    ref = reference(q, k, v, params, num_heads=H)
    assert out.shape == (B, D)
    err = float(jnp.max(jnp.abs(out - ref)))
    # bf16 matmul operands (f32 accumulation) vs. the all-f32 reference.
    assert err < 5e-2, f"max abs err = {err}"

    print("KERNEL_OK")
</pallas_src>

<mosaic_0001>
module attributes {stable_mosaic.version = 11 : i64} {
  func.func @_mha_kernel(%arg0: i32, %arg1: memref<128x128xf32, #tpu.memory_space<vmem>>, %arg2: memref<128x128xf32, #tpu.memory_space<vmem>>, %arg3: memref<128x128xf32, #tpu.memory_space<vmem>>, %arg4: memref<4x128x128xbf16, #tpu.memory_space<vmem>>, %arg5: memref<8x128xf32, #tpu.memory_space<vmem>>, %arg6: memref<128x128xf32, #tpu.memory_space<vmem>>, %arg7: memref<128x128xf32, #tpu.memory_space<vmem>>, %arg8: memref<128x128xf32, #tpu.memory_space<vmem>>) attributes {dimension_semantics = [#tpu.dimension_semantics<parallel>], iteration_bounds = array<i64: 2>, scalar_prefetch = 0 : i64, scratch_operands = 0 : i64, tpu.core_type = #tpu.core_type<tc>, window_params = [{transform_indices = @transform_0, window_bounds = array<i64: 128, 128>}, {transform_indices = @transform_1, window_bounds = array<i64: 128, 128>}, {transform_indices = @transform_2, window_bounds = array<i64: 128, 128>}, {pipeline_mode = #tpu.pipeline_mode<synchronous>, transform_indices = @transform_3, window_bounds = array<i64: 4, 128, 128>}, {pipeline_mode = #tpu.pipeline_mode<synchronous>, transform_indices = @transform_4, window_bounds = array<i64: 8, 128>}, {pipeline_mode = #tpu.pipeline_mode<synchronous>, transform_indices = @transform_5, window_bounds = array<i64: 128, 128>}, {pipeline_mode = #tpu.pipeline_mode<synchronous>, transform_indices = @transform_6, window_bounds = array<i64: 128, 128>}, {transform_indices = @transform_7, window_bounds = array<i64: 128, 128>}]} {
    %c0 = arith.constant 0 : index
    %c0_0 = arith.constant 0 : index
    %c0_1 = arith.constant 0 : index
    %0 = vector.load %arg4[%c0, %c0_0, %c0_1] : memref<4x128x128xbf16, #tpu.memory_space<vmem>>, vector<1x128x128xbf16>
    %1 = vector.shape_cast %0 : vector<1x128x128xbf16> to vector<128x128xbf16>
    %c1 = arith.constant 1 : index
    %c0_2 = arith.constant 0 : index
    %c0_3 = arith.constant 0 : index
    %2 = vector.load %arg4[%c1, %c0_2, %c0_3] : memref<4x128x128xbf16, #tpu.memory_space<vmem>>, vector<1x128x128xbf16>
    %3 = vector.shape_cast %2 : vector<1x128x128xbf16> to vector<128x128xbf16>
    %c2 = arith.constant 2 : index
    %c0_4 = arith.constant 0 : index
    %c0_5 = arith.constant 0 : index
    %4 = vector.load %arg4[%c2, %c0_4, %c0_5] : memref<4x128x128xbf16, #tpu.memory_space<vmem>>, vector<1x128x128xbf16>
    %5 = vector.shape_cast %4 : vector<1x128x128xbf16> to vector<128x128xbf16>
    %c3 = arith.constant 3 : index
    %c0_6 = arith.constant 0 : index
    %c0_7 = arith.constant 0 : index
    %6 = vector.load %arg4[%c3, %c0_6, %c0_7] : memref<4x128x128xbf16, #tpu.memory_space<vmem>>, vector<1x128x128xbf16>
    %7 = vector.shape_cast %6 : vector<1x128x128xbf16> to vector<128x128xbf16>
    %c0_8 = arith.constant 0 : index
    %c0_9 = arith.constant 0 : index
    %8 = vector.load %arg5[%c0_8, %c0_9] : memref<8x128xf32, #tpu.memory_space<vmem>>, vector<8x128xf32>
    %c0_10 = arith.constant 0 : index
    %c0_11 = arith.constant 0 : index
    %9 = vector.load %arg6[%c0_10, %c0_11] : memref<128x128xf32, #tpu.memory_space<vmem>>, vector<128x128xf32>
    %c0_12 = arith.constant 0 : index
    %c0_13 = arith.constant 0 : index
    %10 = vector.load %arg7[%c0_12, %c0_13] : memref<128x128xf32, #tpu.memory_space<vmem>>, vector<128x128xf32>
    %c0_14 = arith.constant 0 : index
    %c0_15 = arith.constant 0 : index
    %11 = vector.load %arg1[%c0_14, %c0_15] : memref<128x128xf32, #tpu.memory_space<vmem>>, vector<128x128xf32>
    %12 = arith.truncf %11 : vector<128x128xf32> to vector<128x128xbf16>
    %cst = arith.constant dense<0.000000e+00> : vector<128x128xf32>
    %13 = tpu.matmul %12, %1, %cst {dimension_numbers = #tpu.dot_dimension_numbers<[1], [0], [0], [1], [0, 0, 1, 1], [], []>} : vector<128x128xbf16>, vector<128x128xbf16>, vector<128x128xf32> -> vector<128x128xf32>
    %14 = vector.extract_strided_slice %8 {offsets = [0, 0], sizes = [1, 128], strides = [1, 1]} : vector<8x128xf32> to vector<1x128xf32>
    %15 = vector.broadcast %14 : vector<1x128xf32> to vector<128x128xf32>
    %16 = arith.addf %13, %15 : vector<128x128xf32>
    %c0_16 = arith.constant 0 : index
    %c0_17 = arith.constant 0 : index
    %17 = vector.load %arg2[%c0_16, %c0_17] : memref<128x128xf32, #tpu.memory_space<vmem>>, vector<128x128xf32>
    %18 = arith.truncf %17 : vector<128x128xf32> to vector<128x128xbf16>
    %cst_18 = arith.constant dense<0.000000e+00> : vector<128x128xf32>
    %19 = tpu.matmul %18, %3, %cst_18 {dimension_numbers = #tpu.dot_dimension_numbers<[1], [0], [0], [1], [0, 0, 1, 1], [], []>} : vector<128x128xbf16>, vector<128x128xbf16>, vector<128x128xf32> -> vector<128x128xf32>
    %20 = vector.extract_strided_slice %8 {offsets = [1, 0], sizes = [1, 128], strides = [1, 1]} : vector<8x128xf32> to vector<1x128xf32>
    %21 = vector.broadcast %20 : vector<1x128xf32> to vector<128x128xf32>
    %22 = arith.addf %19, %21 : vector<128x128xf32>
    %c0_19 = arith.constant 0 : index
    %c0_20 = arith.constant 0 : index
    %23 = vector.load %arg3[%c0_19, %c0_20] : memref<128x128xf32, #tpu.memory_space<vmem>>, vector<128x128xf32>
    %24 = arith.truncf %23 : vector<128x128xf32> to vector<128x128xbf16>
    %cst_21 = arith.constant dense<0.000000e+00> : vector<128x128xf32>
    %25 = tpu.matmul %24, %5, %cst_21 {dimension_numbers = #tpu.dot_dimension_numbers<[1], [0], [0], [1], [0, 0, 1, 1], [], []>} : vector<128x128xbf16>, vector<128x128xbf16>, vector<128x128xf32> -> vector<128x128xf32>
    %26 = vector.extract_strided_slice %8 {offsets = [2, 0], sizes = [1, 128], strides = [1, 1]} : vector<8x128xf32> to vector<1x128xf32>
    %27 = vector.broadcast %26 : vector<1x128xf32> to vector<128x128xf32>
    %28 = arith.addf %25, %27 : vector<128x128xf32>
    %29 = arith.mulf %16, %16 : vector<128x128xf32>
    %30 = arith.mulf %22, %22 : vector<128x128xf32>
    %31 = tpu.concatenate %29, %30 in 0 : vector<128x128xf32>, vector<128x128xf32> -> vector<256x128xf32>
    %cst_22 = arith.constant dense<0.000000e+00> : vector<256x128xf32>
    %32 = tpu.matmul %31, %9, %cst_22 {dimension_numbers = #tpu.dot_dimension_numbers<[1], [0], [0], [1], [0, 0, 1, 1], [], []>} : vector<256x128xf32>, vector<128x128xf32>, vector<256x128xf32> -> vector<256x128xf32>
    %cst_23 = arith.constant dense<0.000000e+00> : vector<256x128xf32>
    %33 = tpu.matmul %32, %10, %cst_23 {dimension_numbers = #tpu.dot_dimension_numbers<[1], [0], [0], [1], [0, 0, 1, 1], [], []>} : vector<256x128xf32>, vector<128x128xf32>, vector<256x128xf32> -> vector<256x128xf32>
    %cst_24 = arith.constant 9.99999996E-13 : f32
    %34 = vector.broadcast %cst_24 : f32 to vector<256x128xf32>
    %35 = arith.addf %33, %34 : vector<256x128xf32>
    %36 = math.rsqrt %35 : vector<256x128xf32>
    %37 = vector.extract_strided_slice %36 {offsets = [0, 0], sizes = [128, 128], strides = [1, 1]} : vector<256x128xf32> to vector<128x128xf32>
    %38 = arith.mulf %16, %37 : vector<128x128xf32>
    %39 = vector.extract_strided_slice %36 {offsets = [128, 0], sizes = [128, 128], strides = [1, 1]} : vector<256x128xf32> to vector<128x128xf32>
    %40 = arith.mulf %22, %39 : vector<128x128xf32>
    %41 = arith.truncf %9 : vector<128x128xf32> to vector<128x128xbf16>
    %42 = arith.truncf %10 : vector<128x128xf32> to vector<128x128xbf16>
    %43 = arith.mulf %38, %40 : vector<128x128xf32>
    %44 = arith.truncf %43 : vector<128x128xf32> to vector<128x128xbf16>
    %c32_i32 = arith.constant 32 : i32
    %45 = tpu.dynamic_rotate %40 by %c32_i32 dim 1 : vector<128x128xf32>, i32 -> vector<128x128xf32>
    %46 = arith.mulf %38, %45 : vector<128x128xf32>
    %47 = arith.truncf %46 : vector<128x128xf32> to vector<128x128xbf16>
    %c64_i32 = arith.constant 64 : i32
    %48 = tpu.dynamic_rotate %40 by %c64_i32 dim 1 : vector<128x128xf32>, i32 -> vector<128x128xf32>
    %49 = arith.mulf %38, %48 : vector<128x128xf32>
    %50 = arith.truncf %49 : vector<128x128xf32> to vector<128x128xbf16>
    %c96_i32 = arith.constant 96 : i32
    %51 = tpu.dynamic_rotate %40 by %c96_i32 dim 1 : vector<128x128xf32>, i32 -> vector<128x128xf32>
    %52 = arith.mulf %38, %51 : vector<128x128xf32>
    %53 = arith.truncf %52 : vector<128x128xf32> to vector<128x128xbf16>
    %54 = tpu.concatenate %44, %47, %50, %53 in 0 : vector<128x128xbf16>, vector<128x128xbf16>, vector<128x128xbf16>, vector<128x128xbf16> -> vector<512x128xbf16>
    %cst_25 = arith.constant dense<0.000000e+00> : vector<512x128xf32>
    %55 = tpu.matmul %54, %41, %cst_25 {dimension_numbers = #tpu.dot_dimension_numbers<[1], [0], [0], [1], [0, 0, 1, 1], [], []>} : vector<512x128xbf16>, vector<128x128xbf16>, vector<512x128xf32> -> vector<512x128xf32>
    %56 = arith.truncf %55 : vector<512x128xf32> to vector<512x128xbf16>
    %cst_26 = arith.constant dense<0.000000e+00> : vector<512x128xf32>
    %57 = tpu.matmul %56, %42, %cst_26 {dimension_numbers = #tpu.dot_dimension_numbers<[1], [0], [0], [1], [0, 0, 1, 1], [], []>} : vector<512x128xbf16>, vector<128x128xbf16>, vector<512x128xf32> -> vector<512x128xf32>
    %58 = vector.extract_strided_slice %57 {offsets = [0, 0], sizes = [128, 128], strides = [1, 1]} : vector<512x128xf32> to vector<128x128xf32>
    %59 = arith.mulf %58, %28 : vector<128x128xf32>
    %c32_i32_27 = arith.constant 32 : i32
    %60 = tpu.dynamic_rotate %28 by %c32_i32_27 dim 1 : vector<128x128xf32>, i32 -> vector<128x128xf32>
    %61 = vector.extract_strided_slice %57 {offsets = [128, 0], sizes = [128, 128], strides = [1, 1]} : vector<512x128xf32> to vector<128x128xf32>
    %62 = arith.mulf %61, %60 : vector<128x128xf32>
    %63 = arith.addf %59, %62 : vector<128x128xf32>
    %c64_i32_28 = arith.constant 64 : i32
    %64 = tpu.dynamic_rotate %28 by %c64_i32_28 dim 1 : vector<128x128xf32>, i32 -> vector<128x128xf32>
    %65 = vector.extract_strided_slice %57 {offsets = [256, 0], sizes = [128, 128], strides = [1, 1]} : vector<512x128xf32> to vector<128x128xf32>
    %66 = arith.mulf %65, %64 : vector<128x128xf32>
    %67 = arith.addf %63, %66 : vector<128x128xf32>
    %c96_i32_29 = arith.constant 96 : i32
    %68 = tpu.dynamic_rotate %28 by %c96_i32_29 dim 1 : vector<128x128xf32>, i32 -> vector<128x128xf32>
    %69 = vector.extract_strided_slice %57 {offsets = [384, 0], sizes = [128, 128], strides = [1, 1]} : vector<512x128xf32> to vector<128x128xf32>
    %70 = arith.mulf %69, %68 : vector<128x128xf32>
    %71 = arith.addf %67, %70 : vector<128x128xf32>
    %72 = arith.truncf %71 : vector<128x128xf32> to vector<128x128xbf16>
    %cst_30 = arith.constant dense<0.000000e+00> : vector<128x128xf32>
    %73 = tpu.matmul %72, %7, %cst_30 {dimension_numbers = #tpu.dot_dimension_numbers<[1], [0], [0], [1], [0, 0, 1, 1], [], []>} : vector<128x128xbf16>, vector<128x128xbf16>, vector<128x128xf32> -> vector<128x128xf32>
    %74 = vector.extract_strided_slice %8 {offsets = [3, 0], sizes = [1, 128], strides = [1, 1]} : vector<8x128xf32> to vector<1x128xf32>
    %75 = vector.broadcast %74 : vector<1x128xf32> to vector<128x128xf32>
    %76 = arith.addf %73, %75 : vector<128x128xf32>
    %77 = arith.addf %16, %76 : vector<128x128xf32>
    %cst_31 = arith.constant dense<0.000000e+00> : vector<128xf32>
    %78 = vector.multi_reduction <add>, %77, %cst_31 [1] : vector<128x128xf32> to vector<128xf32>
    %79 = vector.shape_cast %78 : vector<128xf32> to vector<128x1xf32>
    %cst_32 = arith.constant 1.280000e+02 : f32
    %80 = vector.broadcast %cst_32 : f32 to vector<128x1xf32>
    %81 = arith.divf %79, %80 : vector<128x1xf32>
    %82 = vector.broadcast %81 : vector<128x1xf32> to vector<128x128xf32>
    %83 = arith.subf %77, %82 : vector<128x128xf32>
    %84 = arith.mulf %83, %83 : vector<128x128xf32>
    %cst_33 = arith.constant dense<0.000000e+00> : vector<128xf32>
    %85 = vector.multi_reduction <add>, %84, %cst_33 [1] : vector<128x128xf32> to vector<128xf32>
    %86 = vector.shape_cast %85 : vector<128xf32> to vector<128x1xf32>
    %cst_34 = arith.constant 1.280000e+02 : f32
    %87 = vector.broadcast %cst_34 : f32 to vector<128x1xf32>
    %88 = arith.divf %86, %87 : vector<128x1xf32>
    %89 = vector.extract_strided_slice %8 {offsets = [4, 0], sizes = [1, 128], strides = [1, 1]} : vector<8x128xf32> to vector<1x128xf32>
    %90 = vector.broadcast %89 : vector<1x128xf32> to vector<128x128xf32>
    %91 = arith.mulf %90, %83 : vector<128x128xf32>
    %cst_35 = arith.constant 9.99999974E-6 : f32
    %92 = vector.broadcast %cst_35 : f32 to vector<128x1xf32>
    %93 = arith.addf %88, %92 : vector<128x1xf32>
    %94 = math.rsqrt %93 : vector<128x1xf32>
    %95 = vector.broadcast %94 : vector<128x1xf32> to vector<128x128xf32>
    %96 = arith.mulf %91, %95 : vector<128x128xf32>
    %97 = vector.extract_strided_slice %8 {offsets = [5, 0], sizes = [1, 128], strides = [1, 1]} : vector<8x128xf32> to vector<1x128xf32>
    %98 = vector.broadcast %97 : vector<1x128xf32> to vector<128x128xf32>
    %99 = arith.addf %96, %98 : vector<128x128xf32>
    %c0_36 = arith.constant 0 : index
    %c0_37 = arith.constant 0 : index
    %100 = vector.load %arg8[%c0_36, %c0_37] : memref<128x128xf32, #tpu.memory_space<vmem>>, vector<128x128xf32>
    tpu.vector_store %arg8[%c0_36, %c0_37], %99 {strides = array<i32>} : memref<128x128xf32, #tpu.memory_space<vmem>>, vector<128x128xf32>,
    return
  }
  func.func @transform_0(%arg0: i32) -> (i32, i32) {
    %c0_i32 = arith.constant 0 : i32
    %c0_i32_0 = arith.constant 0 : i32
    return %arg0, %c0_i32 : i32, i32
  }
  func.func @transform_1(%arg0: i32) -> (i32, i32) {
    %c0_i32 = arith.constant 0 : i32
    %c0_i32_0 = arith.constant 0 : i32
    return %arg0, %c0_i32 : i32, i32
  }
  func.func @transform_2(%arg0: i32) -> (i32, i32) {
    %c0_i32 = arith.constant 0 : i32
    %c0_i32_0 = arith.constant 0 : i32
    return %arg0, %c0_i32 : i32, i32
  }
  func.func @transform_3(%arg0: i32) -> (i32, i32, i32) {
    %c0_i32 = arith.constant 0 : i32
    %c0_i32_0 = arith.constant 0 : i32
    %c0_i32_1 = arith.constant 0 : i32
    %c0_i32_2 = arith.constant 0 : i32
    return %c0_i32, %c0_i32_0, %c0_i32_1 : i32, i32, i32
  }
  func.func @transform_4(%arg0: i32) -> (i32, i32) {
    %c0_i32 = arith.constant 0 : i32
    %c0_i32_0 = arith.constant 0 : i32
    %c0_i32_1 = arith.constant 0 : i32
    return %c0_i32, %c0_i32_0 : i32, i32
  }
  func.func @transform_5(%arg0: i32) -> (i32, i32) {
    %c0_i32 = arith.constant 0 : i32
    %c0_i32_0 = arith.constant 0 : i32
    %c0_i32_1 = arith.constant 0 : i32
    return %c0_i32, %c0_i32_0 : i32, i32
  }
  func.func @transform_6(%arg0: i32) -> (i32, i32) {
    %c0_i32 = arith.constant 0 : i32
    %c0_i32_0 = arith.constant 0 : i32
    %c0_i32_1 = arith.constant 0 : i32
    return %c0_i32, %c0_i32_0 : i32, i32
  }
  func.func @transform_7(%arg0: i32) -> (i32, i32) {
    %c0_i32 = arith.constant 0 : i32
    %c0_i32_0 = arith.constant 0 : i32
    return %arg0, %c0_i32 : i32, i32
  }
}

</mosaic_0001>

<llo_original>
// kernel: tpu_custom_call.1
$region0: #{tpu_custom_call.1}
  #allocation0 [shape = 'u32[]', space=smem, size = 0x4, offset = 0x4, fixed_abs, tag = 'smem constant byte address 0x4 - core index']
  #allocation1 [shape = 'u32[144,128]{1,0:T(1,128)}', space=vmem, size = 0x12000, scoped, tag = 'internal scratch']
  %s0 = inlined_call_operand.hbm [shape: f32[256,128], index: 0, kind: input, shape index: {}]
  %s1 = inlined_call_operand.hbm [shape: f32[256,128], index: 1, kind: input, shape index: {}]
  %s2 = inlined_call_operand.hbm [shape: f32[256,128], index: 2, kind: input, shape index: {}]
  %s3 = inlined_call_operand.hbm [shape: bf16[4,128,128], index: 3, kind: input, shape index: {}]
  %s4 = inlined_call_operand.vmem [shape: f32[8,128], index: 4, kind: input, shape index: {}]
  %s5 = inlined_call_operand.hbm [shape: f32[128,128], index: 5, kind: input, shape index: {}]
  %s6 = inlined_call_operand.hbm [shape: f32[128,128], index: 6, kind: input, shape index: {}]
  %s7 = inlined_call_operand.hbm [shape: f32[256,128], index: 7, kind: output, shape index: {}]
  %s8 = sld [smem:[#allocation0]]
  $region85: #{tpu_custom_call.1} parent=0
    _
  %s10 = ssub.s32 1, %s8
  %s11 = scalar_select 0, %s10, %s8
  $region1: #{tpu_custom_call.1} parent=0
    #allocation2 [shape = 'u8[131072]{0}', space=vmem, size = 0x20000, scoped, tag = 'input window, operand 0']
    #allocation3 [shape = 's32[2]{0}', space=sflag, size = 0x8, scoped, tag = 'scoped memory for tpu_custom_call.1']
    #allocation4 [shape = 's32[2]{0}', space=sflag, size = 0x8, scoped, tag = 'scoped memory for tpu_custom_call.1']
    #allocation5 [shape = 'u8[131072]{0}', space=vmem, size = 0x20000, scoped, tag = 'input window, operand 1']
    #allocation6 [shape = 's32[2]{0}', space=sflag, size = 0x8, scoped, tag = 'scoped memory for tpu_custom_call.1']
    #allocation7 [shape = 'u8[131072]{0}', space=vmem, size = 0x20000, scoped, tag = 'input window, operand 2']
    #allocation8 [shape = 'u8[131072]{0}', space=vmem, size = 0x20000, scoped, tag = 'input window, operand 3, single buffered']
    #allocation9 [shape = 's32[1]{0}', space=sflag, size = 0x4, scoped, tag = 'scoped memory for tpu_custom_call.1']
    #allocation10 [shape = 'u8[65536]{0}', space=vmem, size = 0x10000, scoped, tag = 'input window, operand 5, single buffered']
    #allocation11 [shape = 'u8[65536]{0}', space=vmem, size = 0x10000, scoped, tag = 'input window, operand 6, single buffered']
    #allocation12 [shape = 's32[1]{0}', space=sflag, size = 0x4, scoped, tag = 'scoped memory for tpu_custom_call.1']
    #allocation13 [shape = 'u8[131072]{0}', space=vmem, size = 0x20000, scoped, tag = 'output window, operand 0']
    %12 = vsyncpa [#allocation3], 0
    %s13 = scalar_lea.sflag [#allocation3], 1
    %14 = vsyncpa %s13, 0
    %15 = vsyncpa [#allocation6], 0
    %s16 = scalar_lea.sflag [#allocation6], 1
    %17 = vsyncpa %s16, 0
    %18 = vsyncpa [#allocation9], 0
    %19 = vsyncpa [#allocation12], 0
    %20 = vsyncpa [#allocation4], 0
    %s21 = scalar_lea.sflag [#allocation4], 1
    %22 = vsyncpa %s21, 0
    loop: start=0, step=1, limit=4
    $region2: #{tpu_custom_call.1} parent=1 // loop_pre_header
      _
    $region3: #{tpu_custom_call.1} parent=1 // loop_header
      %s24 = sphi 0, %s28
      %p25 = scmp.ge.s32.totalorder %s24, 4
      %s34 = sphi 0, %s36
      %s37 = sphi 0, %s34
      %s38 = sphi 0, %s37
      %s54 = sphi 0, %s38
      %s60 = sphi 0, %s62
      %s63 = sphi 0, %s60
      %s64 = sphi 0, %s63
      %s80 = sphi 0, %s64
      %s86 = sphi 0, %s88
      %s89 = sphi 0, %s86
      %s90 = sphi 0, %s89
      %s106 = sphi 0, %s90
      %s110 = sphi 0, %s110
      %s112 = sphi 0, %s110
      %s113 = sphi 0, %s112
      %s127 = sphi 0, %s113
      %s131 = sphi 0, %s131
      %s133 = sphi 0, %s131
      %s134 = sphi 0, %s133
      %s148 = sphi 0, %s134
      %s152 = sphi 0, %s152
      %s154 = sphi 0, %s152
      %s155 = sphi 0, %s154
      %s169 = sphi 0, %s155
      %s173 = sphi 0, %s173
      %s175 = sphi 0, %s173
      %s176 = sphi 0, %s175
      %s190 = sphi 0, %s176
      %s196 = sphi 0, %s198
      %s199 = sphi 0, %s196
      %s200 = sphi 0, %s199
      %s216 = sphi 0, %s200
    $region4: #{tpu_custom_call.1} parent=1 // loop_header_branch
      %27 = sbr.rel (%p25) target = $region8
    $region5: #{tpu_custom_call.1} parent=1 // loop_body
      %s29 = ssub.s32 %s24, 1
      %s30 = ssub.s32 %s24, 2
      %s31 = sadd.s32 %s24, 1
      %s32 = ssub.s32 %s24, %s31
      %p33 = scmp.eq.s32.totalorder %s32, 0
      %s35 = sadd.s32 %s34, 1
      %s36 = scalar_select %p33, %s34, %s35
      %p39 = pneg %p33
      %p40 = scmp.eq.s32.totalorder %s24, 1
      %p41 = por %p39, %p40
      %p42 = scmp.ne.s32.totalorder %s34, %s37
      %p43 = scmp.eq.s32.totalorder %s24, 0
      %p44 = por %p42, %p43
      %p45 = scmp.ne.s32.totalorder %s34, %s37
      %p46 = scmp.eq.s32.totalorder %s29, 1
      %p47 = por %p45, %p46
      %p48 = scmp.ne.s32.totalorder %s37, %s38
      %p49 = scmp.eq.s32.totalorder %s29, 0
      %p50 = por %p48, %p49
      %p51 = scmp.ne.s32.totalorder %s37, %s38
      %p52 = scmp.eq.s32.totalorder %s30, 1
      %p53 = por %p51, %p52
      %p55 = scmp.ne.s32.totalorder %s38, %s54
      %p56 = scmp.eq.s32.totalorder %s30, 0
      %p57 = por %p55, %p56
      %s58 = ssub.s32 %s24, %s31
      %p59 = scmp.eq.s32.totalorder %s58, 0
      %s61 = sadd.s32 %s60, 1
      %s62 = scalar_select %p59, %s60, %s61
      %p65 = pneg %p59
      %p66 = scmp.eq.s32.totalorder %s24, 1
      %p67 = por %p65, %p66
      %p68 = scmp.ne.s32.totalorder %s60, %s63
      %p69 = scmp.eq.s32.totalorder %s24, 0
      %p70 = por %p68, %p69
      %p71 = scmp.ne.s32.totalorder %s60, %s63
      %p72 = scmp.eq.s32.totalorder %s29, 1
      %p73 = por %p71, %p72
      %p74 = scmp.ne.s32.totalorder %s63, %s64
      %p75 = scmp.eq.s32.totalorder %s29, 0
      %p76 = por %p74, %p75
      %p77 = scmp.ne.s32.totalorder %s63, %s64
      %p78 = scmp.eq.s32.totalorder %s30, 1
      %p79 = por %p77, %p78
      %p81 = scmp.ne.s32.totalorder %s64, %s80
      %p82 = scmp.eq.s32.totalorder %s30, 0
      %p83 = por %p81, %p82
      %s84 = ssub.s32 %s24, %s31
      %p85 = scmp.eq.s32.totalorder %s84, 0
      %s87 = sadd.s32 %s86, 1
      %s88 = scalar_select %p85, %s86, %s87
      %p91 = pneg %p85
      %p92 = scmp.eq.s32.totalorder %s24, 1
      %p93 = por %p91, %p92
      %p94 = scmp.ne.s32.totalorder %s86, %s89
      %p95 = scmp.eq.s32.totalorder %s24, 0
      %p96 = por %p94, %p95
      %p97 = scmp.ne.s32.totalorder %s86, %s89
      %p98 = scmp.eq.s32.totalorder %s29, 1
      %p99 = por %p97, %p98
      %p100 = scmp.ne.s32.totalorder %s89, %s90
      %p101 = scmp.eq.s32.totalorder %s29, 0
      %p102 = por %p100, %p101
      %p103 = scmp.ne.s32.totalorder %s89, %s90
      %p104 = scmp.eq.s32.totalorder %s30, 1
      %p105 = por %p103, %p104
      %p107 = scmp.ne.s32.totalorder %s90, %s106
      %p108 = scmp.eq.s32.totalorder %s30, 0
      %p109 = por %p107, %p108
      %s111 = sadd.s32 %s110, 1
      %p114 = scmp.eq.s32.totalorder %s24, 1
      %p115 = scmp.ne.s32.totalorder %s110, %s112
      %p116 = scmp.eq.s32.totalorder %s24, 0
      %p117 = por %p115, %p116
      %p118 = scmp.ne.s32.totalorder %s110, %s112
      %p119 = scmp.eq.s32.totalorder %s29, 1
      %p120 = por %p118, %p119
      %p121 = scmp.ne.s32.totalorder %s112, %s113
      %p122 = scmp.eq.s32.totalorder %s29, 0
      %p123 = por %p121, %p122
      %p124 = scmp.ne.s32.totalorder %s112, %s113
      %p125 = scmp.eq.s32.totalorder %s30, 1
      %p126 = por %p124, %p125
      %p128 = scmp.ne.s32.totalorder %s113, %s127
      %p129 = scmp.eq.s32.totalorder %s30, 0
      %p130 = por %p128, %p129
      %s132 = sadd.s32 %s131, 1
      %p135 = scmp.eq.s32.totalorder %s24, 1
      %p136 = scmp.ne.s32.totalorder %s131, %s133
      %p137 = scmp.eq.s32.totalorder %s24, 0
      %p138 = por %p136, %p137
      %p139 = scmp.ne.s32.totalorder %s131, %s133
      %p140 = scmp.eq.s32.totalorder %s29, 1
      %p141 = por %p139, %p140
      %p142 = scmp.ne.s32.totalorder %s133, %s134
      %p143 = scmp.eq.s32.totalorder %s29, 0
      %p144 = por %p142, %p143
      %p145 = scmp.ne.s32.totalorder %s133, %s134
      %p146 = scmp.eq.s32.totalorder %s30, 1
      %p147 = por %p145, %p146
      %p149 = scmp.ne.s32.totalorder %s134, %s148
      %p150 = scmp.eq.s32.totalorder %s30, 0
      %p151 = por %p149, %p150
      %s153 = sadd.s32 %s152, 1
      %p156 = scmp.eq.s32.totalorder %s24, 1
      %p157 = scmp.ne.s32.totalorder %s152, %s154
      %p158 = scmp.eq.s32.totalorder %s24, 0
      %p159 = por %p157, %p158
      %p160 = scmp.ne.s32.totalorder %s152, %s154
      %p161 = scmp.eq.s32.totalorder %s29, 1
      %p162 = por %p160, %p161
      %p163 = scmp.ne.s32.totalorder %s154, %s155
      %p164 = scmp.eq.s32.totalorder %s29, 0
      %p165 = por %p163, %p164
      %p166 = scmp.ne.s32.totalorder %s154, %s155
      %p167 = scmp.eq.s32.totalorder %s30, 1
      %p168 = por %p166, %p167
      %p170 = scmp.ne.s32.totalorder %s155, %s169
      %p171 = scmp.eq.s32.totalorder %s30, 0
      %p172 = por %p170, %p171
      %s174 = sadd.s32 %s173, 1
      %p177 = scmp.eq.s32.totalorder %s24, 1
      %p178 = scmp.ne.s32.totalorder %s173, %s175
      %p179 = scmp.eq.s32.totalorder %s24, 0
      %p180 = por %p178, %p179
      %p181 = scmp.ne.s32.totalorder %s173, %s175
      %p182 = scmp.eq.s32.totalorder %s29, 1
      %p183 = por %p181, %p182
      %p184 = scmp.ne.s32.totalorder %s175, %s176
      %p185 = scmp.eq.s32.totalorder %s29, 0
      %p186 = por %p184, %p185
      %p187 = scmp.ne.s32.totalorder %s175, %s176
      %p188 = scmp.eq.s32.totalorder %s30, 1
      %p189 = por %p187, %p188
      %p191 = scmp.ne.s32.totalorder %s176, %s190
      %p192 = scmp.eq.s32.totalorder %s30, 0
      %p193 = por %p191, %p192
      %s194 = ssub.s32 %s24, %s31
      %p195 = scmp.eq.s32.totalorder %s194, 0
      %s197 = sadd.s32 %s196, 1
      %s198 = scalar_select %p195, %s196, %s197
      %p201 = pneg %p195
      %p202 = scmp.eq.s32.totalorder %s24, 1
      %p203 = por %p201, %p202
      %p204 = scmp.ne.s32.totalorder %s196, %s199
      %p205 = scmp.eq.s32.totalorder %s24, 0
      %p206 = por %p204, %p205
      %p207 = scmp.ne.s32.totalorder %s196, %s199
      %p208 = scmp.eq.s32.totalorder %s29, 1
      %p209 = por %p207, %p208
      %p210 = scmp.ne.s32.totalorder %s199, %s200
      %p211 = scmp.eq.s32.totalorder %s29, 0
      %p212 = por %p210, %p211
      %p213 = scmp.ne.s32.totalorder %s199, %s200
      %p214 = scmp.eq.s32.totalorder %s30, 1
      %p215 = por %p213, %p214
      %p217 = scmp.ne.s32.totalorder %s200, %s216
      %p218 = scmp.eq.s32.totalorder %s30, 0
      %p219 = por %p217, %p218
      %p220 = scmp.le.s32.totalorder 1, %s24
      %p221 = scmp.lt.s32.totalorder %s24, 3
      %p222 = pnand %p220, %p221
      %p223 = pneg %p222
      // Predicated region
      $region9: #{tpu_custom_call.1} parent=5 // pred_check
        _
      $region10: #{tpu_custom_call.1} parent=5 // pred_check_branch
        %225 = sbr.rel (%p222) target = $region12
      $region11: #{tpu_custom_call.1} parent=5 // pred_region
        %s226 = ssub.s32 %s24, 1
        // Predicated region
        $region13: #{tpu_custom_call.1} parent=11 // pred_check
          %p227 = pneg %p123
        $region14: #{tpu_custom_call.1} parent=11 // pred_check_branch
          %229 = sbr.rel (%p227) target = $region16
        $region15: #{tpu_custom_call.1} parent=11 // pred_region
          %s231 = ssub.s32 4096, 4096
          %232 = vsyncadd [#allocation9], %s231
          %s233 = sshll.u32 [#allocation8], 4
          %s234 = int_to_ptr.vmem [resolvable:$true] %s233
          %239 = dma.hbm_to_vmem [thread:$0]  %s3, 4096, %s234, [#allocation9], 64, 64, 4
        $region16: #{tpu_custom_call.1} parent=11 // pred_fallthru
          _
        // Predicated region
        $region17: #{tpu_custom_call.1} parent=11 // pred_check
          %p240 = pneg %p144
        $region18: #{tpu_custom_call.1} parent=11 // pred_check_branch
          %242 = sbr.rel (%p240) target = $region20
        $region19: #{tpu_custom_call.1} parent=11 // pred_region
          _
        $region20: #{tpu_custom_call.1} parent=11 // pred_fallthru
          _
        // Predicated region
        $region21: #{tpu_custom_call.1} parent=11 // pred_check
          %p243 = pneg %p165
        $region22: #{tpu_custom_call.1} parent=11 // pred_check_branch
          %245 = sbr.rel (%p243) target = $region24
        $region23: #{tpu_custom_call.1} parent=11 // pred_region
          %s247 = ssub.s32 2048, 2048
          %248 = vsyncadd [#allocation9], %s247
          %s249 = sshll.u32 [#allocation10], 4
          %s250 = int_to_ptr.vmem [resolvable:$true] %s249
          %255 = dma.hbm_to_vmem [thread:$0]  %s5, 2048, %s250, [#allocation9], 128, 128, 8
        $region24: #{tpu_custom_call.1} parent=11 // pred_fallthru
          _
        // Predicated region
        $region25: #{tpu_custom_call.1} parent=11 // pred_check
          %p256 = pneg %p186
        $region26: #{tpu_custom_call.1} parent=11 // pred_check_branch
          %258 = sbr.rel (%p256) target = $region28
        $region27: #{tpu_custom_call.1} parent=11 // pred_region
          %s260 = ssub.s32 2048, 2048
          %261 = vsyncadd [#allocation12], %s260
          %s262 = sshll.u32 [#allocation11], 4
          %s263 = int_to_ptr.vmem [resolvable:$true] %s262
          %268 = dma.hbm_to_vmem [thread:$0]  %s6, 2048, %s263, [#allocation12], 128, 128, 8
        $region28: #{tpu_custom_call.1} parent=11 // pred_fallthru
          _
      $region12: #{tpu_custom_call.1} parent=5 // pred_fallthru
        _
      %p269 = scmp.lt.s32.totalorder %s24, 2
      // Predicated region
      $region29: #{tpu_custom_call.1} parent=5 // pred_check
        %p270 = pneg %p269
      $region30: #{tpu_custom_call.1} parent=5 // pred_check_branch
        %272 = sbr.rel (%p270) target = $region32
      $region31: #{tpu_custom_call.1} parent=5 // pred_region
        // Predicated region
        $region33: #{tpu_custom_call.1} parent=31 // pred_check
          %p273 = pneg %p44
        $region34: #{tpu_custom_call.1} parent=31 // pred_check_branch
          %275 = sbr.rel (%p273) target = $region36
        $region35: #{tpu_custom_call.1} parent=31 // pred_region
          %s276 = sand.u32 %s34, 1
          %s277 = scalar_lea.sflag [#allocation3], %s276
          %s278 = sand.u32 %s34, 1
          %s279 = smul.addr %s278, 128
          %s280 = scalar_lea.vmem [#allocation2], %s279
          %s281 = smul.u32 16, %s24
          %s283 = ssub.s32 2048, 2048
          %284 = vsyncadd %s277, %s283
          %s285 = smul.addr %s281, 128
          %s286 = scalar_lea.hbm %s0, %s285
          %s287 = sshll.u32 %s280, 4
          %s288 = int_to_ptr.vmem [resolvable:$true] %s287
          %293 = dma.hbm_to_vmem [thread:$0]  %s286, 2048, %s288, %s277, 128, 128, 8
        $region36: #{tpu_custom_call.1} parent=31 // pred_fallthru
          _
        // Predicated region
        $region37: #{tpu_custom_call.1} parent=31 // pred_check
          %p294 = pneg %p70
        $region38: #{tpu_custom_call.1} parent=31 // pred_check_branch
          %296 = sbr.rel (%p294) target = $region40
        $region39: #{tpu_custom_call.1} parent=31 // pred_region
          %s297 = sand.u32 %s24, 1
          %s298 = scalar_lea.sflag [#allocation6], %s297
          %s299 = sand.u32 %s60, 1
          %s300 = smul.addr %s299, 128
          %s301 = scalar_lea.vmem [#allocation5], %s300
          %s302 = smul.u32 16, %s24
          %s304 = ssub.s32 2048, 2048
          %305 = vsyncadd %s298, %s304
          %s306 = smul.addr %s302, 128
          %s307 = scalar_lea.hbm %s1, %s306
          %s308 = sshll.u32 %s301, 4
          %s309 = int_to_ptr.vmem [resolvable:$true] %s308
          %314 = dma.hbm_to_vmem [thread:$0]  %s307, 2048, %s309, %s298, 128, 128, 8
        $region40: #{tpu_custom_call.1} parent=31 // pred_fallthru
          _
        // Predicated region
        $region41: #{tpu_custom_call.1} parent=31 // pred_check
          %p315 = pneg %p96
        $region42: #{tpu_custom_call.1} parent=31 // pred_check_branch
          %317 = sbr.rel (%p315) target = $region44
        $region43: #{tpu_custom_call.1} parent=31 // pred_region
          %s318 = sand.u32 %s24, 1
          %s319 = scalar_lea.sflag [#allocation6], %s318
          %s320 = sand.u32 %s86, 1
          %s321 = smul.addr %s320, 128
          %s322 = scalar_lea.vmem [#allocation7], %s321
          %s323 = smul.u32 16, %s24
          %s325 = ssub.s32 2048, 2048
          %326 = vsyncadd %s319, %s325
          %s327 = smul.addr %s323, 128
          %s328 = scalar_lea.hbm %s2, %s327
          %s329 = sshll.u32 %s322, 4
          %s330 = int_to_ptr.vmem [resolvable:$true] %s329
          %335 = dma.hbm_to_vmem [thread:$0]  %s328, 2048, %s330, %s319, 128, 128, 8
        $region44: #{tpu_custom_call.1} parent=31 // pred_fallthru
          _
      $region32: #{tpu_custom_call.1} parent=5 // pred_fallthru
        _
      %p336 = scmp.le.s32.totalorder 1, %s24
      %p337 = scmp.lt.s32.totalorder %s24, 3
      %p338 = pnand %p336, %p337
      %p339 = pneg %p338
      // Predicated region
      $region45: #{tpu_custom_call.1} parent=5 // pred_check
        _
      $region46: #{tpu_custom_call.1} parent=5 // pred_check_branch
        %341 = sbr.rel (%p338) target = $region48
      $region47: #{tpu_custom_call.1} parent=5 // pred_region
        %s342 = ssub.s32 %s24, 1
        %s343 = sand.u32 %s37, 1
        %s344 = scalar_lea.sflag [#allocation3], %s343
        %s345 = sand.u32 %s37, 1
        %s346 = smul.addr %s345, 128
        %s347 = scalar_lea.vmem [#allocation2], %s346
        // Predicated region
        $region49: #{tpu_custom_call.1} parent=47 // pred_check
          %p348 = pneg %p50
        $region50: #{tpu_custom_call.1} parent=47 // pred_check_branch
          %350 = sbr.rel (%p348) target = $region52
        $region51: #{tpu_custom_call.1} parent=47 // pred_region
          %351 = dma.done %s344, 2048
        $region52: #{tpu_custom_call.1} parent=47 // pred_fallthru
          _
        %s352 = sand.u32 %s29, 1
        %s353 = scalar_lea.sflag [#allocation6], %s352
        %s354 = sand.u32 %s63, 1
        %s355 = smul.addr %s354, 128
        %s356 = scalar_lea.vmem [#allocation5], %s355
        // Predicated region
        $region53: #{tpu_custom_call.1} parent=47 // pred_check
          %p357 = pneg %p76
        $region54: #{tpu_custom_call.1} parent=47 // pred_check_branch
          %359 = sbr.rel (%p357) target = $region56
        $region55: #{tpu_custom_call.1} parent=47 // pred_region
          %360 = dma.done %s353, 2048
        $region56: #{tpu_custom_call.1} parent=47 // pred_fallthru
          _
        %s361 = sand.u32 %s29, 1
        %s362 = scalar_lea.sflag [#allocation6], %s361
        %s363 = sand.u32 %s89, 1
        %s364 = smul.addr %s363, 128
        %s365 = scalar_lea.vmem [#allocation7], %s364
        // Predicated region
        $region57: #{tpu_custom_call.1} parent=47 // pred_check
          %p366 = pneg %p102
        $region58: #{tpu_custom_call.1} parent=47 // pred_check_branch
          %368 = sbr.rel (%p366) target = $region60
        $region59: #{tpu_custom_call.1} parent=47 // pred_region
          %369 = dma.done %s362, 2048
        $region60: #{tpu_custom_call.1} parent=47 // pred_fallthru
          _
        // Predicated region
        $region61: #{tpu_custom_call.1} parent=47 // pred_check
          %p370 = pneg %p123
        $region62: #{tpu_custom_call.1} parent=47 // pred_check_branch
          %372 = sbr.rel (%p370) target = $region64
        $region63: #{tpu_custom_call.1} parent=47 // pred_region
          %373 = dma.done [#allocation9], 4096
        $region64: #{tpu_custom_call.1} parent=47 // pred_fallthru
          _
        // Predicated region
        $region65: #{tpu_custom_call.1} parent=47 // pred_check
          %p374 = pneg %p165
        $region66: #{tpu_custom_call.1} parent=47 // pred_check_branch
          %376 = sbr.rel (%p374) target = $region68
        $region67: #{tpu_custom_call.1} parent=47 // pred_region
          %377 = dma.done [#allocation9], 2048
        $region68: #{tpu_custom_call.1} parent=47 // pred_fallthru
          _
        // Predicated region
        $region69: #{tpu_custom_call.1} parent=47 // pred_check
          %p378 = pneg %p186
        $region70: #{tpu_custom_call.1} parent=47 // pred_check_branch
          %380 = sbr.rel (%p378) target = $region72
        $region71: #{tpu_custom_call.1} parent=47 // pred_region
          %381 = dma.done [#allocation12], 2048
        $region72: #{tpu_custom_call.1} parent=47 // pred_fallthru
          _
        %s382 = sand.u32 %s37, 1
        %s383 = scalar_lea.sflag [#allocation3], %s382
        %s384 = sand.u32 %s37, 1
        %s385 = smul.addr %s384, 128
        %s386 = scalar_lea.vmem [#allocation2], %s385
        %p387 = pneg %p50
        %p388 = pneg %p47
        %s389 = sand.u32 %s29, 1
        %s390 = scalar_lea.sflag [#allocation6], %s389
        %s391 = sand.u32 %s63, 1
        %s392 = smul.addr %s391, 128
        %s393 = scalar_lea.vmem [#allocation5], %s392
        %p394 = pneg %p76
        %p395 = pneg %p73
        %s396 = sand.u32 %s29, 1
        %s397 = scalar_lea.sflag [#allocation6], %s396
        %s398 = sand.u32 %s89, 1
        %s399 = smul.addr %s398, 128
        %s400 = scalar_lea.vmem [#allocation7], %s399
        %p401 = pneg %p102
        %p402 = pneg %p99
        %p403 = pneg %p123
        %p404 = pneg %p120
        %p405 = pneg %p144
        %p406 = pneg %p141
        %p407 = pneg %p165
        %p408 = pneg %p162
        %p409 = pneg %p186
        %p410 = pneg %p183
        %p411 = pneg %p212
        %p412 = pneg %p209
        %s413 = sand.u32 %s199, 1
        %s414 = scalar_lea.sflag [#allocation4], %s413
        %s415 = sand.u32 %s199, 1
        %s416 = smul.addr %s415, 128
        %s417 = scalar_lea.vmem [#allocation13], %s416
        %s418 = smul.u32 16, %s29
        %s419 = smul.u32 16, %s29
        %s420 = smul.u32 16, %s29
        %s421 = smul.u32 16, %s29
        %v423 = vld [vmem:[#allocation8] sm:$0xf]
        %v424 = vld [vmem:[#allocation8 + $0x4] sm:$0xf]
        %v425 = vld [vmem:[#allocation8 + $0x8] sm:$0xf]
        %v426 = vld [vmem:[#allocation8 + $0xc] sm:$0xf]
        %v427 = vld [vmem:[#allocation8 + $0x10] sm:$0xf]
        %v428 = vld [vmem:[#allocation8 + $0x14] sm:$0xf]
        %v429 = vld [vmem:[#allocation8 + $0x18] sm:$0xf]
        %v430 = vld [vmem:[#allocation8 + $0x1c] sm:$0xf]
        %v431 = vld [vmem:[#allocation8 + $0x20] sm:$0xf]
        %v432 = vld [vmem:[#allocation8 + $0x24] sm:$0xf]
        %v433 = vld [vmem:[#allocation8 + $0x28] sm:$0xf]
        %v434 = vld [vmem:[#allocation8 + $0x2c] sm:$0xf]
        %v435 = vld [vmem:[#allocation8 + $0x30] sm:$0xf]
        %v436 = vld [vmem:[#allocation8 + $0x34] sm:$0xf]
        %v437 = vld [vmem:[#allocation8 + $0x38] sm:$0xf]
        %v438 = vld [vmem:[#allocation8 + $0x3c] sm:$0xf]
        %s439 = scalar_lea.vmem [#allocation8], 64
        %v440 = vld [vmem:[%s439] sm:$0xf]
        %v441 = vld [vmem:[%s439 + $0x4] sm:$0xf]
        %v442 = vld [vmem:[%s439 + $0x8] sm:$0xf]
        %v443 = vld [vmem:[%s439 + $0xc] sm:$0xf]
        %v444 = vld [vmem:[%s439 + $0x10] sm:$0xf]
        %v445 = vld [vmem:[%s439 + $0x14] sm:$0xf]
        %v446 = vld [vmem:[%s439 + $0x18] sm:$0xf]
        %v447 = vld [vmem:[%s439 + $0x1c] sm:$0xf]
        %v448 = vld [vmem:[%s439 + $0x20] sm:$0xf]
        %v449 = vld [vmem:[%s439 + $0x24] sm:$0xf]
        %v450 = vld [vmem:[%s439 + $0x28] sm:$0xf]
        %v451 = vld [vmem:[%s439 + $0x2c] sm:$0xf]
        %v452 = vld [vmem:[%s439 + $0x30] sm:$0xf]
        %v453 = vld [vmem:[%s439 + $0x34] sm:$0xf]
        %v454 = vld [vmem:[%s439 + $0x38] sm:$0xf]
        %v455 = vld [vmem:[%s439 + $0x3c] sm:$0xf]
        %s456 = scalar_lea.vmem [#allocation8], 128
        %v457 = vld [vmem:[%s456] sm:$0xf]
        %v458 = vld [vmem:[%s456 + $0x4] sm:$0xf]
        %v459 = vld [vmem:[%s456 + $0x8] sm:$0xf]
        %v460 = vld [vmem:[%s456 + $0xc] sm:$0xf]
        %v461 = vld [vmem:[%s456 + $0x10] sm:$0xf]
        %v462 = vld [vmem:[%s456 + $0x14] sm:$0xf]
        %v463 = vld [vmem:[%s456 + $0x18] sm:$0xf]
        %v464 = vld [vmem:[%s456 + $0x1c] sm:$0xf]
        %v465 = vld [vmem:[%s456 + $0x20] sm:$0xf]
        %v466 = vld [vmem:[%s456 + $0x24] sm:$0xf]
        %v467 = vld [vmem:[%s456 + $0x28] sm:$0xf]
        %v468 = vld [vmem:[%s456 + $0x2c] sm:$0xf]
        %v469 = vld [vmem:[%s456 + $0x30] sm:$0xf]
        %v470 = vld [vmem:[%s456 + $0x34] sm:$0xf]
        %v471 = vld [vmem:[%s456 + $0x38] sm:$0xf]
        %v472 = vld [vmem:[%s456 + $0x3c] sm:$0xf]
        %s473 = scalar_lea.vmem [#allocation8], 192
        %v474 = vld [vmem:[%s473] sm:$0xf]
        %v475 = vld [vmem:[%s473 + $0x4] sm:$0xf]
        %v476 = vld [vmem:[%s473 + $0x8] sm:$0xf]
        %v477 = vld [vmem:[%s473 + $0xc] sm:$0xf]
        %v478 = vld [vmem:[%s473 + $0x10] sm:$0xf]
        %v479 = vld [vmem:[%s473 + $0x14] sm:$0xf]
        %v480 = vld [vmem:[%s473 + $0x18] sm:$0xf]
        %v481 = vld [vmem:[%s473 + $0x1c] sm:$0xf]
        %v482 = vld [vmem:[%s473 + $0x20] sm:$0xf]
        %v483 = vld [vmem:[%s473 + $0x24] sm:$0xf]
        %v484 = vld [vmem:[%s473 + $0x28] sm:$0xf]
        %v485 = vld [vmem:[%s473 + $0x2c] sm:$0xf]
        %v486 = vld [vmem:[%s473 + $0x30] sm:$0xf]
        %v487 = vld [vmem:[%s473 + $0x34] sm:$0xf]
        %v488 = vld [vmem:[%s473 + $0x38] sm:$0xf]
        %v489 = vld [vmem:[%s473 + $0x3c] sm:$0xf]
        %v490 = vld [vmem:[%s4] sm:$0xff]
        %v491 = vld [vmem:[#allocation10] sm:$0xff]
        %v492 = vld [vmem:[#allocation10 + $0x8] sm:$0xff]
        %v493 = vld [vmem:[#allocation10 + $0x10] sm:$0xff]
        %v494 = vld [vmem:[#allocation10 + $0x18] sm:$0xff]
        %v495 = vld [vmem:[#allocation10 + $0x20] sm:$0xff]
        %v496 = vld [vmem:[#allocation10 + $0x28] sm:$0xff]
        %v497 = vld [vmem:[#allocation10 + $0x30] sm:$0xff]
        %v498 = vld [vmem:[#allocation10 + $0x38] sm:$0xff]
        %v499 = vld [vmem:[#allocation10 + $0x40] sm:$0xff]
        %v500 = vld [vmem:[#allocation10 + $0x48] sm:$0xff]
        %v501 = vld [vmem:[#allocation10 + $0x50] sm:$0xff]
        %v502 = vld [vmem:[#allocation10 + $0x58] sm:$0xff]
        %v503 = vld [vmem:[#allocation10 + $0x60] sm:$0xff]
        %v504 = vld [vmem:[#allocation10 + $0x68] sm:$0xff]
        %v505 = vld [vmem:[#allocation10 + $0x70] sm:$0xff]
        %v506 = vld [vmem:[#allocation10 + $0x78] sm:$0xff]
        %v507 = vld [vmem:[#allocation11] sm:$0xff]
        %v508 = vld [vmem:[#allocation11 + $0x8] sm:$0xff]
        %v509 = vld [vmem:[#allocation11 + $0x10] sm:$0xff]
        %v510 = vld [vmem:[#allocation11 + $0x18] sm:$0xff]
        %v511 = vld [vmem:[#allocation11 + $0x20] sm:$0xff]
        %v512 = vld [vmem:[#allocation11 + $0x28] sm:$0xff]
        %v513 = vld [vmem:[#allocation11 + $0x30] sm:$0xff]
        %v514 = vld [vmem:[#allocation11 + $0x38] sm:$0xff]
        %v515 = vld [vmem:[#allocation11 + $0x40] sm:$0xff]
        %v516 = vld [vmem:[#allocation11 + $0x48] sm:$0xff]
        %v517 = vld [vmem:[#allocation11 + $0x50] sm:$0xff]
        %v518 = vld [vmem:[#allocation11 + $0x58] sm:$0xff]
        %v519 = vld [vmem:[#allocation11 + $0x60] sm:$0xff]
        %v520 = vld [vmem:[#allocation11 + $0x68] sm:$0xff]
        %v521 = vld [vmem:[#allocation11 + $0x70] sm:$0xff]
        %v522 = vld [vmem:[#allocation11 + $0x78] sm:$0xff]
        %v523 = vld [vmem:[%s347] sm:$0xff]
        %v524 = vld [vmem:[%s347 + $0x8] sm:$0xff]
        %v525 = vld [vmem:[%s347 + $0x10] sm:$0xff]
        %v526 = vld [vmem:[%s347 + $0x18] sm:$0xff]
        %v527 = vld [vmem:[%s347 + $0x20] sm:$0xff]
        %v528 = vld [vmem:[%s347 + $0x28] sm:$0xff]
        %v529 = vld [vmem:[%s347 + $0x30] sm:$0xff]
        %v530 = vld [vmem:[%s347 + $0x38] sm:$0xff]
        %v531 = vld [vmem:[%s347 + $0x40] sm:$0xff]
        %v532 = vld [vmem:[%s347 + $0x48] sm:$0xff]
        %v533 = vld [vmem:[%s347 + $0x50] sm:$0xff]
        %v534 = vld [vmem:[%s347 + $0x58] sm:$0xff]
        %v535 = vld [vmem:[%s347 + $0x60] sm:$0xff]
        %v536 = vld [vmem:[%s347 + $0x68] sm:$0xff]
        %v537 = vld [vmem:[%s347 + $0x70] sm:$0xff]
        %v538 = vld [vmem:[%s347 + $0x78] sm:$0xff]
        %v539 = vpack.c.bf16 %v524, %v523
        %v540 = vpack.c.bf16 %v526, %v525
        %v541 = vpack.c.bf16 %v528, %v527
        %v542 = vpack.c.bf16 %v530, %v529
        %v543 = vpack.c.bf16 %v532, %v531
        %v544 = vpack.c.bf16 %v534, %v533
        %v545 = vpack.c.bf16 %v536, %v535
        %v546 = vpack.c.bf16 %v538, %v537
        %v547 = vlaneseq
        %v548 = vshrl.u32 %v547, 7
        %v549 = vsub.s32 0, %v548
        %v550 = vrot.slane %v490, %v549
        %v567 = vunpack.c.l.b16 %v423
        %v568 = vunpack.c.l.b16 %v424
        %v569 = vunpack.c.l.b16 %v425
        %v570 = vunpack.c.l.b16 %v426
        %v571 = vunpack.c.l.b16 %v427
        %v572 = vunpack.c.l.b16 %v428
        %v573 = vunpack.c.l.b16 %v429
        %v574 = vunpack.c.l.b16 %v430
        %v575 = vunpack.c.l.b16 %v431
        %v576 = vunpack.c.l.b16 %v432
        %v577 = vunpack.c.l.b16 %v433
        %v578 = vunpack.c.l.b16 %v434
        %v579 = vunpack.c.l.b16 %v435
        %v580 = vunpack.c.l.b16 %v436
        %v581 = vunpack.c.l.b16 %v437
        %v582 = vunpack.c.l.b16 %v438
        %v583 = vpack.c.b16 %v568, %v567
        %v584 = vpack.c.b16 %v570, %v569
        %v585 = vpack.c.b16 %v572, %v571
        %v586 = vpack.c.b16 %v574, %v573
        %v587 = vpack.c.b16 %v576, %v575
        %v588 = vpack.c.b16 %v578, %v577
        %v589 = vpack.c.b16 %v580, %v579
        %v590 = vpack.c.b16 %v582, %v581
        %599 = vmatprep.subr.bf16.mxu0 0
        %600 = vmatpush1.bf16.msra.mxu0 %v583
        %601 = vmatprep.subr.bf16.mxu0 0
        %602 = vmatpush1.bf16.msra.mxu0 %v584
        %603 = vmatprep.subr.bf16.mxu0 0
        %604 = vmatpush1.bf16.msra.mxu0 %v585
        %605 = vmatprep.subr.bf16.mxu0 0
        %606 = vmatpush1.bf16.msra.mxu0 %v586
        %607 = vmatprep.subr.bf16.mxu0 0
        %608 = vmatpush1.bf16.msra.mxu0 %v587
        %609 = vmatprep.subr.bf16.mxu0 0
        %610 = vmatpush1.bf16.msra.mxu0 %v588
        %611 = vmatprep.subr.bf16.mxu0 0
        %612 = vmatpush1.bf16.msra.mxu0 %v589
        %613 = vmatprep.subr.bf16.mxu0 0
        %614 = vmatpush1.bf16.msra.mxu0 %v590
        %615 = vmatprep.subr.bf16.mxu0 0
        %616 = vmatpush1.bf16.msra.mxu0 0
        %617 = vmatprep.subr.bf16.mxu0 0
        %618 = vmatpush1.bf16.msra.mxu0 0
        %619 = vmatprep.subr.bf16.mxu0 0
        %620 = vmatpush1.bf16.msra.mxu0 0
        %621 = vmatprep.subr.bf16.mxu0 0
        %622 = vmatpush1.bf16.msra.mxu0 0
        %623 = vmatprep.subr.bf16.mxu0 0
        %624 = vmatpush1.bf16.msra.mxu0 0
        %625 = vmatprep.subr.bf16.mxu0 0
        %626 = vmatpush1.bf16.msra.mxu0 0
        %627 = vmatprep.subr.bf16.mxu0 0
        %628 = vmatpush1.bf16.msra.mxu0 0
        %629 = vmatprep.subr.bf16.mxu0 0
        %630 = vmatpush1.bf16.msra.mxu0 0
        %631 = vmatprep.mubr.bf16.mxu0 0
        %632 = vmatmul.mubr.bf16.gmra.mrb[0].mxu0 %v539
        %v633 = vpop.f32.mrb[0].mxu0
        %v634 = vadd.f32 %v550, %v633
        %v635 = vpop.f32.mrb[0].mxu0
        %v636 = vpop.f32.mrb[0].mxu0
        %v637 = vadd.f32 %v550, %v636
        %v638 = vpop.f32.mrb[0].mxu0
        %639 = vmatprep.mubr.bf16.mxu0 0
        %640 = vmatmul.mubr.bf16.gmra.mrb[0].mxu0 %v540
        %v641 = vpop.f32.mrb[0].mxu0
        %v642 = vadd.f32 %v550, %v641
        %v643 = vpop.f32.mrb[0].mxu0
        %v644 = vpop.f32.mrb[0].mxu0
        %v645 = vadd.f32 %v550, %v644
        %v646 = vpop.f32.mrb[0].mxu0
        %647 = vmatprep.mubr.bf16.mxu0 0
        %648 = vmatmul.mubr.bf16.gmra.mrb[0].mxu0 %v541
        %v649 = vpop.f32.mrb[0].mxu0
        %v650 = vadd.f32 %v550, %v649
        %v651 = vpop.f32.mrb[0].mxu0
        %v652 = vpop.f32.mrb[0].mxu0
        %v653 = vadd.f32 %v550, %v652
        %v654 = vpop.f32.mrb[0].mxu0
        %655 = vmatprep.mubr.bf16.mxu0 0
        %656 = vmatmul.mubr.bf16.gmra.mrb[0].mxu0 %v542
        %v657 = vpop.f32.mrb[0].mxu0
        %v658 = vadd.f32 %v550, %v657
        %v659 = vpop.f32.mrb[0].mxu0
        %v660 = vpop.f32.mrb[0].mxu0
        %v661 = vadd.f32 %v550, %v660
        %v662 = vpop.f32.mrb[0].mxu0
        %663 = vmatprep.mubr.bf16.mxu0 0
        %664 = vmatmul.mubr.bf16.gmra.mrb[0].mxu0 %v543
        %v665 = vpop.f32.mrb[0].mxu0
        %v666 = vadd.f32 %v550, %v665
        %v667 = vpop.f32.mrb[0].mxu0
        %v668 = vpop.f32.mrb[0].mxu0
        %v669 = vadd.f32 %v550, %v668
        %v670 = vpop.f32.mrb[0].mxu0
        %671 = vmatprep.mubr.bf16.mxu0 0
        %672 = vmatmul.mubr.bf16.gmra.mrb[0].mxu0 %v544
        %v673 = vpop.f32.mrb[0].mxu0
        %v674 = vadd.f32 %v550, %v673
        %v675 = vpop.f32.mrb[0].mxu0
        %v676 = vpop.f32.mrb[0].mxu0
        %v677 = vadd.f32 %v550, %v676
        %v678 = vpop.f32.mrb[0].mxu0
        %679 = vmatprep.mubr.bf16.mxu0 0
        %680 = vmatmul.mubr.bf16.gmra.mrb[0].mxu0 %v545
        %v681 = vpop.f32.mrb[0].mxu0
        %v682 = vadd.f32 %v550, %v681
        %v683 = vpop.f32.mrb[0].mxu0
        %v684 = vpop.f32.mrb[0].mxu0
        %v685 = vadd.f32 %v550, %v684
        %v686 = vpop.f32.mrb[0].mxu0
        %687 = vmatprep.mubr.bf16.mxu0 0
        %688 = vmatmul.mubr.bf16.gmra.mrb[0].mxu0 %v546
        %v689 = vpop.f32.mrb[0].mxu0
        %v690 = vadd.f32 %v550, %v689
        %v691 = vpop.f32.mrb[0].mxu0
        %v692 = vpop.f32.mrb[0].mxu0
        %v693 = vadd.f32 %v550, %v692
        %v694 = vpop.f32.mrb[0].mxu0
        %695 = vdwg.mxu0
        %v696 = vld [vmem:[%s356] sm:$0xff]
        %v697 = vld [vmem:[%s356 + $0x8] sm:$0xff]
        %v698 = vld [vmem:[%s356 + $0x10] sm:$0xff]
        %v699 = vld [vmem:[%s356 + $0x18] sm:$0xff]
        %v700 = vld [vmem:[%s356 + $0x20] sm:$0xff]
        %v701 = vld [vmem:[%s356 + $0x28] sm:$0xff]
        %v702 = vld [vmem:[%s356 + $0x30] sm:$0xff]
        %v703 = vld [vmem:[%s356 + $0x38] sm:$0xff]
        %v704 = vld [vmem:[%s356 + $0x40] sm:$0xff]
        %v705 = vld [vmem:[%s356 + $0x48] sm:$0xff]
        %v706 = vld [vmem:[%s356 + $0x50] sm:$0xff]
        %v707 = vld [vmem:[%s356 + $0x58] sm:$0xff]
        %v708 = vld [vmem:[%s356 + $0x60] sm:$0xff]
        %v709 = vld [vmem:[%s356 + $0x68] sm:$0xff]
        %v710 = vld [vmem:[%s356 + $0x70] sm:$0xff]
        %v711 = vld [vmem:[%s356 + $0x78] sm:$0xff]
        %v712 = vpack.c.bf16 %v697, %v696
        %v713 = vpack.c.bf16 %v699, %v698
        %v714 = vpack.c.bf16 %v701, %v700
        %v715 = vpack.c.bf16 %v703, %v702
        %v716 = vpack.c.bf16 %v705, %v704
        %v717 = vpack.c.bf16 %v707, %v706
        %v718 = vpack.c.bf16 %v709, %v708
        %v719 = vpack.c.bf16 %v711, %v710
        %v720 = vlaneseq
        %v721 = vshrl.u32 %v720, 7
        %v722 = vsub.s32 1, %v721
        %v723 = vrot.slane %v490, %v722
        %v740 = vunpack.c.l.b16 %v440
        %v741 = vunpack.c.l.b16 %v441
        %v742 = vunpack.c.l.b16 %v442
        %v743 = vunpack.c.l.b16 %v443
        %v744 = vunpack.c.l.b16 %v444
        %v745 = vunpack.c.l.b16 %v445
        %v746 = vunpack.c.l.b16 %v446
        %v747 = vunpack.c.l.b16 %v447
        %v748 = vunpack.c.l.b16 %v448
        %v749 = vunpack.c.l.b16 %v449
        %v750 = vunpack.c.l.b16 %v450
        %v751 = vunpack.c.l.b16 %v451
        %v752 = vunpack.c.l.b16 %v452
        %v753 = vunpack.c.l.b16 %v453
        %v754 = vunpack.c.l.b16 %v454
        %v755 = vunpack.c.l.b16 %v455
        %v756 = vpack.c.b16 %v741, %v740
        %v757 = vpack.c.b16 %v743, %v742
        %v758 = vpack.c.b16 %v745, %v744
        %v759 = vpack.c.b16 %v747, %v746
        %v760 = vpack.c.b16 %v749, %v748
        %v761 = vpack.c.b16 %v751, %v750
        %v762 = vpack.c.b16 %v753, %v752
        %v763 = vpack.c.b16 %v755, %v754
        %772 = vmatprep.subr.bf16.mxu0 0
        %773 = vmatpush1.bf16.msra.mxu0 %v756
        %774 = vmatprep.subr.bf16.mxu0 0
        %775 = vmatpush1.bf16.msra.mxu0 %v757
        %776 = vmatprep.subr.bf16.mxu0 0
        %777 = vmatpush1.bf16.msra.mxu0 %v758
        %778 = vmatprep.subr.bf16.mxu0 0
        %779 = vmatpush1.bf16.msra.mxu0 %v759
        %780 = vmatprep.subr.bf16.mxu0 0
        %781 = vmatpush1.bf16.msra.mxu0 %v760
        %782 = vmatprep.subr.bf16.mxu0 0
        %783 = vmatpush1.bf16.msra.mxu0 %v761
        %784 = vmatprep.subr.bf16.mxu0 0
        %785 = vmatpush1.bf16.msra.mxu0 %v762
        %786 = vmatprep.subr.bf16.mxu0 0
        %787 = vmatpush1.bf16.msra.mxu0 %v763
        %788 = vmatprep.subr.bf16.mxu0 0
        %789 = vmatpush1.bf16.msra.mxu0 0
        %790 = vmatprep.subr.bf16.mxu0 0
        %791 = vmatpush1.bf16.msra.mxu0 0
        %792 = vmatprep.subr.bf16.mxu0 0
        %793 = vmatpush1.bf16.msra.mxu0 0
        %794 = vmatprep.subr.bf16.mxu0 0
        %795 = vmatpush1.bf16.msra.mxu0 0
        %796 = vmatprep.subr.bf16.mxu0 0
        %797 = vmatpush1.bf16.msra.mxu0 0
        %798 = vmatprep.subr.bf16.mxu0 0
        %799 = vmatpush1.bf16.msra.mxu0 0
        %800 = vmatprep.subr.bf16.mxu0 0
        %801 = vmatpush1.bf16.msra.mxu0 0
        %802 = vmatprep.subr.bf16.mxu0 0
        %803 = vmatpush1.bf16.msra.mxu0 0
        %804 = vmatprep.mubr.bf16.mxu0 0
        %805 = vmatmul.mubr.bf16.gmra.mrb[0].mxu0 %v712
        %v806 = vpop.f32.mrb[0].mxu0
        %v807 = vadd.f32 %v723, %v806
        %v808 = vpop.f32.mrb[0].mxu0
        %v809 = vpop.f32.mrb[0].mxu0
        %v810 = vadd.f32 %v723, %v809
        %v811 = vpop.f32.mrb[0].mxu0
        %812 = vmatprep.mubr.bf16.mxu0 0
        %813 = vmatmul.mubr.bf16.gmra.mrb[0].mxu0 %v713
        %v814 = vpop.f32.mrb[0].mxu0
        %v815 = vadd.f32 %v723, %v814
        %v816 = vpop.f32.mrb[0].mxu0
        %v817 = vpop.f32.mrb[0].mxu0
        %v818 = vadd.f32 %v723, %v817
        %v819 = vpop.f32.mrb[0].mxu0
        %820 = vmatprep.mubr.bf16.mxu0 0
        %821 = vmatmul.mubr.bf16.gmra.mrb[0].mxu0 %v714
        %v822 = vpop.f32.mrb[0].mxu0
        %v823 = vadd.f32 %v723, %v822
        %v824 = vpop.f32.mrb[0].mxu0
        %v825 = vpop.f32.mrb[0].mxu0
        %v826 = vadd.f32 %v723, %v825
        %v827 = vpop.f32.mrb[0].mxu0
        %828 = vmatprep.mubr.bf16.mxu0 0
        %829 = vmatmul.mubr.bf16.gmra.mrb[0].mxu0 %v715
        %v830 = vpop.f32.mrb[0].mxu0
        %v831 = vadd.f32 %v723, %v830
        %v832 = vpop.f32.mrb[0].mxu0
        %v833 = vpop.f32.mrb[0].mxu0
        %v834 = vadd.f32 %v723, %v833
        %v835 = vpop.f32.mrb[0].mxu0
        %836 = vmatprep.mubr.bf16.mxu0 0
        %837 = vmatmul.mubr.bf16.gmra.mrb[0].mxu0 %v716
        %v838 = vpop.f32.mrb[0].mxu0
        %v839 = vadd.f32 %v723, %v838
        %v840 = vpop.f32.mrb[0].mxu0
        %v841 = vpop.f32.mrb[0].mxu0
        %v842 = vadd.f32 %v723, %v841
        %v843 = vpop.f32.mrb[0].mxu0
        %844 = vmatprep.mubr.bf16.mxu0 0
        %845 = vmatmul.mubr.bf16.gmra.mrb[0].mxu0 %v717
        %v846 = vpop.f32.mrb[0].mxu0
        %v847 = vadd.f32 %v723, %v846
        %v848 = vpop.f32.mrb[0].mxu0
        %v849 = vpop.f32.mrb[0].mxu0
        %v850 = vadd.f32 %v723, %v849
        %v851 = vpop.f32.mrb[0].mxu0
        %852 = vmatprep.mubr.bf16.mxu0 0
        %853 = vmatmul.mubr.bf16.gmra.mrb[0].mxu0 %v718
        %v854 = vpop.f32.mrb[0].mxu0
        %v855 = vadd.f32 %v723, %v854
        %v856 = vpop.f32.mrb[0].mxu0
        %v857 = vpop.f32.mrb[0].mxu0
        %v858 = vadd.f32 %v723, %v857
        %v859 = vpop.f32.mrb[0].mxu0
        %860 = vmatprep.mubr.bf16.mxu0 0
        %861 = vmatmul.mubr.bf16.gmra.mrb[0].mxu0 %v719
        %v862 = vpop.f32.mrb[0].mxu0
        %v863 = vadd.f32 %v723, %v862
        %v864 = vpop.f32.mrb[0].mxu0
        %v865 = vpop.f32.mrb[0].mxu0
        %v866 = vadd.f32 %v723, %v865
        %v867 = vpop.f32.mrb[0].mxu0
        %868 = vdwg.mxu0
        %v869 = vld [vmem:[%s365] sm:$0xff]
        %v870 = vld [vmem:[%s365 + $0x8] sm:$0xff]
        %v871 = vld [vmem:[%s365 + $0x10] sm:$0xff]
        %v872 = vld [vmem:[%s365 + $0x18] sm:$0xff]
        %v873 = vld [vmem:[%s365 + $0x20] sm:$0xff]
        %v874 = vld [vmem:[%s365 + $0x28] sm:$0xff]
        %v875 = vld [vmem:[%s365 + $0x30] sm:$0xff]
        %v876 = vld [vmem:[%s365 + $0x38] sm:$0xff]
        %v877 = vld [vmem:[%s365 + $0x40] sm:$0xff]
        %v878 = vld [vmem:[%s365 + $0x48] sm:$0xff]
        %v879 = vld [vmem:[%s365 + $0x50] sm:$0xff]
        %v880 = vld [vmem:[%s365 + $0x58] sm:$0xff]
        %v881 = vld [vmem:[%s365 + $0x60] sm:$0xff]
        %v882 = vld [vmem:[%s365 + $0x68] sm:$0xff]
        %v883 = vld [vmem:[%s365 + $0x70] sm:$0xff]
        %v884 = vld [vmem:[%s365 + $0x78] sm:$0xff]
        %v885 = vpack.c.bf16 %v870, %v869
        %v886 = vpack.c.bf16 %v872, %v871
        %v887 = vpack.c.bf16 %v874, %v873
        %v888 = vpack.c.bf16 %v876, %v875
        %v889 = vpack.c.bf16 %v878, %v877
        %v890 = vpack.c.bf16 %v880, %v879
        %v891 = vpack.c.bf16 %v882, %v881
        %v892 = vpack.c.bf16 %v884, %v883
        %v893 = vlaneseq
        %v894 = vshrl.u32 %v893, 7
        %v895 = vsub.s32 2, %v894
        %v896 = vrot.slane %v490, %v895
        %v913 = vunpack.c.l.b16 %v457
        %v914 = vunpack.c.l.b16 %v458
        %v915 = vunpack.c.l.b16 %v459
        %v916 = vunpack.c.l.b16 %v460
        %v917 = vunpack.c.l.b16 %v461
        %v918 = vunpack.c.l.b16 %v462
        %v919 = vunpack.c.l.b16 %v463
        %v920 = vunpack.c.l.b16 %v464
        %v921 = vunpack.c.l.b16 %v465
        %v922 = vunpack.c.l.b16 %v466
        %v923 = vunpack.c.l.b16 %v467
        %v924 = vunpack.c.l.b16 %v468
        %v925 = vunpack.c.l.b16 %v469
        %v926 = vunpack.c.l.b16 %v470
        %v927 = vunpack.c.l.b16 %v471
        %v928 = vunpack.c.l.b16 %v472
        %v929 = vpack.c.b16 %v914, %v913
        %v930 = vpack.c.b16 %v916, %v915
        %v931 = vpack.c.b16 %v918, %v917
        %v932 = vpack.c.b16 %v920, %v919
        %v933 = vpack.c.b16 %v922, %v921
        %v934 = vpack.c.b16 %v924, %v923
        %v935 = vpack.c.b16 %v926, %v925
        %v936 = vpack.c.b16 %v928, %v927
        %945 = vmatprep.subr.bf16.mxu0 0
        %946 = vmatpush1.bf16.msra.mxu0 %v929
        %947 = vmatprep.subr.bf16.mxu0 0
        %948 = vmatpush1.bf16.msra.mxu0 %v930
        %949 = vmatprep.subr.bf16.mxu0 0
        %950 = vmatpush1.bf16.msra.mxu0 %v931
        %951 = vmatprep.subr.bf16.mxu0 0
        %952 = vmatpush1.bf16.msra.mxu0 %v932
        %953 = vmatprep.subr.bf16.mxu0 0
        %954 = vmatpush1.bf16.msra.mxu0 %v933
        %955 = vmatprep.subr.bf16.mxu0 0
        %956 = vmatpush1.bf16.msra.mxu0 %v934
        %957 = vmatprep.subr.bf16.mxu0 0
        %958 = vmatpush1.bf16.msra.mxu0 %v935
        %959 = vmatprep.subr.bf16.mxu0 0
        %960 = vmatpush1.bf16.msra.mxu0 %v936
        %961 = vmatprep.subr.bf16.mxu0 0
        %962 = vmatpush1.bf16.msra.mxu0 0
        %963 = vmatprep.subr.bf16.mxu0 0
        %964 = vmatpush1.bf16.msra.mxu0 0
        %965 = vmatprep.subr.bf16.mxu0 0
        %966 = vmatpush1.bf16.msra.mxu0 0
        %967 = vmatprep.subr.bf16.mxu0 0
        %968 = vmatpush1.bf16.msra.mxu0 0
        %969 = vmatprep.subr.bf16.mxu0 0
        %970 = vmatpush1.bf16.msra.mxu0 0
        %971 = vmatprep.subr.bf16.mxu0 0
        %972 = vmatpush1.bf16.msra.mxu0 0
        %973 = vmatprep.subr.bf16.mxu0 0
        %974 = vmatpush1.bf16.msra.mxu0 0
        %975 = vmatprep.subr.bf16.mxu0 0
        %976 = vmatpush1.bf16.msra.mxu0 0
        %977 = vmatprep.mubr.bf16.mxu0 0
        %978 = vmatmul.mubr.bf16.gmra.mrb[0].mxu0 %v885
        %v979 = vpop.f32.mrb[0].mxu0
        %v980 = vadd.f32 %v896, %v979
        %v981 = vpop.f32.mrb[0].mxu0
        %v982 = vpop.f32.mrb[0].mxu0
        %v983 = vadd.f32 %v896, %v982
        %v984 = vpop.f32.mrb[0].mxu0
        %985 = vmatprep.mubr.bf16.mxu0 0
        %986 = vmatmul.mubr.bf16.gmra.mrb[0].mxu0 %v886
        %v987 = vpop.f32.mrb[0].mxu0
        %v988 = vadd.f32 %v896, %v987
        %v989 = vpop.f32.mrb[0].mxu0
        %v990 = vpop.f32.mrb[0].mxu0
        %v991 = vadd.f32 %v896, %v990
        %v992 = vpop.f32.mrb[0].mxu0
        %993 = vmatprep.mubr.bf16.mxu0 0
        %994 = vmatmul.mubr.bf16.gmra.mrb[0].mxu0 %v887
        %v995 = vpop.f32.mrb[0].mxu0
        %v996 = vadd.f32 %v896, %v995
        %v997 = vpop.f32.mrb[0].mxu0
        %v998 = vpop.f32.mrb[0].mxu0
        %v999 = vadd.f32 %v896, %v998
        %v1000 = vpop.f32.mrb[0].mxu0
        %1001 = vmatprep.mubr.bf16.mxu0 0
        %1002 = vmatmul.mubr.bf16.gmra.mrb[0].mxu0 %v888
        %v1003 = vpop.f32.mrb[0].mxu0
        %v1004 = vadd.f32 %v896, %v1003
        %v1005 = vpop.f32.mrb[0].mxu0
        %v1006 = vpop.f32.mrb[0].mxu0
        %v1007 = vadd.f32 %v896, %v1006
        %v1008 = vpop.f32.mrb[0].mxu0
        %1009 = vmatprep.mubr.bf16.mxu0 0
        %1010 = vmatmul.mubr.bf16.gmra.mrb[0].mxu0 %v889
        %v1011 = vpop.f32.mrb[0].mxu0
        %v1012 = vadd.f32 %v896, %v1011
        %v1013 = vpop.f32.mrb[0].mxu0
        %v1014 = vpop.f32.mrb[0].mxu0
        %v1015 = vadd.f32 %v896, %v1014
        %v1016 = vpop.f32.mrb[0].mxu0
        %1017 = vmatprep.mubr.bf16.mxu0 0
        %1018 = vmatmul.mubr.bf16.gmra.mrb[0].mxu0 %v890
        %v1019 = vpop.f32.mrb[0].mxu0
        %v1020 = vadd.f32 %v896, %v1019
        %v1021 = vpop.f32.mrb[0].mxu0
        %v1022 = vpop.f32.mrb[0].mxu0
        %v1023 = vadd.f32 %v896, %v1022
        %v1024 = vpop.f32.mrb[0].mxu0
        %1025 = vmatprep.mubr.bf16.mxu0 0
        %1026 = vmatmul.mubr.bf16.gmra.mrb[0].mxu0 %v891
        %v1027 = vpop.f32.mrb[0].mxu0
        %v1028 = vadd.f32 %v896, %v1027
        %v1029 = vpop.f32.mrb[0].mxu0
        %v1030 = vpop.f32.mrb[0].mxu0
        %v1031 = vadd.f32 %v896, %v1030
        %v1032 = vpop.f32.mrb[0].mxu0
        %1033 = vmatprep.mubr.bf16.mxu0 0
        %1034 = vmatmul.mubr.bf16.gmra.mrb[0].mxu0 %v892
        %v1035 = vpop.f32.mrb[0].mxu0
        %v1036 = vadd.f32 %v896, %v1035
        %v1037 = vpop.f32.mrb[0].mxu0
        %v1038 = vpop.f32.mrb[0].mxu0
        %v1039 = vadd.f32 %v896, %v1038
        %v1040 = vpop.f32.mrb[0].mxu0
        %1041 = vdwg.mxu0
        %v1042 = vmul.f32 %v634, %v634
        %v1043 = vmul.f32 %v637, %v637
        %v1044 = vmul.f32 %v642, %v642
        %v1045 = vmul.f32 %v645, %v645
        %v1046 = vmul.f32 %v650, %v650
        %v1047 = vmul.f32 %v653, %v653
        %v1048 = vmul.f32 %v658, %v658
        %v1049 = vmul.f32 %v661, %v661
        %v1050 = vmul.f32 %v666, %v666
        %v1051 = vmul.f32 %v669, %v669
        %v1052 = vmul.f32 %v674, %v674
        %v1053 = vmul.f32 %v677, %v677
        %v1054 = vmul.f32 %v682, %v682
        %v1055 = vmul.f32 %v685, %v685
        %v1056 = vmul.f32 %v690, %v690
        %v1057 = vmul.f32 %v693, %v693
        %v1058 = vmul.f32 %v807, %v807
        %v1059 = vmul.f32 %v810, %v810
        %v1060 = vmul.f32 %v815, %v815
        %v1061 = vmul.f32 %v818, %v818
        %v1062 = vmul.f32 %v823, %v823
        %v1063 = vmul.f32 %v826, %v826
        %v1064 = vmul.f32 %v831, %v831
        %v1065 = vmul.f32 %v834, %v834
        %v1066 = vmul.f32 %v839, %v839
        %v1067 = vmul.f32 %v842, %v842
        %v1068 = vmul.f32 %v847, %v847
        %v1069 = vmul.f32 %v850, %v850
        %v1070 = vmul.f32 %v855, %v855
        %v1071 = vmul.f32 %v858, %v858
        %v1072 = vmul.f32 %v863, %v863
        %v1073 = vmul.f32 %v866, %v866
        %1074 = vmatprep.subr.mxu0 0.0
        %1075 = vmatpush1.msra.mxu0 %v491
        %1076 = vmatprep.subr.mxu0 0.0
        %1077 = vmatpush1.msra.mxu0 %v492
        %1078 = vmatprep.subr.mxu0 0.0
        %1079 = vmatpush1.msra.mxu0 %v493
        %1080 = vmatprep.subr.mxu0 0.0
        %1081 = vmatpush1.msra.mxu0 %v494
        %1082 = vmatprep.subr.mxu0 0.0
        %1083 = vmatpush1.msra.mxu0 %v495
        %1084 = vmatprep.subr.mxu0 0.0
        %1085 = vmatpush1.msra.mxu0 %v496
        %1086 = vmatprep.subr.mxu0 0.0
        %1087 = vmatpush1.msra.mxu0 %v497
        %1088 = vmatprep.subr.mxu0 0.0
        %1089 = vmatpush1.msra.mxu0 %v498
        %1090 = vmatprep.subr.mxu0 0.0
        %1091 = vmatpush1.msra.mxu0 %v499
        %1092 = vmatprep.subr.mxu0 0.0
        %1093 = vmatpush1.msra.mxu0 %v500
        %1094 = vmatprep.subr.mxu0 0.0
        %1095 = vmatpush1.msra.mxu0 %v501
        %1096 = vmatprep.subr.mxu0 0.0
        %1097 = vmatpush1.msra.mxu0 %v502
        %1098 = vmatprep.subr.mxu0 0.0
        %1099 = vmatpush1.msra.mxu0 %v503
        %1100 = vmatprep.subr.mxu0 0.0
        %1101 = vmatpush1.msra.mxu0 %v504
        %1102 = vmatprep.subr.mxu0 0.0
        %1103 = vmatpush1.msra.mxu0 %v505
        %1104 = vmatprep.subr.mxu0 0.0
        %1105 = vmatpush1.msra.mxu0 %v506
        %1106 = vmatprep.subr.mxu0 0.0
        %1107 = vmatpush1.msra.mxu0 0.0
        %1108 = vmatprep.subr.mxu0 0.0
        %1109 = vmatpush1.msra.mxu0 0.0
        %1110 = vmatprep.subr.mxu0 0.0
        %1111 = vmatpush1.msra.mxu0 0.0
        %1112 = vmatprep.subr.mxu0 0.0
        %1113 = vmatpush1.msra.mxu0 0.0
        %1114 = vmatprep.subr.mxu0 0.0
        %1115 = vmatpush1.msra.mxu0 0.0
        %1116 = vmatprep.subr.mxu0 0.0
        %1117 = vmatpush1.msra.mxu0 0.0
        %1118 = vmatprep.subr.mxu0 0.0
        %1119 = vmatpush1.msra.mxu0 0.0
        %1120 = vmatprep.subr.mxu0 0.0
        %1121 = vmatpush1.msra.mxu0 0.0
        %1122 = vmatprep.subr.mxu0 0.0
        %1123 = vmatpush1.msra.mxu0 0.0
        %1124 = vmatprep.subr.mxu0 0.0
        %1125 = vmatpush1.msra.mxu0 0.0
        %1126 = vmatprep.subr.mxu0 0.0
        %1127 = vmatpush1.msra.mxu0 0.0
        %1128 = vmatprep.subr.mxu0 0.0
        %1129 = vmatpush1.msra.mxu0 0.0
        %1130 = vmatprep.subr.mxu0 0.0
        %1131 = vmatpush1.msra.mxu0 0.0
        %1132 = vmatprep.subr.mxu0 0.0
        %1133 = vmatpush1.msra.mxu0 0.0
        %1134 = vmatprep.subr.mxu0 0.0
        %1135 = vmatpush1.msra.mxu0 0.0
        %1136 = vmatprep.subr.mxu0 0.0
        %1137 = vmatpush1.msra.mxu0 0.0
        %1138 = vmatprep.mubr.f32.mxu0 0.0
        %1139 = vmatmul.mubr.f32.gmra.mrb[0].mxu0 %v1042
        %v1140 = vpop.f32.mrb[0].mxu0
        %v1141 = vadd.f32 0.0, %v1140
        %v1142 = vpop.f32.mrb[0].mxu0
        %1143 = vmatprep.mubr.f32.mxu0 0.0
        %1144 = vmatmul.mubr.f32.gmra.mrb[0].mxu0 %v1043
        %v1145 = vpop.f32.mrb[0].mxu0
        %v1146 = vadd.f32 0.0, %v1145
        %v1147 = vpop.f32.mrb[0].mxu0
        %1148 = vmatprep.mubr.f32.mxu0 0.0
        %1149 = vmatmul.mubr.f32.gmra.mrb[0].mxu0 %v1044
        %v1150 = vpop.f32.mrb[0].mxu0
        %v1151 = vadd.f32 0.0, %v1150
        %v1152 = vpop.f32.mrb[0].mxu0
        %1153 = vmatprep.mubr.f32.mxu0 0.0
        %1154 = vmatmul.mubr.f32.gmra.mrb[0].mxu0 %v1045
        %v1155 = vpop.f32.mrb[0].mxu0
        %v1156 = vadd.f32 0.0, %v1155
        %v1157 = vpop.f32.mrb[0].mxu0
        %1158 = vmatprep.mubr.f32.mxu0 0.0
        %1159 = vmatmul.mubr.f32.gmra.mrb[0].mxu0 %v1046
        %v1160 = vpop.f32.mrb[0].mxu0
        %v1161 = vadd.f32 0.0, %v1160
        %v1162 = vpop.f32.mrb[0].mxu0
        %1163 = vmatprep.mubr.f32.mxu0 0.0
        %1164 = vmatmul.mubr.f32.gmra.mrb[0].mxu0 %v1047
        %v1165 = vpop.f32.mrb[0].mxu0
        %v1166 = vadd.f32 0.0, %v1165
        %v1167 = vpop.f32.mrb[0].mxu0
        %1168 = vmatprep.mubr.f32.mxu0 0.0
        %1169 = vmatmul.mubr.f32.gmra.mrb[0].mxu0 %v1048
        %v1170 = vpop.f32.mrb[0].mxu0
        %v1171 = vadd.f32 0.0, %v1170
        %v1172 = vpop.f32.mrb[0].mxu0
        %1173 = vmatprep.mubr.f32.mxu0 0.0
        %1174 = vmatmul.mubr.f32.gmra.mrb[0].mxu0 %v1049
        %v1175 = vpop.f32.mrb[0].mxu0
        %v1176 = vadd.f32 0.0, %v1175
        %v1177 = vpop.f32.mrb[0].mxu0
        %1178 = vmatprep.mubr.f32.mxu0 0.0
        %1179 = vmatmul.mubr.f32.gmra.mrb[0].mxu0 %v1050
        %v1180 = vpop.f32.mrb[0].mxu0
        %v1181 = vadd.f32 0.0, %v1180
        %v1182 = vpop.f32.mrb[0].mxu0
        %1183 = vmatprep.mubr.f32.mxu0 0.0
        %1184 = vmatmul.mubr.f32.gmra.mrb[0].mxu0 %v1051
        %v1185 = vpop.f32.mrb[0].mxu0
        %v1186 = vadd.f32 0.0, %v1185
        %v1187 = vpop.f32.mrb[0].mxu0
        %1188 = vmatprep.mubr.f32.mxu0 0.0
        %1189 = vmatmul.mubr.f32.gmra.mrb[0].mxu0 %v1052
        %v1190 = vpop.f32.mrb[0].mxu0
        %v1191 = vadd.f32 0.0, %v1190
        %v1192 = vpop.f32.mrb[0].mxu0
        %1193 = vmatprep.mubr.f32.mxu0 0.0
        %1194 = vmatmul.mubr.f32.gmra.mrb[0].mxu0 %v1053
        %v1195 = vpop.f32.mrb[0].mxu0
        %v1196 = vadd.f32 0.0, %v1195
        %v1197 = vpop.f32.mrb[0].mxu0
        %1198 = vmatprep.mubr.f32.mxu0 0.0
        %1199 = vmatmul.mubr.f32.gmra.mrb[0].mxu0 %v1054
        %v1200 = vpop.f32.mrb[0].mxu0
        %v1201 = vadd.f32 0.0, %v1200
        %v1202 = vpop.f32.mrb[0].mxu0
        %1203 = vmatprep.mubr.f32.mxu0 0.0
        %1204 = vmatmul.mubr.f32.gmra.mrb[0].mxu0 %v1055
        %v1205 = vpop.f32.mrb[0].mxu0
        %v1206 = vadd.f32 0.0, %v1205
        %v1207 = vpop.f32.mrb[0].mxu0
        %1208 = vmatprep.mubr.f32.mxu0 0.0
        %1209 = vmatmul.mubr.f32.gmra.mrb[0].mxu0 %v1056
        %v1210 = vpop.f32.mrb[0].mxu0
        %v1211 = vadd.f32 0.0, %v1210
        %v1212 = vpop.f32.mrb[0].mxu0
        %1213 = vmatprep.mubr.f32.mxu0 0.0
        %1214 = vmatmul.mubr.f32.gmra.mrb[0].mxu0 %v1057
        %v1215 = vpop.f32.mrb[0].mxu0
        %v1216 = vadd.f32 0.0, %v1215
        %v1217 = vpop.f32.mrb[0].mxu0
        %1218 = vmatprep.mubr.f32.mxu0 0.0
        %1219 = vmatmul.mubr.f32.gmra.mrb[0].mxu0 %v1058
        %v1220 = vpop.f32.mrb[0].mxu0
        %v1221 = vadd.f32 0.0, %v1220
        %v1222 = vpop.f32.mrb[0].mxu0
        %1223 = vmatprep.mubr.f32.mxu0 0.0
        %1224 = vmatmul.mubr.f32.gmra.mrb[0].mxu0 %v1059
        %v1225 = vpop.f32.mrb[0].mxu0
        %v1226 = vadd.f32 0.0, %v1225
        %v1227 = vpop.f32.mrb[0].mxu0
        %1228 = vmatprep.mubr.f32.mxu0 0.0
        %1229 = vmatmul.mubr.f32.gmra.mrb[0].mxu0 %v1060
        %v1230 = vpop.f32.mrb[0].mxu0
        %v1231 = vadd.f32 0.0, %v1230
        %v1232 = vpop.f32.mrb[0].mxu0
        %1233 = vmatprep.mubr.f32.mxu0 0.0
        %1234 = vmatmul.mubr.f32.gmra.mrb[0].mxu0 %v1061
        %v1235 = vpop.f32.mrb[0].mxu0
        %v1236 = vadd.f32 0.0, %v1235
        %v1237 = vpop.f32.mrb[0].mxu0
        %1238 = vmatprep.mubr.f32.mxu0 0.0
        %1239 = vmatmul.mubr.f32.gmra.mrb[0].mxu0 %v1062
        %v1240 = vpop.f32.mrb[0].mxu0
        %v1241 = vadd.f32 0.0, %v1240
        %v1242 = vpop.f32.mrb[0].mxu0
        %1243 = vmatprep.mubr.f32.mxu0 0.0
        %1244 = vmatmul.mubr.f32.gmra.mrb[0].mxu0 %v1063
        %v1245 = vpop.f32.mrb[0].mxu0
        %v1246 = vadd.f32 0.0, %v1245
        %v1247 = vpop.f32.mrb[0].mxu0
        %1248 = vmatprep.mubr.f32.mxu0 0.0
        %1249 = vmatmul.mubr.f32.gmra.mrb[0].mxu0 %v1064
        %v1250 = vpop.f32.mrb[0].mxu0
        %v1251 = vadd.f32 0.0, %v1250
        %v1252 = vpop.f32.mrb[0].mxu0
        %1253 = vmatprep.mubr.f32.mxu0 0.0
        %1254 = vmatmul.mubr.f32.gmra.mrb[0].mxu0 %v1065
        %v1255 = vpop.f32.mrb[0].mxu0
        %v1256 = vadd.f32 0.0, %v1255
        %v1257 = vpop.f32.mrb[0].mxu0
        %1258 = vmatprep.mubr.f32.mxu0 0.0
        %1259 = vmatmul.mubr.f32.gmra.mrb[0].mxu0 %v1066
        %v1260 = vpop.f32.mrb[0].mxu0
        %v1261 = vadd.f32 0.0, %v1260
        %v1262 = vpop.f32.mrb[0].mxu0
        %1263 = vmatprep.mubr.f32.mxu0 0.0
        %1264 = vmatmul.mubr.f32.gmra.mrb[0].mxu0 %v1067
        %v1265 = vpop.f32.mrb[0].mxu0
        %v1266 = vadd.f32 0.0, %v1265
        %v1267 = vpop.f32.mrb[0].mxu0
        %1268 = vmatprep.mubr.f32.mxu0 0.0
        %1269 = vmatmul.mubr.f32.gmra.mrb[0].mxu0 %v1068
        %v1270 = vpop.f32.mrb[0].mxu0
        %v1271 = vadd.f32 0.0, %v1270
        %v1272 = vpop.f32.mrb[0].mxu0
        %1273 = vmatprep.mubr.f32.mxu0 0.0
        %1274 = vmatmul.mubr.f32.gmra.mrb[0].mxu0 %v1069
        %v1275 = vpop.f32.mrb[0].mxu0
        %v1276 = vadd.f32 0.0, %v1275
        %v1277 = vpop.f32.mrb[0].mxu0
        %1278 = vmatprep.mubr.f32.mxu0 0.0
        %1279 = vmatmul.mubr.f32.gmra.mrb[0].mxu0 %v1070
        %v1280 = vpop.f32.mrb[0].mxu0
        %v1281 = vadd.f32 0.0, %v1280
        %v1282 = vpop.f32.mrb[0].mxu0
        %1283 = vmatprep.mubr.f32.mxu0 0.0
        %1284 = vmatmul.mubr.f32.gmra.mrb[0].mxu0 %v1071
        %v1285 = vpop.f32.mrb[0].mxu0
        %v1286 = vadd.f32 0.0, %v1285
        %v1287 = vpop.f32.mrb[0].mxu0
        %1288 = vmatprep.mubr.f32.mxu0 0.0
        %1289 = vmatmul.mubr.f32.gmra.mrb[0].mxu0 %v1072
        %v1290 = vpop.f32.mrb[0].mxu0
        %v1291 = vadd.f32 0.0, %v1290
        %v1292 = vpop.f32.mrb[0].mxu0
        %1293 = vmatprep.mubr.f32.mxu0 0.0
        %1294 = vmatmul.mubr.f32.gmra.mrb[0].mxu0 %v1073
        %v1295 = vpop.f32.mrb[0].mxu0
        %v1296 = vadd.f32 0.0, %v1295
        %v1297 = vpop.f32.mrb[0].mxu0
        %1298 = vdwg.mxu0
        %1299 = vmatprep.subr.mxu0 0.0
        %1300 = vmatpush1.msra.mxu0 %v507
        %1301 = vmatprep.subr.mxu0 0.0
        %1302 = vmatpush1.msra.mxu0 %v508
        %1303 = vmatprep.subr.mxu0 0.0
        %1304 = vmatpush1.msra.mxu0 %v509
        %1305 = vmatprep.subr.mxu0 0.0
        %1306 = vmatpush1.msra.mxu0 %v510
        %1307 = vmatprep.subr.mxu0 0.0
        %1308 = vmatpush1.msra.mxu0 %v511
        %1309 = vmatprep.subr.mxu0 0.0
        %1310 = vmatpush1.msra.mxu0 %v512
        %1311 = vmatprep.subr.mxu0 0.0
        %1312 = vmatpush1.msra.mxu0 %v513
        %1313 = vmatprep.subr.mxu0 0.0
        %1314 = vmatpush1.msra.mxu0 %v514
        %1315 = vmatprep.subr.mxu0 0.0
        %1316 = vmatpush1.msra.mxu0 %v515
        %1317 = vmatprep.subr.mxu0 0.0
        %1318 = vmatpush1.msra.mxu0 %v516
        %1319 = vmatprep.subr.mxu0 0.0
        %1320 = vmatpush1.msra.mxu0 %v517
        %1321 = vmatprep.subr.mxu0 0.0
        %1322 = vmatpush1.msra.mxu0 %v518
        %1323 = vmatprep.subr.mxu0 0.0
        %1324 = vmatpush1.msra.mxu0 %v519
        %1325 = vmatprep.subr.mxu0 0.0
        %1326 = vmatpush1.msra.mxu0 %v520
        %1327 = vmatprep.subr.mxu0 0.0
        %1328 = vmatpush1.msra.mxu0 %v521
        %1329 = vmatprep.subr.mxu0 0.0
        %1330 = vmatpush1.msra.mxu0 %v522
        %1331 = vmatprep.subr.mxu0 0.0
        %1332 = vmatpush1.msra.mxu0 0.0
        %1333 = vmatprep.subr.mxu0 0.0
        %1334 = vmatpush1.msra.mxu0 0.0
        %1335 = vmatprep.subr.mxu0 0.0
        %1336 = vmatpush1.msra.mxu0 0.0
        %1337 = vmatprep.subr.mxu0 0.0
        %1338 = vmatpush1.msra.mxu0 0.0
        %1339 = vmatprep.subr.mxu0 0.0
        %1340 = vmatpush1.msra.mxu0 0.0
        %1341 = vmatprep.subr.mxu0 0.0
        %1342 = vmatpush1.msra.mxu0 0.0
        %1343 = vmatprep.subr.mxu0 0.0
        %1344 = vmatpush1.msra.mxu0 0.0
        %1345 = vmatprep.subr.mxu0 0.0
        %1346 = vmatpush1.msra.mxu0 0.0
        %1347 = vmatprep.subr.mxu0 0.0
        %1348 = vmatpush1.msra.mxu0 0.0
        %1349 = vmatprep.subr.mxu0 0.0
        %1350 = vmatpush1.msra.mxu0 0.0
        %1351 = vmatprep.subr.mxu0 0.0
        %1352 = vmatpush1.msra.mxu0 0.0
        %1353 = vmatprep.subr.mxu0 0.0
        %1354 = vmatpush1.msra.mxu0 0.0
        %1355 = vmatprep.subr.mxu0 0.0
        %1356 = vmatpush1.msra.mxu0 0.0
        %1357 = vmatprep.subr.mxu0 0.0
        %1358 = vmatpush1.msra.mxu0 0.0
        %1359 = vmatprep.subr.mxu0 0.0
        %1360 = vmatpush1.msra.mxu0 0.0
        %1361 = vmatprep.subr.mxu0 0.0
        %1362 = vmatpush1.msra.mxu0 0.0
        %1363 = vmatprep.mubr.f32.mxu0 0.0
        %1364 = vmatmul.mubr.f32.gmra.mrb[0].mxu0 %v1141
        %v1365 = vpop.f32.mrb[0].mxu0
        %v1366 = vadd.f32 1e-12, %v1365
        %v1367 = vpop.f32.mrb[0].mxu0
        %1368 = vmatprep.mubr.f32.mxu0 0.0
        %1369 = vmatmul.mubr.f32.gmra.mrb[0].mxu0 %v1146
        %v1370 = vpop.f32.mrb[0].mxu0
        %v1371 = vadd.f32 1e-12, %v1370
        %v1372 = vpop.f32.mrb[0].mxu0
        %1373 = vmatprep.mubr.f32.mxu0 0.0
        %1374 = vmatmul.mubr.f32.gmra.mrb[0].mxu0 %v1151
        %v1375 = vpop.f32.mrb[0].mxu0
        %v1376 = vadd.f32 1e-12, %v1375
        %v1377 = vpop.f32.mrb[0].mxu0
        %1378 = vmatprep.mubr.f32.mxu0 0.0
        %1379 = vmatmul.mubr.f32.gmra.mrb[0].mxu0 %v1156
        %v1380 = vpop.f32.mrb[0].mxu0
        %v1381 = vadd.f32 1e-12, %v1380
        %v1382 = vpop.f32.mrb[0].mxu0
        %1383 = vmatprep.mubr.f32.mxu0 0.0
        %1384 = vmatmul.mubr.f32.gmra.mrb[0].mxu0 %v1161
        %v1385 = vpop.f32.mrb[0].mxu0
        %v1386 = vadd.f32 1e-12, %v1385
        %v1387 = vpop.f32.mrb[0].mxu0
        %1388 = vmatprep.mubr.f32.mxu0 0.0
        %1389 = vmatmul.mubr.f32.gmra.mrb[0].mxu0 %v1166
        %v1390 = vpop.f32.mrb[0].mxu0
        %v1391 = vadd.f32 1e-12, %v1390
        %v1392 = vpop.f32.mrb[0].mxu0
        %1393 = vmatprep.mubr.f32.mxu0 0.0
        %1394 = vmatmul.mubr.f32.gmra.mrb[0].mxu0 %v1171
        %v1395 = vpop.f32.mrb[0].mxu0
        %v1396 = vadd.f32 1e-12, %v1395
        %v1397 = vpop.f32.mrb[0].mxu0
        %1398 = vmatprep.mubr.f32.mxu0 0.0
        %1399 = vmatmul.mubr.f32.gmra.mrb[0].mxu0 %v1176
        %v1400 = vpop.f32.mrb[0].mxu0
        %v1401 = vadd.f32 1e-12, %v1400
        %v1402 = vpop.f32.mrb[0].mxu0
        %1403 = vmatprep.mubr.f32.mxu0 0.0
        %1404 = vmatmul.mubr.f32.gmra.mrb[0].mxu0 %v1181
        %v1405 = vpop.f32.mrb[0].mxu0
        %v1406 = vadd.f32 1e-12, %v1405
        %v1407 = vpop.f32.mrb[0].mxu0
        %1408 = vmatprep.mubr.f32.mxu0 0.0
        %1409 = vmatmul.mubr.f32.gmra.mrb[0].mxu0 %v1186
        %v1410 = vpop.f32.mrb[0].mxu0
        %v1411 = vadd.f32 1e-12, %v1410
        %v1412 = vpop.f32.mrb[0].mxu0
        %1413 = vmatprep.mubr.f32.mxu0 0.0
        %1414 = vmatmul.mubr.f32.gmra.mrb[0].mxu0 %v1191
        %v1415 = vpop.f32.mrb[0].mxu0
        %v1416 = vadd.f32 1e-12, %v1415
        %v1417 = vpop.f32.mrb[0].mxu0
        %1418 = vmatprep.mubr.f32.mxu0 0.0
        %1419 = vmatmul.mubr.f32.gmra.mrb[0].mxu0 %v1196
        %v1420 = vpop.f32.mrb[0].mxu0
        %v1421 = vadd.f32 1e-12, %v1420
        %v1422 = vpop.f32.mrb[0].mxu0
        %1423 = vmatprep.mubr.f32.mxu0 0.0
        %1424 = vmatmul.mubr.f32.gmra.mrb[0].mxu0 %v1201
        %v1425 = vpop.f32.mrb[0].mxu0
        %v1426 = vadd.f32 1e-12, %v1425
        %v1427 = vpop.f32.mrb[0].mxu0
        %1428 = vmatprep.mubr.f32.mxu0 0.0
        %1429 = vmatmul.mubr.f32.gmra.mrb[0].mxu0 %v1206
        %v1430 = vpop.f32.mrb[0].mxu0
        %v1431 = vadd.f32 1e-12, %v1430
        %v1432 = vpop.f32.mrb[0].mxu0
        %1433 = vmatprep.mubr.f32.mxu0 0.0
        %1434 = vmatmul.mubr.f32.gmra.mrb[0].mxu0 %v1211
        %v1435 = vpop.f32.mrb[0].mxu0
        %v1436 = vadd.f32 1e-12, %v1435
        %v1437 = vpop.f32.mrb[0].mxu0
        %1438 = vmatprep.mubr.f32.mxu0 0.0
        %1439 = vmatmul.mubr.f32.gmra.mrb[0].mxu0 %v1216
        %v1440 = vpop.f32.mrb[0].mxu0
        %v1441 = vadd.f32 1e-12, %v1440
        %v1442 = vpop.f32.mrb[0].mxu0
        %1443 = vmatprep.mubr.f32.mxu0 0.0
        %1444 = vmatmul.mubr.f32.gmra.mrb[0].mxu0 %v1221
        %v1445 = vpop.f32.mrb[0].mxu0
        %v1446 = vadd.f32 1e-12, %v1445
        %v1447 = vpop.f32.mrb[0].mxu0
        %1448 = vmatprep.mubr.f32.mxu0 0.0
        %1449 = vmatmul.mubr.f32.gmra.mrb[0].mxu0 %v1226
        %v1450 = vpop.f32.mrb[0].mxu0
        %v1451 = vadd.f32 1e-12, %v1450
        %v1452 = vpop.f32.mrb[0].mxu0
        %1453 = vmatprep.mubr.f32.mxu0 0.0
        %1454 = vmatmul.mubr.f32.gmra.mrb[0].mxu0 %v1231
        %v1455 = vpop.f32.mrb[0].mxu0
        %v1456 = vadd.f32 1e-12, %v1455
        %v1457 = vpop.f32.mrb[0].mxu0
        %1458 = vmatprep.mubr.f32.mxu0 0.0
        %1459 = vmatmul.mubr.f32.gmra.mrb[0].mxu0 %v1236
        %v1460 = vpop.f32.mrb[0].mxu0
        %v1461 = vadd.f32 1e-12, %v1460
        %v1462 = vpop.f32.mrb[0].mxu0
        %1463 = vmatprep.mubr.f32.mxu0 0.0
        %1464 = vmatmul.mubr.f32.gmra.mrb[0].mxu0 %v1241
        %v1465 = vpop.f32.mrb[0].mxu0
        %v1466 = vadd.f32 1e-12, %v1465
        %v1467 = vpop.f32.mrb[0].mxu0
        %1468 = vmatprep.mubr.f32.mxu0 0.0
        %1469 = vmatmul.mubr.f32.gmra.mrb[0].mxu0 %v1246
        %v1470 = vpop.f32.mrb[0].mxu0
        %v1471 = vadd.f32 1e-12, %v1470
        %v1472 = vpop.f32.mrb[0].mxu0
        %1473 = vmatprep.mubr.f32.mxu0 0.0
        %1474 = vmatmul.mubr.f32.gmra.mrb[0].mxu0 %v1251
        %v1475 = vpop.f32.mrb[0].mxu0
        %v1476 = vadd.f32 1e-12, %v1475
        %v1477 = vpop.f32.mrb[0].mxu0
        %1478 = vmatprep.mubr.f32.mxu0 0.0
        %1479 = vmatmul.mubr.f32.gmra.mrb[0].mxu0 %v1256
        %v1480 = vpop.f32.mrb[0].mxu0
        %v1481 = vadd.f32 1e-12, %v1480
        %v1482 = vpop.f32.mrb[0].mxu0
        %1483 = vmatprep.mubr.f32.mxu0 0.0
        %1484 = vmatmul.mubr.f32.gmra.mrb[0].mxu0 %v1261
        %v1485 = vpop.f32.mrb[0].mxu0
        %v1486 = vadd.f32 1e-12, %v1485
        %v1487 = vpop.f32.mrb[0].mxu0
        %1488 = vmatprep.mubr.f32.mxu0 0.0
        %1489 = vmatmul.mubr.f32.gmra.mrb[0].mxu0 %v1266
        %v1490 = vpop.f32.mrb[0].mxu0
        %v1491 = vadd.f32 1e-12, %v1490
        %v1492 = vpop.f32.mrb[0].mxu0
        %1493 = vmatprep.mubr.f32.mxu0 0.0
        %1494 = vmatmul.mubr.f32.gmra.mrb[0].mxu0 %v1271
        %v1495 = vpop.f32.mrb[0].mxu0
        %v1496 = vadd.f32 1e-12, %v1495
        %v1497 = vpop.f32.mrb[0].mxu0
        %1498 = vmatprep.mubr.f32.mxu0 0.0
        %1499 = vmatmul.mubr.f32.gmra.mrb[0].mxu0 %v1276
        %v1500 = vpop.f32.mrb[0].mxu0
        %v1501 = vadd.f32 1e-12, %v1500
        %v1502 = vpop.f32.mrb[0].mxu0
        %1503 = vmatprep.mubr.f32.mxu0 0.0
        %1504 = vmatmul.mubr.f32.gmra.mrb[0].mxu0 %v1281
        %v1505 = vpop.f32.mrb[0].mxu0
        %v1506 = vadd.f32 1e-12, %v1505
        %v1507 = vpop.f32.mrb[0].mxu0
        %1508 = vmatprep.mubr.f32.mxu0 0.0
        %1509 = vmatmul.mubr.f32.gmra.mrb[0].mxu0 %v1286
        %v1510 = vpop.f32.mrb[0].mxu0
        %v1511 = vadd.f32 1e-12, %v1510
        %v1512 = vpop.f32.mrb[0].mxu0
        %1513 = vmatprep.mubr.f32.mxu0 0.0
        %1514 = vmatmul.mubr.f32.gmra.mrb[0].mxu0 %v1291
        %v1515 = vpop.f32.mrb[0].mxu0
        %v1516 = vadd.f32 1e-12, %v1515
        %v1517 = vpop.f32.mrb[0].mxu0
        %1518 = vmatprep.mubr.f32.mxu0 0.0
        %1519 = vmatmul.mubr.f32.gmra.mrb[0].mxu0 %v1296
        %v1520 = vpop.f32.mrb[0].mxu0
        %v1521 = vadd.f32 1e-12, %v1520
        %v1522 = vpop.f32.mrb[0].mxu0
        %1523 = vdwg.mxu0
        %v1524 = vrsqrt.pop %v1366
        %v1525 = vrsqrt.pop %v1371
        %v1526 = vrsqrt.pop %v1376
        %v1527 = vrsqrt.pop %v1381
        %v1528 = vrsqrt.pop %v1386
        %v1529 = vrsqrt.pop %v1391
        %v1530 = vrsqrt.pop %v1396
        %v1531 = vrsqrt.pop %v1401
        %v1532 = vrsqrt.pop %v1406
        %v1533 = vrsqrt.pop %v1411
        %v1534 = vrsqrt.pop %v1416
        %v1535 = vrsqrt.pop %v1421
        %v1536 = vrsqrt.pop %v1426
        %v1537 = vrsqrt.pop %v1431
        %v1538 = vrsqrt.pop %v1436
        %v1539 = vrsqrt.pop %v1441
        %v1540 = vrsqrt.pop %v1446
        %v1541 = vrsqrt.pop %v1451
        %v1542 = vrsqrt.pop %v1456
        %v1543 = vrsqrt.pop %v1461
        %v1544 = vrsqrt.pop %v1466
        %v1545 = vrsqrt.pop %v1471
        %v1546 = vrsqrt.pop %v1476
        %v1547 = vrsqrt.pop %v1481
        %v1548 = vrsqrt.pop %v1486
        %v1549 = vrsqrt.pop %v1491
        %v1550 = vrsqrt.pop %v1496
        %v1551 = vrsqrt.pop %v1501
        %v1552 = vrsqrt.pop %v1506
        %v1553 = vrsqrt.pop %v1511
        %v1554 = vrsqrt.pop %v1516
        %v1555 = vrsqrt.pop %v1521
        %v1556 = vmul.f32 %v634, %v1524
        %v1557 = vmul.f32 %v637, %v1525
        %v1558 = vmul.f32 %v642, %v1526
        %v1559 = vmul.f32 %v645, %v1527
        %v1560 = vmul.f32 %v650, %v1528
        %v1561 = vmul.f32 %v653, %v1529
        %v1562 = vmul.f32 %v658, %v1530
        %v1563 = vmul.f32 %v661, %v1531
        %v1564 = vmul.f32 %v666, %v1532
        %v1565 = vmul.f32 %v669, %v1533
        %v1566 = vmul.f32 %v674, %v1534
        %v1567 = vmul.f32 %v677, %v1535
        %v1568 = vmul.f32 %v682, %v1536
        %v1569 = vmul.f32 %v685, %v1537
        %v1570 = vmul.f32 %v690, %v1538
        %v1571 = vmul.f32 %v693, %v1539
        %v1572 = vmul.f32 %v807, %v1540
        %v1573 = vmul.f32 %v810, %v1541
        %v1574 = vmul.f32 %v815, %v1542
        %v1575 = vmul.f32 %v818, %v1543
        %v1576 = vmul.f32 %v823, %v1544
        %v1577 = vmul.f32 %v826, %v1545
        %v1578 = vmul.f32 %v831, %v1546
        %v1579 = vmul.f32 %v834, %v1547
        %v1580 = vmul.f32 %v839, %v1548
        %v1581 = vmul.f32 %v842, %v1549
        %v1582 = vmul.f32 %v847, %v1550
        %v1583 = vmul.f32 %v850, %v1551
        %v1584 = vmul.f32 %v855, %v1552
        %v1585 = vmul.f32 %v858, %v1553
        %v1586 = vmul.f32 %v863, %v1554
        %v1587 = vmul.f32 %v866, %v1555
        %v1588 = vpack.c.bf16 %v492, %v491
        %v1589 = vpack.c.bf16 %v494, %v493
        %v1590 = vpack.c.bf16 %v496, %v495
        %v1591 = vpack.c.bf16 %v498, %v497
        %v1592 = vpack.c.bf16 %v500, %v499
        %v1593 = vpack.c.bf16 %v502, %v501
        %v1594 = vpack.c.bf16 %v504, %v503
        %v1595 = vpack.c.bf16 %v506, %v505
        %v1596 = vpack.c.bf16 %v508, %v507
        %v1597 = vpack.c.bf16 %v510, %v509
        %v1598 = vpack.c.bf16 %v512, %v511
        %v1599 = vpack.c.bf16 %v514, %v513
        %v1600 = vpack.c.bf16 %v516, %v515
        %v1601 = vpack.c.bf16 %v518, %v517
        %v1602 = vpack.c.bf16 %v520, %v519
        %v1603 = vpack.c.bf16 %v522, %v521
        %v1604 = vmul.f32 %v1556, %v1572
        %v1605 = vmul.f32 %v1557, %v1573
        %v1606 = vmul.f32 %v1558, %v1574
        %v1607 = vmul.f32 %v1559, %v1575
        %v1608 = vmul.f32 %v1560, %v1576
        %v1609 = vmul.f32 %v1561, %v1577
        %v1610 = vmul.f32 %v1562, %v1578
        %v1611 = vmul.f32 %v1563, %v1579
        %v1612 = vmul.f32 %v1564, %v1580
        %v1613 = vmul.f32 %v1565, %v1581
        %v1614 = vmul.f32 %v1566, %v1582
        %v1615 = vmul.f32 %v1567, %v1583
        %v1616 = vmul.f32 %v1568, %v1584
        %v1617 = vmul.f32 %v1569, %v1585
        %v1618 = vmul.f32 %v1570, %v1586
        %v1619 = vmul.f32 %v1571, %v1587
        %v1620 = vpack.c.bf16 %v1605, %v1604
        %v1621 = vpack.c.bf16 %v1607, %v1606
        %v1622 = vpack.c.bf16 %v1609, %v1608
        %v1623 = vpack.c.bf16 %v1611, %v1610
        %v1624 = vpack.c.bf16 %v1613, %v1612
        %v1625 = vpack.c.bf16 %v1615, %v1614
        %v1626 = vpack.c.bf16 %v1617, %v1616
        %v1627 = vpack.c.bf16 %v1619, %v1618
        %1628 = vrot.lane.b32.xlu0 %v1572, 32
        %v1629 = vpop.permute.xlu0 %1628
        %1630 = vrot.lane.b32.xlu0 %v1573, 32
        %v1631 = vpop.permute.xlu0 %1630
        %1632 = vrot.lane.b32.xlu0 %v1574, 32
        %v1633 = vpop.permute.xlu0 %1632
        %1634 = vrot.lane.b32.xlu0 %v1575, 32
        %v1635 = vpop.permute.xlu0 %1634
        %1636 = vrot.lane.b32.xlu0 %v1576, 32
        %v1637 = vpop.permute.xlu0 %1636
        %1638 = vrot.lane.b32.xlu0 %v1577, 32
        %v1639 = vpop.permute.xlu0 %1638
        %1640 = vrot.lane.b32.xlu0 %v1578, 32
        %v1641 = vpop.permute.xlu0 %1640
        %1642 = vrot.lane.b32.xlu0 %v1579, 32
        %v1643 = vpop.permute.xlu0 %1642
        %1644 = vrot.lane.b32.xlu0 %v1580, 32
        %v1645 = vpop.permute.xlu0 %1644
        %1646 = vrot.lane.b32.xlu0 %v1581, 32
        %v1647 = vpop.permute.xlu0 %1646
        %1648 = vrot.lane.b32.xlu0 %v1582, 32
        %v1649 = vpop.permute.xlu0 %1648
        %1650 = vrot.lane.b32.xlu0 %v1583, 32
        %v1651 = vpop.permute.xlu0 %1650
        %1652 = vrot.lane.b32.xlu0 %v1584, 32
        %v1653 = vpop.permute.xlu0 %1652
        %1654 = vrot.lane.b32.xlu0 %v1585, 32
        %v1655 = vpop.permute.xlu0 %1654
        %1656 = vrot.lane.b32.xlu0 %v1586, 32
        %v1657 = vpop.permute.xlu0 %1656
        %1658 = vrot.lane.b32.xlu0 %v1587, 32
        %v1659 = vpop.permute.xlu0 %1658
        %v1660 = vmul.f32 %v1556, %v1629
        %v1661 = vmul.f32 %v1557, %v1631
        %v1662 = vmul.f32 %v1558, %v1633
        %v1663 = vmul.f32 %v1559, %v1635
        %v1664 = vmul.f32 %v1560, %v1637
        %v1665 = vmul.f32 %v1561, %v1639
        %v1666 = vmul.f32 %v1562, %v1641
        %v1667 = vmul.f32 %v1563, %v1643
        %v1668 = vmul.f32 %v1564, %v1645
        %v1669 = vmul.f32 %v1565, %v1647
        %v1670 = vmul.f32 %v1566, %v1649
        %v1671 = vmul.f32 %v1567, %v1651
        %v1672 = vmul.f32 %v1568, %v1653
        %v1673 = vmul.f32 %v1569, %v1655
        %v1674 = vmul.f32 %v1570, %v1657
        %v1675 = vmul.f32 %v1571, %v1659
        %v1676 = vpack.c.bf16 %v1661, %v1660
        %v1677 = vpack.c.bf16 %v1663, %v1662
        %v1678 = vpack.c.bf16 %v1665, %v1664
        %v1679 = vpack.c.bf16 %v1667, %v1666
        %v1680 = vpack.c.bf16 %v1669, %v1668
        %v1681 = vpack.c.bf16 %v1671, %v1670
        %v1682 = vpack.c.bf16 %v1673, %v1672
        %v1683 = vpack.c.bf16 %v1675, %v1674
        %1684 = vrot.lane.b32.xlu0 %v1572, 64
        %v1685 = vpop.permute.xlu0 %1684
        %1686 = vrot.lane.b32.xlu0 %v1573, 64
        %v1687 = vpop.permute.xlu0 %1686
        %1688 = vrot.lane.b32.xlu0 %v1574, 64
        %v1689 = vpop.permute.xlu0 %1688
        %1690 = vrot.lane.b32.xlu0 %v1575, 64
        %v1691 = vpop.permute.xlu0 %1690
        %1692 = vrot.lane.b32.xlu0 %v1576, 64
        %v1693 = vpop.permute.xlu0 %1692
        %1694 = vrot.lane.b32.xlu0 %v1577, 64
        %v1695 = vpop.permute.xlu0 %1694
        %1696 = vrot.lane.b32.xlu0 %v1578, 64
        %v1697 = vpop.permute.xlu0 %1696
        %1698 = vrot.lane.b32.xlu0 %v1579, 64
        %v1699 = vpop.permute.xlu0 %1698
        %1700 = vrot.lane.b32.xlu0 %v1580, 64
        %v1701 = vpop.permute.xlu0 %1700
        %1702 = vrot.lane.b32.xlu0 %v1581, 64
        %v1703 = vpop.permute.xlu0 %1702
        %1704 = vrot.lane.b32.xlu0 %v1582, 64
        %v1705 = vpop.permute.xlu0 %1704
        %1706 = vrot.lane.b32.xlu0 %v1583, 64
        %v1707 = vpop.permute.xlu0 %1706
        %1708 = vrot.lane.b32.xlu0 %v1584, 64
        %v1709 = vpop.permute.xlu0 %1708
        %1710 = vrot.lane.b32.xlu0 %v1585, 64
        %v1711 = vpop.permute.xlu0 %1710
        %1712 = vrot.lane.b32.xlu0 %v1586, 64
        %v1713 = vpop.permute.xlu0 %1712
        %1714 = vrot.lane.b32.xlu0 %v1587, 64
        %v1715 = vpop.permute.xlu0 %1714
        %v1716 = vmul.f32 %v1556, %v1685
        %v1717 = vmul.f32 %v1557, %v1687
        %v1718 = vmul.f32 %v1558, %v1689
        %v1719 = vmul.f32 %v1559, %v1691
        %v1720 = vmul.f32 %v1560, %v1693
        %v1721 = vmul.f32 %v1561, %v1695
        %v1722 = vmul.f32 %v1562, %v1697
        %v1723 = vmul.f32 %v1563, %v1699
        %v1724 = vmul.f32 %v1564, %v1701
        %v1725 = vmul.f32 %v1565, %v1703
        %v1726 = vmul.f32 %v1566, %v1705
        %v1727 = vmul.f32 %v1567, %v1707
        %v1728 = vmul.f32 %v1568, %v1709
        %v1729 = vmul.f32 %v1569, %v1711
        %v1730 = vmul.f32 %v1570, %v1713
        %v1731 = vmul.f32 %v1571, %v1715
        %v1732 = vpack.c.bf16 %v1717, %v1716
        %v1733 = vpack.c.bf16 %v1719, %v1718
        %v1734 = vpack.c.bf16 %v1721, %v1720
        %v1735 = vpack.c.bf16 %v1723, %v1722
        %v1736 = vpack.c.bf16 %v1725, %v1724
        %v1737 = vpack.c.bf16 %v1727, %v1726
        %v1738 = vpack.c.bf16 %v1729, %v1728
        %v1739 = vpack.c.bf16 %v1731, %v1730
        %1740 = vrot.lane.b32.xlu0 %v1572, 96
        %v1741 = vpop.permute.xlu0 %1740
        %1742 = vrot.lane.b32.xlu0 %v1573, 96
        %v1743 = vpop.permute.xlu0 %1742
        %1744 = vrot.lane.b32.xlu0 %v1574, 96
        %v1745 = vpop.permute.xlu0 %1744
        %1746 = vrot.lane.b32.xlu0 %v1575, 96
        %v1747 = vpop.permute.xlu0 %1746
        %1748 = vrot.lane.b32.xlu0 %v1576, 96
        %v1749 = vpop.permute.xlu0 %1748
        %1750 = vrot.lane.b32.xlu0 %v1577, 96
        %v1751 = vpop.permute.xlu0 %1750
        %1752 = vrot.lane.b32.xlu0 %v1578, 96
        %v1753 = vpop.permute.xlu0 %1752
        %1754 = vrot.lane.b32.xlu0 %v1579, 96
        %v1755 = vpop.permute.xlu0 %1754
        %1756 = vrot.lane.b32.xlu0 %v1580, 96
        %v1757 = vpop.permute.xlu0 %1756
        %1758 = vrot.lane.b32.xlu0 %v1581, 96
        %v1759 = vpop.permute.xlu0 %1758
        %1760 = vrot.lane.b32.xlu0 %v1582, 96
        %v1761 = vpop.permute.xlu0 %1760
        %1762 = vrot.lane.b32.xlu0 %v1583, 96
        %v1763 = vpop.permute.xlu0 %1762
        %1764 = vrot.lane.b32.xlu0 %v1584, 96
        %v1765 = vpop.permute.xlu0 %1764
        %1766 = vrot.lane.b32.xlu0 %v1585, 96
        %v1767 = vpop.permute.xlu0 %1766
        %1768 = vrot.lane.b32.xlu0 %v1586, 96
        %v1769 = vpop.permute.xlu0 %1768
        %1770 = vrot.lane.b32.xlu0 %v1587, 96
        %v1771 = vpop.permute.xlu0 %1770
        %v1772 = vmul.f32 %v1556, %v1741
        %v1773 = vmul.f32 %v1557, %v1743
        %v1774 = vmul.f32 %v1558, %v1745
        %v1775 = vmul.f32 %v1559, %v1747
        %v1776 = vmul.f32 %v1560, %v1749
        %v1777 = vmul.f32 %v1561, %v1751
        %v1778 = vmul.f32 %v1562, %v1753
        %v1779 = vmul.f32 %v1563, %v1755
        %v1780 = vmul.f32 %v1564, %v1757
        %v1781 = vmul.f32 %v1565, %v1759
        %v1782 = vmul.f32 %v1566, %v1761
        %v1783 = vmul.f32 %v1567, %v1763
        %v1784 = vmul.f32 %v1568, %v1765
        %v1785 = vmul.f32 %v1569, %v1767
        %v1786 = vmul.f32 %v1570, %v1769
        %v1787 = vmul.f32 %v1571, %v1771
        %v1788 = vpack.c.bf16 %v1773, %v1772
        %v1789 = vpack.c.bf16 %v1775, %v1774
        %v1790 = vpack.c.bf16 %v1777, %v1776
        %v1791 = vpack.c.bf16 %v1779, %v1778
        %v1792 = vpack.c.bf16 %v1781, %v1780
        %v1793 = vpack.c.bf16 %v1783, %v1782
        %v1794 = vpack.c.bf16 %v1785, %v1784
        %v1795 = vpack.c.bf16 %v1787, %v1786
        %1796 = vmatprep.subr.bf16.mxu0 0
        %1797 = vmatpush1.bf16.msra.mxu0 %v1588
        %1798 = vmatprep.subr.bf16.mxu0 0
        %1799 = vmatpush1.bf16.msra.mxu0 %v1589
        %1800 = vmatprep.subr.bf16.mxu0 0
        %1801 = vmatpush1.bf16.msra.mxu0 %v1590
        %1802 = vmatprep.subr.bf16.mxu0 0
        %1803 = vmatpush1.bf16.msra.mxu0 %v1591
        %1804 = vmatprep.subr.bf16.mxu0 0
        %1805 = vmatpush1.bf16.msra.mxu0 %v1592
        %1806 = vmatprep.subr.bf16.mxu0 0
        %1807 = vmatpush1.bf16.msra.mxu0 %v1593
        %1808 = vmatprep.subr.bf16.mxu0 0
        %1809 = vmatpush1.bf16.msra.mxu0 %v1594
        %1810 = vmatprep.subr.bf16.mxu0 0
        %1811 = vmatpush1.bf16.msra.mxu0 %v1595
        %1812 = vmatprep.subr.bf16.mxu0 0
        %1813 = vmatpush1.bf16.msra.mxu0 0
        %1814 = vmatprep.subr.bf16.mxu0 0
        %1815 = vmatpush1.bf16.msra.mxu0 0
        %1816 = vmatprep.subr.bf16.mxu0 0
        %1817 = vmatpush1.bf16.msra.mxu0 0
        %1818 = vmatprep.subr.bf16.mxu0 0
        %1819 = vmatpush1.bf16.msra.mxu0 0
        %1820 = vmatprep.subr.bf16.mxu0 0
        %1821 = vmatpush1.bf16.msra.mxu0 0
        %1822 = vmatprep.subr.bf16.mxu0 0
        %1823 = vmatpush1.bf16.msra.mxu0 0
        %1824 = vmatprep.subr.bf16.mxu0 0
        %1825 = vmatpush1.bf16.msra.mxu0 0
        %1826 = vmatprep.subr.bf16.mxu0 0
        %1827 = vmatpush1.bf16.msra.mxu0 0
        %1828 = vmatprep.mubr.bf16.mxu0 0
        %1829 = vmatmul.mubr.bf16.gmra.mrb[0].mxu0 %v1620
        %v1830 = vpop.f32.mrb[0].mxu0
        %v1831 = vadd.f32 0.0, %v1830
        %v1832 = vpop.f32.mrb[0].mxu0
        %v1833 = vpop.f32.mrb[0].mxu0
        %v1834 = vadd.f32 0.0, %v1833
        %v1835 = vpop.f32.mrb[0].mxu0
        %1836 = vmatprep.mubr.bf16.mxu0 0
        %1837 = vmatmul.mubr.bf16.gmra.mrb[0].mxu0 %v1621
        %v1838 = vpop.f32.mrb[0].mxu0
        %v1839 = vadd.f32 0.0, %v1838
        %v1840 = vpop.f32.mrb[0].mxu0
        %v1841 = vpop.f32.mrb[0].mxu0
        %v1842 = vadd.f32 0.0, %v1841
        %v1843 = vpop.f32.mrb[0].mxu0
        %1844 = vmatprep.mubr.bf16.mxu0 0
        %1845 = vmatmul.mubr.bf16.gmra.mrb[0].mxu0 %v1622
        %v1846 = vpop.f32.mrb[0].mxu0
        %v1847 = vadd.f32 0.0, %v1846
        %v1848 = vpop.f32.mrb[0].mxu0
        %v1849 = vpop.f32.mrb[0].mxu0
        %v1850 = vadd.f32 0.0, %v1849
        %v1851 = vpop.f32.mrb[0].mxu0
        %1852 = vmatprep.mubr.bf16.mxu0 0
        %1853 = vmatmul.mubr.bf16.gmra.mrb[0].mxu0 %v1623
        %v1854 = vpop.f32.mrb[0].mxu0
        %v1855 = vadd.f32 0.0, %v1854
        %v1856 = vpop.f32.mrb[0].mxu0
        %v1857 = vpop.f32.mrb[0].mxu0
        %v1858 = vadd.f32 0.0, %v1857
        %v1859 = vpop.f32.mrb[0].mxu0
        %1860 = vmatprep.mubr.bf16.mxu0 0
        %1861 = vmatmul.mubr.bf16.gmra.mrb[0].mxu0 %v1624
        %v1862 = vpop.f32.mrb[0].mxu0
        %v1863 = vadd.f32 0.0, %v1862
        %v1864 = vpop.f32.mrb[0].mxu0
        %v1865 = vpop.f32.mrb[0].mxu0
        %v1866 = vadd.f32 0.0, %v1865
        %v1867 = vpop.f32.mrb[0].mxu0
        %1868 = vmatprep.mubr.bf16.mxu0 0
        %1869 = vmatmul.mubr.bf16.gmra.mrb[0].mxu0 %v1625
        %v1870 = vpop.f32.mrb[0].mxu0
        %v1871 = vadd.f32 0.0, %v1870
        %v1872 = vpop.f32.mrb[0].mxu0
        %v1873 = vpop.f32.mrb[0].mxu0
        %v1874 = vadd.f32 0.0, %v1873
        %v1875 = vpop.f32.mrb[0].mxu0
        %1876 = vmatprep.mubr.bf16.mxu0 0
        %1877 = vmatmul.mubr.bf16.gmra.mrb[0].mxu0 %v1626
        %v1878 = vpop.f32.mrb[0].mxu0
        %v1879 = vadd.f32 0.0, %v1878
        %v1880 = vpop.f32.mrb[0].mxu0
        %v1881 = vpop.f32.mrb[0].mxu0
        %v1882 = vadd.f32 0.0, %v1881
        %v1883 = vpop.f32.mrb[0].mxu0
        %1884 = vmatprep.mubr.bf16.mxu0 0
        %1885 = vmatmul.mubr.bf16.gmra.mrb[0].mxu0 %v1627
        %v1886 = vpop.f32.mrb[0].mxu0
        %v1887 = vadd.f32 0.0, %v1886
        %v1888 = vpop.f32.mrb[0].mxu0
        %v1889 = vpop.f32.mrb[0].mxu0
        %v1890 = vadd.f32 0.0, %v1889
        %v1891 = vpop.f32.mrb[0].mxu0
        %1892 = vmatprep.mubr.bf16.mxu0 0
        %1893 = vmatmul.mubr.bf16.gmra.mrb[0].mxu0 %v1676
        %v1894 = vpop.f32.mrb[0].mxu0
        %v1895 = vadd.f32 0.0, %v1894
        %v1896 = vpop.f32.mrb[0].mxu0
        %v1897 = vpop.f32.mrb[0].mxu0
        %v1898 = vadd.f32 0.0, %v1897
        %v1899 = vpop.f32.mrb[0].mxu0
        %1900 = vmatprep.mubr.bf16.mxu0 0
        %1901 = vmatmul.mubr.bf16.gmra.mrb[0].mxu0 %v1677
        %v1902 = vpop.f32.mrb[0].mxu0
        %v1903 = vadd.f32 0.0, %v1902
        %v1904 = vpop.f32.mrb[0].mxu0
        %v1905 = vpop.f32.mrb[0].mxu0
        %v1906 = vadd.f32 0.0, %v1905
        %v1907 = vpop.f32.mrb[0].mxu0
        %1908 = vmatprep.mubr.bf16.mxu0 0
        %1909 = vmatmul.mubr.bf16.gmra.mrb[0].mxu0 %v1678
        %v1910 = vpop.f32.mrb[0].mxu0
        %v1911 = vadd.f32 0.0, %v1910
        %v1912 = vpop.f32.mrb[0].mxu0
        %v1913 = vpop.f32.mrb[0].mxu0
        %v1914 = vadd.f32 0.0, %v1913
        %v1915 = vpop.f32.mrb[0].mxu0
        %1916 = vmatprep.mubr.bf16.mxu0 0
        %1917 = vmatmul.mubr.bf16.gmra.mrb[0].mxu0 %v1679
        %v1918 = vpop.f32.mrb[0].mxu0
        %v1919 = vadd.f32 0.0, %v1918
        %v1920 = vpop.f32.mrb[0].mxu0
        %v1921 = vpop.f32.mrb[0].mxu0
        %v1922 = vadd.f32 0.0, %v1921
        %v1923 = vpop.f32.mrb[0].mxu0
        %1924 = vmatprep.mubr.bf16.mxu0 0
        %1925 = vmatmul.mubr.bf16.gmra.mrb[0].mxu0 %v1680
        %v1926 = vpop.f32.mrb[0].mxu0
        %v1927 = vadd.f32 0.0, %v1926
        %v1928 = vpop.f32.mrb[0].mxu0
        %v1929 = vpop.f32.mrb[0].mxu0
        %v1930 = vadd.f32 0.0, %v1929
        %v1931 = vpop.f32.mrb[0].mxu0
        %1932 = vmatprep.mubr.bf16.mxu0 0
        %1933 = vmatmul.mubr.bf16.gmra.mrb[0].mxu0 %v1681
        %v1934 = vpop.f32.mrb[0].mxu0
        %v1935 = vadd.f32 0.0, %v1934
        %v1936 = vpop.f32.mrb[0].mxu0
        %v1937 = vpop.f32.mrb[0].mxu0
        %v1938 = vadd.f32 0.0, %v1937
        %v1939 = vpop.f32.mrb[0].mxu0
        %1940 = vmatprep.mubr.bf16.mxu0 0
        %1941 = vmatmul.mubr.bf16.gmra.mrb[0].mxu0 %v1682
        %v1942 = vpop.f32.mrb[0].mxu0
        %v1943 = vadd.f32 0.0, %v1942
        %v1944 = vpop.f32.mrb[0].mxu0
        %v1945 = vpop.f32.mrb[0].mxu0
        %v1946 = vadd.f32 0.0, %v1945
        %v1947 = vpop.f32.mrb[0].mxu0
        %1948 = vmatprep.mubr.bf16.mxu0 0
        %1949 = vmatmul.mubr.bf16.gmra.mrb[0].mxu0 %v1683
        %v1950 = vpop.f32.mrb[0].mxu0
        %v1951 = vadd.f32 0.0, %v1950
        %v1952 = vpop.f32.mrb[0].mxu0
        %v1953 = vpop.f32.mrb[0].mxu0
        %v1954 = vadd.f32 0.0, %v1953
        %v1955 = vpop.f32.mrb[0].mxu0
        %1956 = vmatprep.mubr.bf16.mxu0 0
        %1957 = vmatmul.mubr.bf16.gmra.mrb[0].mxu0 %v1732
        %v1958 = vpop.f32.mrb[0].mxu0
        %v1959 = vadd.f32 0.0, %v1958
        %v1960 = vpop.f32.mrb[0].mxu0
        %v1961 = vpop.f32.mrb[0].mxu0
        %v1962 = vadd.f32 0.0, %v1961
        %v1963 = vpop.f32.mrb[0].mxu0
        %1964 = vmatprep.mubr.bf16.mxu0 0
        %1965 = vmatmul.mubr.bf16.gmra.mrb[0].mxu0 %v1733
        %v1966 = vpop.f32.mrb[0].mxu0
        %v1967 = vadd.f32 0.0, %v1966
        %v1968 = vpop.f32.mrb[0].mxu0
        %v1969 = vpop.f32.mrb[0].mxu0
        %v1970 = vadd.f32 0.0, %v1969
        %v1971 = vpop.f32.mrb[0].mxu0
        %1972 = vmatprep.mubr.bf16.mxu0 0
        %1973 = vmatmul.mubr.bf16.gmra.mrb[0].mxu0 %v1734
        %v1974 = vpop.f32.mrb[0].mxu0
        %v1975 = vadd.f32 0.0, %v1974
        %v1976 = vpop.f32.mrb[0].mxu0
        %v1977 = vpop.f32.mrb[0].mxu0
        %v1978 = vadd.f32 0.0, %v1977
        %v1979 = vpop.f32.mrb[0].mxu0
        %1980 = vmatprep.mubr.bf16.mxu0 0
        %1981 = vmatmul.mubr.bf16.gmra.mrb[0].mxu0 %v1735
        %v1982 = vpop.f32.mrb[0].mxu0
        %v1983 = vadd.f32 0.0, %v1982
        %v1984 = vpop.f32.mrb[0].mxu0
        %v1985 = vpop.f32.mrb[0].mxu0
        %v1986 = vadd.f32 0.0, %v1985
        %v1987 = vpop.f32.mrb[0].mxu0
        %1988 = vmatprep.mubr.bf16.mxu0 0
        %1989 = vmatmul.mubr.bf16.gmra.mrb[0].mxu0 %v1736
        %v1990 = vpop.f32.mrb[0].mxu0
        %v1991 = vadd.f32 0.0, %v1990
        %v1992 = vpop.f32.mrb[0].mxu0
        %v1993 = vpop.f32.mrb[0].mxu0
        %v1994 = vadd.f32 0.0, %v1993
        %v1995 = vpop.f32.mrb[0].mxu0
        %1996 = vmatprep.mubr.bf16.mxu0 0
        %1997 = vmatmul.mubr.bf16.gmra.mrb[0].mxu0 %v1737
        %v1998 = vpop.f32.mrb[0].mxu0
        %v1999 = vadd.f32 0.0, %v1998
        %v2000 = vpop.f32.mrb[0].mxu0
        %v2001 = vpop.f32.mrb[0].mxu0
        %v2002 = vadd.f32 0.0, %v2001
        %v2003 = vpop.f32.mrb[0].mxu0
        %2004 = vmatprep.mubr.bf16.mxu0 0
        %2005 = vmatmul.mubr.bf16.gmra.mrb[0].mxu0 %v1738
        %v2006 = vpop.f32.mrb[0].mxu0
        %v2007 = vadd.f32 0.0, %v2006
        %v2008 = vpop.f32.mrb[0].mxu0
        %v2009 = vpop.f32.mrb[0].mxu0
        %v2010 = vadd.f32 0.0, %v2009
        %v2011 = vpop.f32.mrb[0].mxu0
        %2012 = vmatprep.mubr.bf16.mxu0 0
        %2013 = vmatmul.mubr.bf16.gmra.mrb[0].mxu0 %v1739
        %v2014 = vpop.f32.mrb[0].mxu0
        %v2015 = vadd.f32 0.0, %v2014
        %v2016 = vpop.f32.mrb[0].mxu0
        %v2017 = vpop.f32.mrb[0].mxu0
        %v2018 = vadd.f32 0.0, %v2017
        %v2019 = vpop.f32.mrb[0].mxu0
        %2020 = vmatprep.mubr.bf16.mxu0 0
        %2021 = vmatmul.mubr.bf16.gmra.mrb[0].mxu0 %v1788
        %v2022 = vpop.f32.mrb[0].mxu0
        %v2023 = vadd.f32 0.0, %v2022
        %v2024 = vpop.f32.mrb[0].mxu0
        %v2025 = vpop.f32.mrb[0].mxu0
        %v2026 = vadd.f32 0.0, %v2025
        %v2027 = vpop.f32.mrb[0].mxu0
        %2028 = vmatprep.mubr.bf16.mxu0 0
        %2029 = vmatmul.mubr.bf16.gmra.mrb[0].mxu0 %v1789
        %v2030 = vpop.f32.mrb[0].mxu0
        %v2031 = vadd.f32 0.0, %v2030
        %v2032 = vpop.f32.mrb[0].mxu0
        %v2033 = vpop.f32.mrb[0].mxu0
        %v2034 = vadd.f32 0.0, %v2033
        %v2035 = vpop.f32.mrb[0].mxu0
        %2036 = vmatprep.mubr.bf16.mxu0 0
        %2037 = vmatmul.mubr.bf16.gmra.mrb[0].mxu0 %v1790
        %v2038 = vpop.f32.mrb[0].mxu0
        %v2039 = vadd.f32 0.0, %v2038
        %v2040 = vpop.f32.mrb[0].mxu0
        %v2041 = vpop.f32.mrb[0].mxu0
        %v2042 = vadd.f32 0.0, %v2041
        %v2043 = vpop.f32.mrb[0].mxu0
        %2044 = vmatprep.mubr.bf16.mxu0 0
        %2045 = vmatmul.mubr.bf16.gmra.mrb[0].mxu0 %v1791
        %v2046 = vpop.f32.mrb[0].mxu0
        %v2047 = vadd.f32 0.0, %v2046
        %v2048 = vpop.f32.mrb[0].mxu0
        %v2049 = vpop.f32.mrb[0].mxu0
        %v2050 = vadd.f32 0.0, %v2049
        %v2051 = vpop.f32.mrb[0].mxu0
        %2052 = vmatprep.mubr.bf16.mxu0 0
        %2053 = vmatmul.mubr.bf16.gmra.mrb[0].mxu0 %v1792
        %v2054 = vpop.f32.mrb[0].mxu0
        %v2055 = vadd.f32 0.0, %v2054
        %v2056 = vpop.f32.mrb[0].mxu0
        %v2057 = vpop.f32.mrb[0].mxu0
        %v2058 = vadd.f32 0.0, %v2057
        %v2059 = vpop.f32.mrb[0].mxu0
        %2060 = vmatprep.mubr.bf16.mxu0 0
        %2061 = vmatmul.mubr.bf16.gmra.mrb[0].mxu0 %v1793
        %v2062 = vpop.f32.mrb[0].mxu0
        %v2063 = vadd.f32 0.0, %v2062
        %v2064 = vpop.f32.mrb[0].mxu0
        %v2065 = vpop.f32.mrb[0].mxu0
        %v2066 = vadd.f32 0.0, %v2065
        %v2067 = vpop.f32.mrb[0].mxu0
        %2068 = vmatprep.mubr.bf16.mxu0 0
        %2069 = vmatmul.mubr.bf16.gmra.mrb[0].mxu0 %v1794
        %v2070 = vpop.f32.mrb[0].mxu0
        %v2071 = vadd.f32 0.0, %v2070
        %v2072 = vpop.f32.mrb[0].mxu0
        %v2073 = vpop.f32.mrb[0].mxu0
        %v2074 = vadd.f32 0.0, %v2073
        %v2075 = vpop.f32.mrb[0].mxu0
        %2076 = vmatprep.mubr.bf16.mxu0 0
        %2077 = vmatmul.mubr.bf16.gmra.mrb[0].mxu0 %v1795
        %v2078 = vpop.f32.mrb[0].mxu0
        %v2079 = vadd.f32 0.0, %v2078
        %v2080 = vpop.f32.mrb[0].mxu0
        %v2081 = vpop.f32.mrb[0].mxu0
        %v2082 = vadd.f32 0.0, %v2081
        %v2083 = vpop.f32.mrb[0].mxu0
        %2084 = vdwg.mxu0
        %v2085 = vpack.c.bf16 %v1834, %v1831
        %v2086 = vpack.c.bf16 %v1842, %v1839
        %v2087 = vpack.c.bf16 %v1850, %v1847
        %v2088 = vpack.c.bf16 %v1858, %v1855
        %v2089 = vpack.c.bf16 %v1866, %v1863
        %v2090 = vpack.c.bf16 %v1874, %v1871
        %v2091 = vpack.c.bf16 %v1882, %v1879
        %v2092 = vpack.c.bf16 %v1890, %v1887
        %v2093 = vpack.c.bf16 %v1898, %v1895
        %v2094 = vpack.c.bf16 %v1906, %v1903
        %v2095 = vpack.c.bf16 %v1914, %v1911
        %v2096 = vpack.c.bf16 %v1922, %v1919
        %v2097 = vpack.c.bf16 %v1930, %v1927
        %v2098 = vpack.c.bf16 %v1938, %v1935
        %v2099 = vpack.c.bf16 %v1946, %v1943
        %v2100 = vpack.c.bf16 %v1954, %v1951
        %v2101 = vpack.c.bf16 %v1962, %v1959
        %v2102 = vpack.c.bf16 %v1970, %v1967
        %v2103 = vpack.c.bf16 %v1978, %v1975
        %v2104 = vpack.c.bf16 %v1986, %v1983
        %v2105 = vpack.c.bf16 %v1994, %v1991
        %v2106 = vpack.c.bf16 %v2002, %v1999
        %v2107 = vpack.c.bf16 %v2010, %v2007
        %v2108 = vpack.c.bf16 %v2018, %v2015
        %v2109 = vpack.c.bf16 %v2026, %v2023
        %v2110 = vpack.c.bf16 %v2034, %v2031
        %v2111 = vpack.c.bf16 %v2042, %v2039
        %v2112 = vpack.c.bf16 %v2050, %v2047
        %v2113 = vpack.c.bf16 %v2058, %v2055
        %v2114 = vpack.c.bf16 %v2066, %v2063
        %v2115 = vpack.c.bf16 %v2074, %v2071
        %v2116 = vpack.c.bf16 %v2082, %v2079
        %2117 = vmatprep.subr.bf16.mxu0 0
        %2118 = vmatpush1.bf16.msra.mxu0 %v1596
        %2119 = vmatprep.subr.bf16.mxu0 0
        %2120 = vmatpush1.bf16.msra.mxu0 %v1597
        %2121 = vmatprep.subr.bf16.mxu0 0
        %2122 = vmatpush1.bf16.msra.mxu0 %v1598
        %2123 = vmatprep.subr.bf16.mxu0 0
        %2124 = vmatpush1.bf16.msra.mxu0 %v1599
        %2125 = vmatprep.subr.bf16.mxu0 0
        %2126 = vmatpush1.bf16.msra.mxu0 %v1600
        %2127 = vmatprep.subr.bf16.mxu0 0
        %2128 = vmatpush1.bf16.msra.mxu0 %v1601
        %2129 = vmatprep.subr.bf16.mxu0 0
        %2130 = vmatpush1.bf16.msra.mxu0 %v1602
        %2131 = vmatprep.subr.bf16.mxu0 0
        %2132 = vmatpush1.bf16.msra.mxu0 %v1603
        %2133 = vmatprep.subr.bf16.mxu0 0
        %2134 = vmatpush1.bf16.msra.mxu0 0
        %2135 = vmatprep.subr.bf16.mxu0 0
        %2136 = vmatpush1.bf16.msra.mxu0 0
        %2137 = vmatprep.subr.bf16.mxu0 0
        %2138 = vmatpush1.bf16.msra.mxu0 0
        %2139 = vmatprep.subr.bf16.mxu0 0
        %2140 = vmatpush1.bf16.msra.mxu0 0
        %2141 = vmatprep.subr.bf16.mxu0 0
        %2142 = vmatpush1.bf16.msra.mxu0 0
        %2143 = vmatprep.subr.bf16.mxu0 0
        %2144 = vmatpush1.bf16.msra.mxu0 0
        %2145 = vmatprep.subr.bf16.mxu0 0
        %2146 = vmatpush1.bf16.msra.mxu0 0
        %2147 = vmatprep.subr.bf16.mxu0 0
        %2148 = vmatpush1.bf16.msra.mxu0 0
        %2149 = vmatprep.mubr.bf16.mxu0 0
        %2150 = vmatmul.mubr.bf16.gmra.mrb[0].mxu0 %v2085
        %v2151 = vpop.f32.mrb[0].mxu0
        %v2152 = vadd.f32 0.0, %v2151
        %v2153 = vpop.f32.mrb[0].mxu0
        %v2154 = vpop.f32.mrb[0].mxu0
        %v2155 = vadd.f32 0.0, %v2154
        %v2156 = vpop.f32.mrb[0].mxu0
        %2157 = vmatprep.mubr.bf16.mxu0 0
        %2158 = vmatmul.mubr.bf16.gmra.mrb[0].mxu0 %v2086
        %v2159 = vpop.f32.mrb[0].mxu0
        %v2160 = vadd.f32 0.0, %v2159
        %v2161 = vpop.f32.mrb[0].mxu0
        %v2162 = vpop.f32.mrb[0].mxu0
        %v2163 = vadd.f32 0.0, %v2162
        %v2164 = vpop.f32.mrb[0].mxu0
        %2165 = vmatprep.mubr.bf16.mxu0 0
        %2166 = vmatmul.mubr.bf16.gmra.mrb[0].mxu0 %v2087
        %v2167 = vpop.f32.mrb[0].mxu0
        %v2168 = vadd.f32 0.0, %v2167
        %v2169 = vpop.f32.mrb[0].mxu0
        %v2170 = vpop.f32.mrb[0].mxu0
        %v2171 = vadd.f32 0.0, %v2170
        %v2172 = vpop.f32.mrb[0].mxu0
        %2173 = vmatprep.mubr.bf16.mxu0 0
        %2174 = vmatmul.mubr.bf16.gmra.mrb[0].mxu0 %v2088
        %v2175 = vpop.f32.mrb[0].mxu0
        %v2176 = vadd.f32 0.0, %v2175
        %v2177 = vpop.f32.mrb[0].mxu0
        %v2178 = vpop.f32.mrb[0].mxu0
        %v2179 = vadd.f32 0.0, %v2178
        %v2180 = vpop.f32.mrb[0].mxu0
        %2181 = vmatprep.mubr.bf16.mxu0 0
        %2182 = vmatmul.mubr.bf16.gmra.mrb[0].mxu0 %v2089
        %v2183 = vpop.f32.mrb[0].mxu0
        %v2184 = vadd.f32 0.0, %v2183
        %v2185 = vpop.f32.mrb[0].mxu0
        %v2186 = vpop.f32.mrb[0].mxu0
        %v2187 = vadd.f32 0.0, %v2186
        %v2188 = vpop.f32.mrb[0].mxu0
        %2189 = vmatprep.mubr.bf16.mxu0 0
        %2190 = vmatmul.mubr.bf16.gmra.mrb[0].mxu0 %v2090
        %v2191 = vpop.f32.mrb[0].mxu0
        %v2192 = vadd.f32 0.0, %v2191
        %v2193 = vpop.f32.mrb[0].mxu0
        %v2194 = vpop.f32.mrb[0].mxu0
        %v2195 = vadd.f32 0.0, %v2194
        %v2196 = vpop.f32.mrb[0].mxu0
        %2197 = vmatprep.mubr.bf16.mxu0 0
        %2198 = vmatmul.mubr.bf16.gmra.mrb[0].mxu0 %v2091
        %v2199 = vpop.f32.mrb[0].mxu0
        %v2200 = vadd.f32 0.0, %v2199
        %v2201 = vpop.f32.mrb[0].mxu0
        %v2202 = vpop.f32.mrb[0].mxu0
        %v2203 = vadd.f32 0.0, %v2202
        %v2204 = vpop.f32.mrb[0].mxu0
        %2205 = vmatprep.mubr.bf16.mxu0 0
        %2206 = vmatmul.mubr.bf16.gmra.mrb[0].mxu0 %v2092
        %v2207 = vpop.f32.mrb[0].mxu0
        %v2208 = vadd.f32 0.0, %v2207
        %v2209 = vpop.f32.mrb[0].mxu0
        %v2210 = vpop.f32.mrb[0].mxu0
        %v2211 = vadd.f32 0.0, %v2210
        %v2212 = vpop.f32.mrb[0].mxu0
        %2213 = vmatprep.mubr.bf16.mxu0 0
        %2214 = vmatmul.mubr.bf16.gmra.mrb[0].mxu0 %v2093
        %v2215 = vpop.f32.mrb[0].mxu0
        %v2216 = vadd.f32 0.0, %v2215
        %v2217 = vpop.f32.mrb[0].mxu0
        %v2218 = vpop.f32.mrb[0].mxu0
        %v2219 = vadd.f32 0.0, %v2218
        %v2220 = vpop.f32.mrb[0].mxu0
        %2221 = vmatprep.mubr.bf16.mxu0 0
        %2222 = vmatmul.mubr.bf16.gmra.mrb[0].mxu0 %v2094
        %v2223 = vpop.f32.mrb[0].mxu0
        %v2224 = vadd.f32 0.0, %v2223
        %v2225 = vpop.f32.mrb[0].mxu0
        %v2226 = vpop.f32.mrb[0].mxu0
        %v2227 = vadd.f32 0.0, %v2226
        %v2228 = vpop.f32.mrb[0].mxu0
        %2229 = vmatprep.mubr.bf16.mxu0 0
        %2230 = vmatmul.mubr.bf16.gmra.mrb[0].mxu0 %v2095
        %v2231 = vpop.f32.mrb[0].mxu0
        %v2232 = vadd.f32 0.0, %v2231
        %v2233 = vpop.f32.mrb[0].mxu0
        %v2234 = vpop.f32.mrb[0].mxu0
        %v2235 = vadd.f32 0.0, %v2234
        %v2236 = vpop.f32.mrb[0].mxu0
        %2237 = vmatprep.mubr.bf16.mxu0 0
        %2238 = vmatmul.mubr.bf16.gmra.mrb[0].mxu0 %v2096
        %v2239 = vpop.f32.mrb[0].mxu0
        %v2240 = vadd.f32 0.0, %v2239
        %v2241 = vpop.f32.mrb[0].mxu0
        %v2242 = vpop.f32.mrb[0].mxu0
        %v2243 = vadd.f32 0.0, %v2242
        %v2244 = vpop.f32.mrb[0].mxu0
        %2245 = vmatprep.mubr.bf16.mxu0 0
        %2246 = vmatmul.mubr.bf16.gmra.mrb[0].mxu0 %v2097
        %v2247 = vpop.f32.mrb[0].mxu0
        %v2248 = vadd.f32 0.0, %v2247
        %v2249 = vpop.f32.mrb[0].mxu0
        %v2250 = vpop.f32.mrb[0].mxu0
        %v2251 = vadd.f32 0.0, %v2250
        %v2252 = vpop.f32.mrb[0].mxu0
        %2253 = vmatprep.mubr.bf16.mxu0 0
        %2254 = vmatmul.mubr.bf16.gmra.mrb[0].mxu0 %v2098
        %v2255 = vpop.f32.mrb[0].mxu0
        %v2256 = vadd.f32 0.0, %v2255
        %v2257 = vpop.f32.mrb[0].mxu0
        %v2258 = vpop.f32.mrb[0].mxu0
        %v2259 = vadd.f32 0.0, %v2258
        %v2260 = vpop.f32.mrb[0].mxu0
        %2261 = vmatprep.mubr.bf16.mxu0 0
        %2262 = vmatmul.mubr.bf16.gmra.mrb[0].mxu0 %v2099
        %v2263 = vpop.f32.mrb[0].mxu0
        %v2264 = vadd.f32 0.0, %v2263
        %v2265 = vpop.f32.mrb[0].mxu0
        %v2266 = vpop.f32.mrb[0].mxu0
        %v2267 = vadd.f32 0.0, %v2266
        %v2268 = vpop.f32.mrb[0].mxu0
        %2269 = vmatprep.mubr.bf16.mxu0 0
        %2270 = vmatmul.mubr.bf16.gmra.mrb[0].mxu0 %v2100
        %v2271 = vpop.f32.mrb[0].mxu0
        %v2272 = vadd.f32 0.0, %v2271
        %v2273 = vpop.f32.mrb[0].mxu0
        %v2274 = vpop.f32.mrb[0].mxu0
        %v2275 = vadd.f32 0.0, %v2274
        %v2276 = vpop.f32.mrb[0].mxu0
        %2277 = vmatprep.mubr.bf16.mxu0 0
        %2278 = vmatmul.mubr.bf16.gmra.mrb[0].mxu0 %v2101
        %v2279 = vpop.f32.mrb[0].mxu0
        %v2280 = vadd.f32 0.0, %v2279
        %v2281 = vpop.f32.mrb[0].mxu0
        %v2282 = vpop.f32.mrb[0].mxu0
        %v2283 = vadd.f32 0.0, %v2282
        %v2284 = vpop.f32.mrb[0].mxu0
        %2285 = vmatprep.mubr.bf16.mxu0 0
        %2286 = vmatmul.mubr.bf16.gmra.mrb[0].mxu0 %v2102
        %v2287 = vpop.f32.mrb[0].mxu0
        %v2288 = vadd.f32 0.0, %v2287
        %v2289 = vpop.f32.mrb[0].mxu0
        %v2290 = vpop.f32.mrb[0].mxu0
        %v2291 = vadd.f32 0.0, %v2290
        %v2292 = vpop.f32.mrb[0].mxu0
        %2293 = vmatprep.mubr.bf16.mxu0 0
        %2294 = vmatmul.mubr.bf16.gmra.mrb[0].mxu0 %v2103
        %v2295 = vpop.f32.mrb[0].mxu0
        %v2296 = vadd.f32 0.0, %v2295
        %v2297 = vpop.f32.mrb[0].mxu0
        %v2298 = vpop.f32.mrb[0].mxu0
        %v2299 = vadd.f32 0.0, %v2298
        %v2300 = vpop.f32.mrb[0].mxu0
        %2301 = vmatprep.mubr.bf16.mxu0 0
        %2302 = vmatmul.mubr.bf16.gmra.mrb[0].mxu0 %v2104
        %v2303 = vpop.f32.mrb[0].mxu0
        %v2304 = vadd.f32 0.0, %v2303
        %v2305 = vpop.f32.mrb[0].mxu0
        %v2306 = vpop.f32.mrb[0].mxu0
        %v2307 = vadd.f32 0.0, %v2306
        %v2308 = vpop.f32.mrb[0].mxu0
        %2309 = vmatprep.mubr.bf16.mxu0 0
        %2310 = vmatmul.mubr.bf16.gmra.mrb[0].mxu0 %v2105
        %v2311 = vpop.f32.mrb[0].mxu0
        %v2312 = vadd.f32 0.0, %v2311
        %v2313 = vpop.f32.mrb[0].mxu0
        %v2314 = vpop.f32.mrb[0].mxu0
        %v2315 = vadd.f32 0.0, %v2314
        %v2316 = vpop.f32.mrb[0].mxu0
        %2317 = vmatprep.mubr.bf16.mxu0 0
        %2318 = vmatmul.mubr.bf16.gmra.mrb[0].mxu0 %v2106
        %v2319 = vpop.f32.mrb[0].mxu0
        %v2320 = vadd.f32 0.0, %v2319
        %v2321 = vpop.f32.mrb[0].mxu0
        %v2322 = vpop.f32.mrb[0].mxu0
        %v2323 = vadd.f32 0.0, %v2322
        %v2324 = vpop.f32.mrb[0].mxu0
        %2325 = vmatprep.mubr.bf16.mxu0 0
        %2326 = vmatmul.mubr.bf16.gmra.mrb[0].mxu0 %v2107
        %v2327 = vpop.f32.mrb[0].mxu0
        %v2328 = vadd.f32 0.0, %v2327
        %v2329 = vpop.f32.mrb[0].mxu0
        %v2330 = vpop.f32.mrb[0].mxu0
        %v2331 = vadd.f32 0.0, %v2330
        %v2332 = vpop.f32.mrb[0].mxu0
        %2333 = vmatprep.mubr.bf16.mxu0 0
        %2334 = vmatmul.mubr.bf16.gmra.mrb[0].mxu0 %v2108
        %v2335 = vpop.f32.mrb[0].mxu0
        %v2336 = vadd.f32 0.0, %v2335
        %v2337 = vpop.f32.mrb[0].mxu0
        %v2338 = vpop.f32.mrb[0].mxu0
        %v2339 = vadd.f32 0.0, %v2338
        %v2340 = vpop.f32.mrb[0].mxu0
        %2341 = vmatprep.mubr.bf16.mxu0 0
        %2342 = vmatmul.mubr.bf16.gmra.mrb[0].mxu0 %v2109
        %v2343 = vpop.f32.mrb[0].mxu0
        %v2344 = vadd.f32 0.0, %v2343
        %v2345 = vpop.f32.mrb[0].mxu0
        %v2346 = vpop.f32.mrb[0].mxu0
        %v2347 = vadd.f32 0.0, %v2346
        %v2348 = vpop.f32.mrb[0].mxu0
        %2349 = vmatprep.mubr.bf16.mxu0 0
        %2350 = vmatmul.mubr.bf16.gmra.mrb[0].mxu0 %v2110
        %v2351 = vpop.f32.mrb[0].mxu0
        %v2352 = vadd.f32 0.0, %v2351
        %v2353 = vpop.f32.mrb[0].mxu0
        %v2354 = vpop.f32.mrb[0].mxu0
        %v2355 = vadd.f32 0.0, %v2354
        %v2356 = vpop.f32.mrb[0].mxu0
        %2357 = vmatprep.mubr.bf16.mxu0 0
        %2358 = vmatmul.mubr.bf16.gmra.mrb[0].mxu0 %v2111
        %v2359 = vpop.f32.mrb[0].mxu0
        %v2360 = vadd.f32 0.0, %v2359
        %v2361 = vpop.f32.mrb[0].mxu0
        %v2362 = vpop.f32.mrb[0].mxu0
        %v2363 = vadd.f32 0.0, %v2362
        %v2364 = vpop.f32.mrb[0].mxu0
        %2365 = vmatprep.mubr.bf16.mxu0 0
        %2366 = vmatmul.mubr.bf16.gmra.mrb[0].mxu0 %v2112
        %v2367 = vpop.f32.mrb[0].mxu0
        %v2368 = vadd.f32 0.0, %v2367
        %v2369 = vpop.f32.mrb[0].mxu0
        %v2370 = vpop.f32.mrb[0].mxu0
        %v2371 = vadd.f32 0.0, %v2370
        %v2372 = vpop.f32.mrb[0].mxu0
        %2373 = vmatprep.mubr.bf16.mxu0 0
        %2374 = vmatmul.mubr.bf16.gmra.mrb[0].mxu0 %v2113
        %v2375 = vpop.f32.mrb[0].mxu0
        %v2376 = vadd.f32 0.0, %v2375
        %v2377 = vpop.f32.mrb[0].mxu0
        %v2378 = vpop.f32.mrb[0].mxu0
        %v2379 = vadd.f32 0.0, %v2378
        %v2380 = vpop.f32.mrb[0].mxu0
        %2381 = vmatprep.mubr.bf16.mxu0 0
        %2382 = vmatmul.mubr.bf16.gmra.mrb[0].mxu0 %v2114
        %v2383 = vpop.f32.mrb[0].mxu0
        %v2384 = vadd.f32 0.0, %v2383
        %v2385 = vpop.f32.mrb[0].mxu0
        %v2386 = vpop.f32.mrb[0].mxu0
        %v2387 = vadd.f32 0.0, %v2386
        %v2388 = vpop.f32.mrb[0].mxu0
        %2389 = vmatprep.mubr.bf16.mxu0 0
        %2390 = vmatmul.mubr.bf16.gmra.mrb[0].mxu0 %v2115
        %v2391 = vpop.f32.mrb[0].mxu0
        %v2392 = vadd.f32 0.0, %v2391
        %v2393 = vpop.f32.mrb[0].mxu0
        %v2394 = vpop.f32.mrb[0].mxu0
        %v2395 = vadd.f32 0.0, %v2394
        %v2396 = vpop.f32.mrb[0].mxu0
        %2397 = vmatprep.mubr.bf16.mxu0 0
        %2398 = vmatmul.mubr.bf16.gmra.mrb[0].mxu0 %v2116
        %v2399 = vpop.f32.mrb[0].mxu0
        %v2400 = vadd.f32 0.0, %v2399
        %v2401 = vpop.f32.mrb[0].mxu0
        %v2402 = vpop.f32.mrb[0].mxu0
        %v2403 = vadd.f32 0.0, %v2402
        %v2404 = vpop.f32.mrb[0].mxu0
        %2405 = vdwg.mxu0
        %v2406 = vmul.f32 %v2152, %v980
        %v2407 = vmul.f32 %v2155, %v983
        %v2408 = vmul.f32 %v2160, %v988
        %v2409 = vmul.f32 %v2163, %v991
        %v2410 = vmul.f32 %v2168, %v996
        %v2411 = vmul.f32 %v2171, %v999
        %v2412 = vmul.f32 %v2176, %v1004
        %v2413 = vmul.f32 %v2179, %v1007
        %v2414 = vmul.f32 %v2184, %v1012
        %v2415 = vmul.f32 %v2187, %v1015
        %v2416 = vmul.f32 %v2192, %v1020
        %v2417 = vmul.f32 %v2195, %v1023
        %v2418 = vmul.f32 %v2200, %v1028
        %v2419 = vmul.f32 %v2203, %v1031
        %v2420 = vmul.f32 %v2208, %v1036
        %v2421 = vmul.f32 %v2211, %v1039
        %2422 = vrot.lane.b32.xlu0 %v980, 32
        %v2423 = vpop.permute.xlu0 %2422
        %2424 = vrot.lane.b32.xlu0 %v983, 32
        %v2425 = vpop.permute.xlu0 %2424
        %2426 = vrot.lane.b32.xlu0 %v988, 32
        %v2427 = vpop.permute.xlu0 %2426
        %2428 = vrot.lane.b32.xlu0 %v991, 32
        %v2429 = vpop.permute.xlu0 %2428
        %2430 = vrot.lane.b32.xlu0 %v996, 32
        %v2431 = vpop.permute.xlu0 %2430
        %2432 = vrot.lane.b32.xlu0 %v999, 32
        %v2433 = vpop.permute.xlu0 %2432
        %2434 = vrot.lane.b32.xlu0 %v1004, 32
        %v2435 = vpop.permute.xlu0 %2434
        %2436 = vrot.lane.b32.xlu0 %v1007, 32
        %v2437 = vpop.permute.xlu0 %2436
        %2438 = vrot.lane.b32.xlu0 %v1012, 32
        %v2439 = vpop.permute.xlu0 %2438
        %2440 = vrot.lane.b32.xlu0 %v1015, 32
        %v2441 = vpop.permute.xlu0 %2440
        %2442 = vrot.lane.b32.xlu0 %v1020, 32
        %v2443 = vpop.permute.xlu0 %2442
        %2444 = vrot.lane.b32.xlu0 %v1023, 32
        %v2445 = vpop.permute.xlu0 %2444
        %2446 = vrot.lane.b32.xlu0 %v1028, 32
        %v2447 = vpop.permute.xlu0 %2446
        %2448 = vrot.lane.b32.xlu0 %v1031, 32
        %v2449 = vpop.permute.xlu0 %2448
        %2450 = vrot.lane.b32.xlu0 %v1036, 32
        %v2451 = vpop.permute.xlu0 %2450
        %2452 = vrot.lane.b32.xlu0 %v1039, 32
        %v2453 = vpop.permute.xlu0 %2452
        %v2454 = vmul.f32 %v2216, %v2423
        %v2455 = vmul.f32 %v2219, %v2425
        %v2456 = vmul.f32 %v2224, %v2427
        %v2457 = vmul.f32 %v2227, %v2429
        %v2458 = vmul.f32 %v2232, %v2431
        %v2459 = vmul.f32 %v2235, %v2433
        %v2460 = vmul.f32 %v2240, %v2435
        %v2461 = vmul.f32 %v2243, %v2437
        %v2462 = vmul.f32 %v2248, %v2439
        %v2463 = vmul.f32 %v2251, %v2441
        %v2464 = vmul.f32 %v2256, %v2443
        %v2465 = vmul.f32 %v2259, %v2445
        %v2466 = vmul.f32 %v2264, %v2447
        %v2467 = vmul.f32 %v2267, %v2449
        %v2468 = vmul.f32 %v2272, %v2451
        %v2469 = vmul.f32 %v2275, %v2453
        %v2470 = vadd.f32 %v2406, %v2454
        %v2471 = vadd.f32 %v2407, %v2455
        %v2472 = vadd.f32 %v2408, %v2456
        %v2473 = vadd.f32 %v2409, %v2457
        %v2474 = vadd.f32 %v2410, %v2458
        %v2475 = vadd.f32 %v2411, %v2459
        %v2476 = vadd.f32 %v2412, %v2460
        %v2477 = vadd.f32 %v2413, %v2461
        %v2478 = vadd.f32 %v2414, %v2462
        %v2479 = vadd.f32 %v2415, %v2463
        %v2480 = vadd.f32 %v2416, %v2464
        %v2481 = vadd.f32 %v2417, %v2465
        %v2482 = vadd.f32 %v2418, %v2466
        %v2483 = vadd.f32 %v2419, %v2467
        %v2484 = vadd.f32 %v2420, %v2468
        %v2485 = vadd.f32 %v2421, %v2469
        %2486 = vrot.lane.b32.xlu0 %v980, 64
        %v2487 = vpop.permute.xlu0 %2486
        %2488 = vrot.lane.b32.xlu0 %v983, 64
        %v2489 = vpop.permute.xlu0 %2488
        %2490 = vrot.lane.b32.xlu0 %v988, 64
        %v2491 = vpop.permute.xlu0 %2490
        %2492 = vrot.lane.b32.xlu0 %v991, 64
        %v2493 = vpop.permute.xlu0 %2492
        %2494 = vrot.lane.b32.xlu0 %v996, 64
        %v2495 = vpop.permute.xlu0 %2494
        %2496 = vrot.lane.b32.xlu0 %v999, 64
        %v2497 = vpop.permute.xlu0 %2496
        %2498 = vrot.lane.b32.xlu0 %v1004, 64
        %v2499 = vpop.permute.xlu0 %2498
        %2500 = vrot.lane.b32.xlu0 %v1007, 64
        %v2501 = vpop.permute.xlu0 %2500
        %2502 = vrot.lane.b32.xlu0 %v1012, 64
        %v2503 = vpop.permute.xlu0 %2502
        %2504 = vrot.lane.b32.xlu0 %v1015, 64
        %v2505 = vpop.permute.xlu0 %2504
        %2506 = vrot.lane.b32.xlu0 %v1020, 64
        %v2507 = vpop.permute.xlu0 %2506
        %2508 = vrot.lane.b32.xlu0 %v1023, 64
        %v2509 = vpop.permute.xlu0 %2508
        %2510 = vrot.lane.b32.xlu0 %v1028, 64
        %v2511 = vpop.permute.xlu0 %2510
        %2512 = vrot.lane.b32.xlu0 %v1031, 64
        %v2513 = vpop.permute.xlu0 %2512
        %2514 = vrot.lane.b32.xlu0 %v1036, 64
        %v2515 = vpop.permute.xlu0 %2514
        %2516 = vrot.lane.b32.xlu0 %v1039, 64
        %v2517 = vpop.permute.xlu0 %2516
        %v2518 = vmul.f32 %v2280, %v2487
        %v2519 = vmul.f32 %v2283, %v2489
        %v2520 = vmul.f32 %v2288, %v2491
        %v2521 = vmul.f32 %v2291, %v2493
        %v2522 = vmul.f32 %v2296, %v2495
        %v2523 = vmul.f32 %v2299, %v2497
        %v2524 = vmul.f32 %v2304, %v2499
        %v2525 = vmul.f32 %v2307, %v2501
        %v2526 = vmul.f32 %v2312, %v2503
        %v2527 = vmul.f32 %v2315, %v2505
        %v2528 = vmul.f32 %v2320, %v2507
        %v2529 = vmul.f32 %v2323, %v2509
        %v2530 = vmul.f32 %v2328, %v2511
        %v2531 = vmul.f32 %v2331, %v2513
        %v2532 = vmul.f32 %v2336, %v2515
        %v2533 = vmul.f32 %v2339, %v2517
        %v2534 = vadd.f32 %v2470, %v2518
        %v2535 = vadd.f32 %v2471, %v2519
        %v2536 = vadd.f32 %v2472, %v2520
        %v2537 = vadd.f32 %v2473, %v2521
        %v2538 = vadd.f32 %v2474, %v2522
        %v2539 = vadd.f32 %v2475, %v2523
        %v2540 = vadd.f32 %v2476, %v2524
        %v2541 = vadd.f32 %v2477, %v2525
        %v2542 = vadd.f32 %v2478, %v2526
        %v2543 = vadd.f32 %v2479, %v2527
        %v2544 = vadd.f32 %v2480, %v2528
        %v2545 = vadd.f32 %v2481, %v2529
        %v2546 = vadd.f32 %v2482, %v2530
        %v2547 = vadd.f32 %v2483, %v2531
        %v2548 = vadd.f32 %v2484, %v2532
        %v2549 = vadd.f32 %v2485, %v2533
        %2550 = vrot.lane.b32.xlu0 %v980, 96
        %v2551 = vpop.permute.xlu0 %2550
        %2552 = vrot.lane.b32.xlu0 %v983, 96
        %v2553 = vpop.permute.xlu0 %2552
        %2554 = vrot.lane.b32.xlu0 %v988, 96
        %v2555 = vpop.permute.xlu0 %2554
        %2556 = vrot.lane.b32.xlu0 %v991, 96
        %v2557 = vpop.permute.xlu0 %2556
        %2558 = vrot.lane.b32.xlu0 %v996, 96
        %v2559 = vpop.permute.xlu0 %2558
        %2560 = vrot.lane.b32.xlu0 %v999, 96
        %v2561 = vpop.permute.xlu0 %2560
        %2562 = vrot.lane.b32.xlu0 %v1004, 96
        %v2563 = vpop.permute.xlu0 %2562
        %2564 = vrot.lane.b32.xlu0 %v1007, 96
        %v2565 = vpop.permute.xlu0 %2564
        %2566 = vrot.lane.b32.xlu0 %v1012, 96
        %v2567 = vpop.permute.xlu0 %2566
        %2568 = vrot.lane.b32.xlu0 %v1015, 96
        %v2569 = vpop.permute.xlu0 %2568
        %2570 = vrot.lane.b32.xlu0 %v1020, 96
        %v2571 = vpop.permute.xlu0 %2570
        %2572 = vrot.lane.b32.xlu0 %v1023, 96
        %v2573 = vpop.permute.xlu0 %2572
        %2574 = vrot.lane.b32.xlu0 %v1028, 96
        %v2575 = vpop.permute.xlu0 %2574
        %2576 = vrot.lane.b32.xlu0 %v1031, 96
        %v2577 = vpop.permute.xlu0 %2576
        %2578 = vrot.lane.b32.xlu0 %v1036, 96
        %v2579 = vpop.permute.xlu0 %2578
        %2580 = vrot.lane.b32.xlu0 %v1039, 96
        %v2581 = vpop.permute.xlu0 %2580
        %v2582 = vmul.f32 %v2344, %v2551
        %v2583 = vmul.f32 %v2347, %v2553
        %v2584 = vmul.f32 %v2352, %v2555
        %v2585 = vmul.f32 %v2355, %v2557
        %v2586 = vmul.f32 %v2360, %v2559
        %v2587 = vmul.f32 %v2363, %v2561
        %v2588 = vmul.f32 %v2368, %v2563
        %v2589 = vmul.f32 %v2371, %v2565
        %v2590 = vmul.f32 %v2376, %v2567
        %v2591 = vmul.f32 %v2379, %v2569
        %v2592 = vmul.f32 %v2384, %v2571
        %v2593 = vmul.f32 %v2387, %v2573
        %v2594 = vmul.f32 %v2392, %v2575
        %v2595 = vmul.f32 %v2395, %v2577
        %v2596 = vmul.f32 %v2400, %v2579
        %v2597 = vmul.f32 %v2403, %v2581
        %v2598 = vadd.f32 %v2534, %v2582
        %v2599 = vadd.f32 %v2535, %v2583
        %v2600 = vadd.f32 %v2536, %v2584
        %v2601 = vadd.f32 %v2537, %v2585
        %v2602 = vadd.f32 %v2538, %v2586
        %v2603 = vadd.f32 %v2539, %v2587
        %v2604 = vadd.f32 %v2540, %v2588
        %v2605 = vadd.f32 %v2541, %v2589
        %v2606 = vadd.f32 %v2542, %v2590
        %v2607 = vadd.f32 %v2543, %v2591
        %v2608 = vadd.f32 %v2544, %v2592
        %v2609 = vadd.f32 %v2545, %v2593
        %v2610 = vadd.f32 %v2546, %v2594
        %v2611 = vadd.f32 %v2547, %v2595
        %v2612 = vadd.f32 %v2548, %v2596
        %v2613 = vadd.f32 %v2549, %v2597
        %v2614 = vpack.c.bf16 %v2599, %v2598
        %v2615 = vpack.c.bf16 %v2601, %v2600
        %v2616 = vpack.c.bf16 %v2603, %v2602
        %v2617 = vpack.c.bf16 %v2605, %v2604
        %v2618 = vpack.c.bf16 %v2607, %v2606
        %v2619 = vpack.c.bf16 %v2609, %v2608
        %v2620 = vpack.c.bf16 %v2611, %v2610
        %v2621 = vpack.c.bf16 %v2613, %v2612
        %v2622 = vlaneseq
        %v2623 = vshrl.u32 %v2622, 7
        %v2624 = vsub.s32 3, %v2623
        %v2625 = vrot.slane %v490, %v2624
        %v2642 = vunpack.c.l.b16 %v474
        %v2643 = vunpack.c.l.b16 %v475
        %v2644 = vunpack.c.l.b16 %v476
        %v2645 = vunpack.c.l.b16 %v477
        %v2646 = vunpack.c.l.b16 %v478
        %v2647 = vunpack.c.l.b16 %v479
        %v2648 = vunpack.c.l.b16 %v480
        %v2649 = vunpack.c.l.b16 %v481
        %v2650 = vunpack.c.l.b16 %v482
        %v2651 = vunpack.c.l.b16 %v483
        %v2652 = vunpack.c.l.b16 %v484
        %v2653 = vunpack.c.l.b16 %v485
        %v2654 = vunpack.c.l.b16 %v486
        %v2655 = vunpack.c.l.b16 %v487
        %v2656 = vunpack.c.l.b16 %v488
        %v2657 = vunpack.c.l.b16 %v489
        %v2658 = vpack.c.b16 %v2643, %v2642
        %v2659 = vpack.c.b16 %v2645, %v2644
        %v2660 = vpack.c.b16 %v2647, %v2646
        %v2661 = vpack.c.b16 %v2649, %v2648
        %v2662 = vpack.c.b16 %v2651, %v2650
        %v2663 = vpack.c.b16 %v2653, %v2652
        %v2664 = vpack.c.b16 %v2655, %v2654
        %v2665 = vpack.c.b16 %v2657, %v2656
        %2674 = vmatprep.subr.bf16.mxu0 0
        %2675 = vmatpush1.bf16.msra.mxu0 %v2658
        %2676 = vmatprep.subr.bf16.mxu0 0
        %2677 = vmatpush1.bf16.msra.mxu0 %v2659
        %2678 = vmatprep.subr.bf16.mxu0 0
        %2679 = vmatpush1.bf16.msra.mxu0 %v2660
        %2680 = vmatprep.subr.bf16.mxu0 0
        %2681 = vmatpush1.bf16.msra.mxu0 %v2661
        %2682 = vmatprep.subr.bf16.mxu0 0
        %2683 = vmatpush1.bf16.msra.mxu0 %v2662
        %2684 = vmatprep.subr.bf16.mxu0 0
        %2685 = vmatpush1.bf16.msra.mxu0 %v2663
        %2686 = vmatprep.subr.bf16.mxu0 0
        %2687 = vmatpush1.bf16.msra.mxu0 %v2664
        %2688 = vmatprep.subr.bf16.mxu0 0
        %2689 = vmatpush1.bf16.msra.mxu0 %v2665
        %2690 = vmatprep.subr.bf16.mxu0 0
        %2691 = vmatpush1.bf16.msra.mxu0 0
        %2692 = vmatprep.subr.bf16.mxu0 0
        %2693 = vmatpush1.bf16.msra.mxu0 0
        %2694 = vmatprep.subr.bf16.mxu0 0
        %2695 = vmatpush1.bf16.msra.mxu0 0
        %2696 = vmatprep.subr.bf16.mxu0 0
        %2697 = vmatpush1.bf16.msra.mxu0 0
        %2698 = vmatprep.subr.bf16.mxu0 0
        %2699 = vmatpush1.bf16.msra.mxu0 0
        %2700 = vmatprep.subr.bf16.mxu0 0
        %2701 = vmatpush1.bf16.msra.mxu0 0
        %2702 = vmatprep.subr.bf16.mxu0 0
        %2703 = vmatpush1.bf16.msra.mxu0 0
        %2704 = vmatprep.subr.bf16.mxu0 0
        %2705 = vmatpush1.bf16.msra.mxu0 0
        %2706 = vmatprep.mubr.bf16.mxu0 0
        %2707 = vmatmul.mubr.bf16.gmra.mrb[0].mxu0 %v2614
        %v2708 = vpop.f32.mrb[0].mxu0
        %v2709 = vadd.f32 %v2625, %v2708
        %v2710 = vpop.f32.mrb[0].mxu0
        %v2711 = vpop.f32.mrb[0].mxu0
        %v2712 = vadd.f32 %v2625, %v2711
        %v2713 = vpop.f32.mrb[0].mxu0
        %2714 = vmatprep.mubr.bf16.mxu0 0
        %2715 = vmatmul.mubr.bf16.gmra.mrb[0].mxu0 %v2615
        %v2716 = vpop.f32.mrb[0].mxu0
        %v2717 = vadd.f32 %v2625, %v2716
        %v2718 = vpop.f32.mrb[0].mxu0
        %v2719 = vpop.f32.mrb[0].mxu0
        %v2720 = vadd.f32 %v2625, %v2719
        %v2721 = vpop.f32.mrb[0].mxu0
        %2722 = vmatprep.mubr.bf16.mxu0 0
        %2723 = vmatmul.mubr.bf16.gmra.mrb[0].mxu0 %v2616
        %v2724 = vpop.f32.mrb[0].mxu0
        %v2725 = vadd.f32 %v2625, %v2724
        %v2726 = vpop.f32.mrb[0].mxu0
        %v2727 = vpop.f32.mrb[0].mxu0
        %v2728 = vadd.f32 %v2625, %v2727
        %v2729 = vpop.f32.mrb[0].mxu0
        %2730 = vmatprep.mubr.bf16.mxu0 0
        %2731 = vmatmul.mubr.bf16.gmra.mrb[0].mxu0 %v2617
        %v2732 = vpop.f32.mrb[0].mxu0
        %v2733 = vadd.f32 %v2625, %v2732
        %v2734 = vpop.f32.mrb[0].mxu0
        %v2735 = vpop.f32.mrb[0].mxu0
        %v2736 = vadd.f32 %v2625, %v2735
        %v2737 = vpop.f32.mrb[0].mxu0
        %2738 = vmatprep.mubr.bf16.mxu0 0
        %2739 = vmatmul.mubr.bf16.gmra.mrb[0].mxu0 %v2618
        %v2740 = vpop.f32.mrb[0].mxu0
        %v2741 = vadd.f32 %v2625, %v2740
        %v2742 = vpop.f32.mrb[0].mxu0
        %v2743 = vpop.f32.mrb[0].mxu0
        %v2744 = vadd.f32 %v2625, %v2743
        %v2745 = vpop.f32.mrb[0].mxu0
        %2746 = vmatprep.mubr.bf16.mxu0 0
        %2747 = vmatmul.mubr.bf16.gmra.mrb[0].mxu0 %v2619
        %v2748 = vpop.f32.mrb[0].mxu0
        %v2749 = vadd.f32 %v2625, %v2748
        %v2750 = vpop.f32.mrb[0].mxu0
        %v2751 = vpop.f32.mrb[0].mxu0
        %v2752 = vadd.f32 %v2625, %v2751
        %v2753 = vpop.f32.mrb[0].mxu0
        %2754 = vmatprep.mubr.bf16.mxu0 0
        %2755 = vmatmul.mubr.bf16.gmra.mrb[0].mxu0 %v2620
        %v2756 = vpop.f32.mrb[0].mxu0
        %v2757 = vadd.f32 %v2625, %v2756
        %v2758 = vpop.f32.mrb[0].mxu0
        %v2759 = vpop.f32.mrb[0].mxu0
        %v2760 = vadd.f32 %v2625, %v2759
        %v2761 = vpop.f32.mrb[0].mxu0
        %2762 = vmatprep.mubr.bf16.mxu0 0
        %2763 = vmatmul.mubr.bf16.gmra.mrb[0].mxu0 %v2621
        %v2764 = vpop.f32.mrb[0].mxu0
        %v2765 = vadd.f32 %v2625, %v2764
        %v2766 = vpop.f32.mrb[0].mxu0
        %v2767 = vpop.f32.mrb[0].mxu0
        %v2768 = vadd.f32 %v2625, %v2767
        %v2769 = vpop.f32.mrb[0].mxu0
        %2770 = vdwg.mxu0
        %v2771 = vadd.f32 %v634, %v2709
        %v2772 = vadd.f32 %v637, %v2712
        %v2773 = vadd.f32 %v642, %v2717
        %v2774 = vadd.f32 %v645, %v2720
        %v2775 = vadd.f32 %v650, %v2725
        %v2776 = vadd.f32 %v653, %v2728
        %v2777 = vadd.f32 %v658, %v2733
        %v2778 = vadd.f32 %v661, %v2736
        %v2779 = vadd.f32 %v666, %v2741
        %v2780 = vadd.f32 %v669, %v2744
        %v2781 = vadd.f32 %v674, %v2749
        %v2782 = vadd.f32 %v677, %v2752
        %v2783 = vadd.f32 %v682, %v2757
        %v2784 = vadd.f32 %v685, %v2760
        %v2785 = vadd.f32 %v690, %v2765
        %v2786 = vadd.f32 %v693, %v2768
        %2787 = vadd.xlane.f32.xlu0 %v2771
        %v2788 = vpop.xlane.xlu0 %2787
        %2789 = vadd.xlane.f32.xlu0 %v2772
        %v2790 = vpop.xlane.xlu0 %2789
        %2791 = vadd.xlane.f32.xlu0 %v2773
        %v2792 = vpop.xlane.xlu0 %2791
        %2793 = vadd.xlane.f32.xlu0 %v2774
        %v2794 = vpop.xlane.xlu0 %2793
        %2795 = vadd.xlane.f32.xlu0 %v2775
        %v2796 = vpop.xlane.xlu0 %2795
        %2797 = vadd.xlane.f32.xlu0 %v2776
        %v2798 = vpop.xlane.xlu0 %2797
        %2799 = vadd.xlane.f32.xlu0 %v2777
        %v2800 = vpop.xlane.xlu0 %2799
        %2801 = vadd.xlane.f32.xlu0 %v2778
        %v2802 = vpop.xlane.xlu0 %2801
        %2803 = vadd.xlane.f32.xlu0 %v2779
        %v2804 = vpop.xlane.xlu0 %2803
        %2805 = vadd.xlane.f32.xlu0 %v2780
        %v2806 = vpop.xlane.xlu0 %2805
        %2807 = vadd.xlane.f32.xlu0 %v2781
        %v2808 = vpop.xlane.xlu0 %2807
        %2809 = vadd.xlane.f32.xlu0 %v2782
        %v2810 = vpop.xlane.xlu0 %2809
        %2811 = vadd.xlane.f32.xlu0 %v2783
        %v2812 = vpop.xlane.xlu0 %2811
        %2813 = vadd.xlane.f32.xlu0 %v2784
        %v2814 = vpop.xlane.xlu0 %2813
        %2815 = vadd.xlane.f32.xlu0 %v2785
        %v2816 = vpop.xlane.xlu0 %2815
        %2817 = vadd.xlane.f32.xlu0 %v2786
        %v2818 = vpop.xlane.xlu0 %2817
        %v2819 = vrcp.pop 128.0
        %v2820 = vmul.f32 %v2788, %v2819
        %v2821 = vmul.f32 %v2790, %v2819
        %v2822 = vmul.f32 %v2792, %v2819
        %v2823 = vmul.f32 %v2794, %v2819
        %v2824 = vmul.f32 %v2796, %v2819
        %v2825 = vmul.f32 %v2798, %v2819
        %v2826 = vmul.f32 %v2800, %v2819
        %v2827 = vmul.f32 %v2802, %v2819
        %v2828 = vmul.f32 %v2804, %v2819
        %v2829 = vmul.f32 %v2806, %v2819
        %v2830 = vmul.f32 %v2808, %v2819
        %v2831 = vmul.f32 %v2810, %v2819
        %v2832 = vmul.f32 %v2812, %v2819
        %v2833 = vmul.f32 %v2814, %v2819
        %v2834 = vmul.f32 %v2816, %v2819
        %v2835 = vmul.f32 %v2818, %v2819
        %v2836 = vsub.f32 %v2771, %v2820
        %v2837 = vsub.f32 %v2772, %v2821
        %v2838 = vsub.f32 %v2773, %v2822
        %v2839 = vsub.f32 %v2774, %v2823
        %v2840 = vsub.f32 %v2775, %v2824
        %v2841 = vsub.f32 %v2776, %v2825
        %v2842 = vsub.f32 %v2777, %v2826
        %v2843 = vsub.f32 %v2778, %v2827
        %v2844 = vsub.f32 %v2779, %v2828
        %v2845 = vsub.f32 %v2780, %v2829
        %v2846 = vsub.f32 %v2781, %v2830
        %v2847 = vsub.f32 %v2782, %v2831
        %v2848 = vsub.f32 %v2783, %v2832
        %v2849 = vsub.f32 %v2784, %v2833
        %v2850 = vsub.f32 %v2785, %v2834
        %v2851 = vsub.f32 %v2786, %v2835
        %v2852 = vmul.f32 %v2836, %v2836
        %v2853 = vmul.f32 %v2837, %v2837
        %v2854 = vmul.f32 %v2838, %v2838
        %v2855 = vmul.f32 %v2839, %v2839
        %v2856 = vmul.f32 %v2840, %v2840
        %v2857 = vmul.f32 %v2841, %v2841
        %v2858 = vmul.f32 %v2842, %v2842
        %v2859 = vmul.f32 %v2843, %v2843
        %v2860 = vmul.f32 %v2844, %v2844
        %v2861 = vmul.f32 %v2845, %v2845
        %v2862 = vmul.f32 %v2846, %v2846
        %v2863 = vmul.f32 %v2847, %v2847
        %v2864 = vmul.f32 %v2848, %v2848
        %v2865 = vmul.f32 %v2849, %v2849
        %v2866 = vmul.f32 %v2850, %v2850
        %v2867 = vmul.f32 %v2851, %v2851
        %2868 = vadd.xlane.f32.xlu0 %v2852
        %v2869 = vpop.xlane.xlu0 %2868
        %2870 = vadd.xlane.f32.xlu0 %v2853
        %v2871 = vpop.xlane.xlu0 %2870
        %2872 = vadd.xlane.f32.xlu0 %v2854
        %v2873 = vpop.xlane.xlu0 %2872
        %2874 = vadd.xlane.f32.xlu0 %v2855
        %v2875 = vpop.xlane.xlu0 %2874
        %2876 = vadd.xlane.f32.xlu0 %v2856
        %v2877 = vpop.xlane.xlu0 %2876
        %2878 = vadd.xlane.f32.xlu0 %v2857
        %v2879 = vpop.xlane.xlu0 %2878
        %2880 = vadd.xlane.f32.xlu0 %v2858
        %v2881 = vpop.xlane.xlu0 %2880
        %2882 = vadd.xlane.f32.xlu0 %v2859
        %v2883 = vpop.xlane.xlu0 %2882
        %2884 = vadd.xlane.f32.xlu0 %v2860
        %v2885 = vpop.xlane.xlu0 %2884
        %2886 = vadd.xlane.f32.xlu0 %v2861
        %v2887 = vpop.xlane.xlu0 %2886
        %2888 = vadd.xlane.f32.xlu0 %v2862
        %v2889 = vpop.xlane.xlu0 %2888
        %2890 = vadd.xlane.f32.xlu0 %v2863
        %v2891 = vpop.xlane.xlu0 %2890
        %2892 = vadd.xlane.f32.xlu0 %v2864
        %v2893 = vpop.xlane.xlu0 %2892
        %2894 = vadd.xlane.f32.xlu0 %v2865
        %v2895 = vpop.xlane.xlu0 %2894
        %2896 = vadd.xlane.f32.xlu0 %v2866
        %v2897 = vpop.xlane.xlu0 %2896
        %2898 = vadd.xlane.f32.xlu0 %v2867
        %v2899 = vpop.xlane.xlu0 %2898
        %v2900 = vmul.f32 %v2869, %v2819
        %v2901 = vmul.f32 %v2871, %v2819
        %v2902 = vmul.f32 %v2873, %v2819
        %v2903 = vmul.f32 %v2875, %v2819
        %v2904 = vmul.f32 %v2877, %v2819
        %v2905 = vmul.f32 %v2879, %v2819
        %v2906 = vmul.f32 %v2881, %v2819
        %v2907 = vmul.f32 %v2883, %v2819
        %v2908 = vmul.f32 %v2885, %v2819
        %v2909 = vmul.f32 %v2887, %v2819
        %v2910 = vmul.f32 %v2889, %v2819
        %v2911 = vmul.f32 %v2891, %v2819
        %v2912 = vmul.f32 %v2893, %v2819
        %v2913 = vmul.f32 %v2895, %v2819
        %v2914 = vmul.f32 %v2897, %v2819
        %v2915 = vmul.f32 %v2899, %v2819
        %v2916 = vlaneseq
        %v2917 = vshrl.u32 %v2916, 7
        %v2918 = vsub.s32 4, %v2917
        %v2919 = vrot.slane %v490, %v2918
        %v2920 = vmul.f32 %v2919, %v2836
        %v2921 = vmul.f32 %v2919, %v2837
        %v2922 = vmul.f32 %v2919, %v2838
        %v2923 = vmul.f32 %v2919, %v2839
        %v2924 = vmul.f32 %v2919, %v2840
        %v2925 = vmul.f32 %v2919, %v2841
        %v2926 = vmul.f32 %v2919, %v2842
        %v2927 = vmul.f32 %v2919, %v2843
        %v2928 = vmul.f32 %v2919, %v2844
        %v2929 = vmul.f32 %v2919, %v2845
        %v2930 = vmul.f32 %v2919, %v2846
        %v2931 = vmul.f32 %v2919, %v2847
        %v2932 = vmul.f32 %v2919, %v2848
        %v2933 = vmul.f32 %v2919, %v2849
        %v2934 = vmul.f32 %v2919, %v2850
        %v2935 = vmul.f32 %v2919, %v2851
        %v2936 = vadd.f32 %v2900, 1e-05
        %v2937 = vadd.f32 %v2901, 1e-05
        %v2938 = vadd.f32 %v2902, 1e-05
        %v2939 = vadd.f32 %v2903, 1e-05
        %v2940 = vadd.f32 %v2904, 1e-05
        %v2941 = vadd.f32 %v2905, 1e-05
        %v2942 = vadd.f32 %v2906, 1e-05
        %v2943 = vadd.f32 %v2907, 1e-05
        %v2944 = vadd.f32 %v2908, 1e-05
        %v2945 = vadd.f32 %v2909, 1e-05
        %v2946 = vadd.f32 %v2910, 1e-05
        %v2947 = vadd.f32 %v2911, 1e-05
        %v2948 = vadd.f32 %v2912, 1e-05
        %v2949 = vadd.f32 %v2913, 1e-05
        %v2950 = vadd.f32 %v2914, 1e-05
        %v2951 = vadd.f32 %v2915, 1e-05
        %v2952 = vrsqrt.pop %v2936
        %v2953 = vrsqrt.pop %v2937
        %v2954 = vrsqrt.pop %v2938
        %v2955 = vrsqrt.pop %v2939
        %v2956 = vrsqrt.pop %v2940
        %v2957 = vrsqrt.pop %v2941
        %v2958 = vrsqrt.pop %v2942
        %v2959 = vrsqrt.pop %v2943
        %v2960 = vrsqrt.pop %v2944
        %v2961 = vrsqrt.pop %v2945
        %v2962 = vrsqrt.pop %v2946
        %v2963 = vrsqrt.pop %v2947
        %v2964 = vrsqrt.pop %v2948
        %v2965 = vrsqrt.pop %v2949
        %v2966 = vrsqrt.pop %v2950
        %v2967 = vrsqrt.pop %v2951
        %v2968 = vmul.f32 %v2920, %v2952
        %v2969 = vmul.f32 %v2921, %v2953
        %v2970 = vmul.f32 %v2922, %v2954
        %v2971 = vmul.f32 %v2923, %v2955
        %v2972 = vmul.f32 %v2924, %v2956
        %v2973 = vmul.f32 %v2925, %v2957
        %v2974 = vmul.f32 %v2926, %v2958
        %v2975 = vmul.f32 %v2927, %v2959
        %v2976 = vmul.f32 %v2928, %v2960
        %v2977 = vmul.f32 %v2929, %v2961
        %v2978 = vmul.f32 %v2930, %v2962
        %v2979 = vmul.f32 %v2931, %v2963
        %v2980 = vmul.f32 %v2932, %v2964
        %v2981 = vmul.f32 %v2933, %v2965
        %v2982 = vmul.f32 %v2934, %v2966
        %v2983 = vmul.f32 %v2935, %v2967
        %v2984 = vlaneseq
        %v2985 = vshrl.u32 %v2984, 7
        %v2986 = vsub.s32 5, %v2985
        %v2987 = vrot.slane %v490, %v2986
        %v2988 = vadd.f32 %v2968, %v2987
        %v2989 = vadd.f32 %v2969, %v2987
        %v2990 = vadd.f32 %v2970, %v2987
        %v2991 = vadd.f32 %v2971, %v2987
        %v2992 = vadd.f32 %v2972, %v2987
        %v2993 = vadd.f32 %v2973, %v2987
        %v2994 = vadd.f32 %v2974, %v2987
        %v2995 = vadd.f32 %v2975, %v2987
        %v2996 = vadd.f32 %v2976, %v2987
        %v2997 = vadd.f32 %v2977, %v2987
        %v2998 = vadd.f32 %v2978, %v2987
        %v2999 = vadd.f32 %v2979, %v2987
        %v3000 = vadd.f32 %v2980, %v2987
        %v3001 = vadd.f32 %v2981, %v2987
        %v3002 = vadd.f32 %v2982, %v2987
        %v3003 = vadd.f32 %v2983, %v2987
        %3004 = vst [vmem:[%s417] sm:$0xff] %v2988
        %3005 = vst [vmem:[%s417 + $0x8] sm:$0xff] %v2989
        %3006 = vst [vmem:[%s417 + $0x10] sm:$0xff] %v2990
        %3007 = vst [vmem:[%s417 + $0x18] sm:$0xff] %v2991
        %3008 = vst [vmem:[%s417 + $0x20] sm:$0xff] %v2992
        %3009 = vst [vmem:[%s417 + $0x28] sm:$0xff] %v2993
        %3010 = vst [vmem:[%s417 + $0x30] sm:$0xff] %v2994
        %3011 = vst [vmem:[%s417 + $0x38] sm:$0xff] %v2995
        %3012 = vst [vmem:[%s417 + $0x40] sm:$0xff] %v2996
        %3013 = vst [vmem:[%s417 + $0x48] sm:$0xff] %v2997
        %3014 = vst [vmem:[%s417 + $0x50] sm:$0xff] %v2998
        %3015 = vst [vmem:[%s417 + $0x58] sm:$0xff] %v2999
        %3016 = vst [vmem:[%s417 + $0x60] sm:$0xff] %v3000
        %3017 = vst [vmem:[%s417 + $0x68] sm:$0xff] %v3001
        %3018 = vst [vmem:[%s417 + $0x70] sm:$0xff] %v3002
        %3019 = vst [vmem:[%s417 + $0x78] sm:$0xff] %v3003
        %s3020 = sand.u32 %s199, 1
        %s3021 = scalar_lea.sflag [#allocation4], %s3020
        %s3022 = sand.u32 %s199, 1
        %s3023 = smul.addr %s3022, 128
        %s3024 = scalar_lea.vmem [#allocation13], %s3023
        // Predicated region
        $region73: #{tpu_custom_call.1} parent=47 // pred_check
          %p3025 = pneg %p209
        $region74: #{tpu_custom_call.1} parent=47 // pred_check_branch
          %3027 = sbr.rel (%p3025) target = $region76
        $region75: #{tpu_custom_call.1} parent=47 // pred_region
          %s3028 = smul.u32 16, %s29
          %s3030 = ssub.s32 2048, 2048
          %3031 = vsyncadd %s3021, %s3030
          %s3032 = smul.addr %s3028, 128
          %s3033 = scalar_lea.hbm %s7, %s3032
          %s3034 = sshll.u32 %s3024, 4
          %s3035 = int_to_ptr.vmem [resolvable:$true] %s3034
          %3040 = dma.vmem_to_hbm [thread:$0]  %s3035, 2048, %s3033, %s3021, 128, 128, 8
        $region76: #{tpu_custom_call.1} parent=47 // pred_fallthru
          _
      $region48: #{tpu_custom_call.1} parent=5 // pred_fallthru
        _
      %p3041 = scmp.le.s32.totalorder 2, %s24
      // Predicated region
      $region77: #{tpu_custom_call.1} parent=5 // pred_check
        %p3042 = pneg %p3041
      $region78: #{tpu_custom_call.1} parent=5 // pred_check_branch
        %3044 = sbr.rel (%p3042) target = $region80
      $region79: #{tpu_custom_call.1} parent=5 // pred_region
        %s3045 = ssub.s32 %s24, 2
        // Predicated region
        $region81: #{tpu_custom_call.1} parent=79 // pred_check
          %p3046 = pneg %p215
        $region82: #{tpu_custom_call.1} parent=79 // pred_check_branch
          %3048 = sbr.rel (%p3046) target = $region84
        $region83: #{tpu_custom_call.1} parent=79 // pred_region
          %s3049 = sand.u32 %s200, 1
          %s3050 = scalar_lea.sflag [#allocation4], %s3049
          %s3051 = sand.u32 %s200, 1
          %s3052 = smul.addr %s3051, 128
          %s3053 = scalar_lea.vmem [#allocation13], %s3052
          %3054 = dma.done %s3050, 2048
        $region84: #{tpu_custom_call.1} parent=79 // pred_fallthru
          _
      $region80: #{tpu_custom_call.1} parent=5 // pred_fallthru
        _
    $region6: #{tpu_custom_call.1} parent=1 // loop_footer
      %s28 = sadd.s32 1, %s24
    $region7: #{tpu_custom_call.1} parent=1 // loop_footer_branch
      %23 = sbr.rel target = $region3
    $region8: #{tpu_custom_call.1} parent=1 // loop_exit
      _
    %3055 = vsyncpa [#allocation3], 1
    %s3056 = scalar_lea.sflag [#allocation3], 1
    %3057 = vsyncpa %s3056, 1
    %3058 = vsyncpa [#allocation6], 1
    %s3059 = scalar_lea.sflag [#allocation6], 1
    %3060 = vsyncpa %s3059, 1
    %3061 = vsyncpa [#allocation9], 1
    %3062 = vsyncpa [#allocation12], 1
    %3063 = vsyncpa [#allocation4], 1
    %s3064 = scalar_lea.sflag [#allocation4], 1
    %3065 = vsyncpa %s3064, 1

</llo_original>
